<compile_context>
chip_gen: v6e
topology: v6e:2x2x1
jax: 0.10.0
libtpu: 0.0.40
codegen_flags: <defaults>
</compile_context>

<pallas_src>
import jax
import jax.numpy as jnp
from jax.experimental import pallas as pl
from jax.experimental.pallas import tpu as pltpu


def _round_up(n: int, m: int) -> int:
    return ((n + m - 1) // m) * m


# --------------------------------------------------------------------------
# Kernel
# --------------------------------------------------------------------------
def _make_decoder_kernel(num_hidden_layers: int, use_ctx: bool,
                         dim_y: int, dim_x: int, x_on_vpu: bool):
    """Kernel closure for a fixed MLP depth / ctx usage / x path."""
    out_aligned = (dim_y % 128 == 0)

    def kernel(*refs):
        idx = 0
        enc = refs[idx][...]; idx += 1            # (TM, dim_enc)   bf16
        xin = refs[idx][...]; idx += 1            # (TM, dim_x)     bf16
        if use_ctx:
            ctx = refs[idx][...]; idx += 1        # (TM, dim_ctx)   bf16
        w_enc = refs[idx][...]; idx += 1          # (dim_enc, Hp)   bf16
        w_x = refs[idx][...]; idx += 1            # (dim_x, Hp)     f32|bf16
        b_fc = refs[idx][...]; idx += 1           # (1, Hp)         f32

        # hid = fc(cat([encoded, x], -1)); concat replaced by split weight.
        hid = jnp.dot(enc, w_enc, preferred_element_type=jnp.float32)
        hid = hid + b_fc
        if x_on_vpu:
            # dim_x tiny: rank-dim_x VPU outer-product update instead of a
            # nearly empty K=dim_x MXU pass.
            xf = xin.astype(jnp.float32)
            for j in range(dim_x):
                hid = hid + xf[:, j:j + 1] * w_x[j:j + 1, :]
        else:
            hid = hid + jnp.dot(xin, w_x, preferred_element_type=jnp.float32)
        if use_ctx:
            w_ctx = refs[idx][...]; idx += 1      # (dim_ctx, Hp)   bf16
            hid = hid + jnp.dot(ctx, w_ctx, preferred_element_type=jnp.float32)

        # mlp: ReLU -> [Linear -> ReLU]*(depth-2) -> Linear
        h = jnp.maximum(hid, 0.0)                 # f32 elementwise
        for _ in range(num_hidden_layers):
            w = refs[idx][...]; idx += 1          # (Hp, Hp)        bf16
            b = refs[idx][...]; idx += 1          # (1, Hp)         f32
            h = jnp.maximum(
                jnp.dot(h.astype(w.dtype), w,
                        preferred_element_type=jnp.float32) + b, 0.0)

        w_out = refs[idx][...]; idx += 1          # (Hp, 2*dim_y)   bf16
        b_out = refs[idx][...]; idx += 1          # (1, 2*dim_y)    f32
        out = jnp.dot(h.astype(w_out.dtype), w_out,
                      preferred_element_type=jnp.float32) + b_out

        out_ref = refs[idx]                       # (TM, 2*dim_y)   f32

        if out_aligned:
            # dim_y lane-aligned: softplus only on sigma half, two aligned
            # column stores.
            out_ref[:, :dim_y] = out[:, :dim_y].astype(out_ref.dtype)
            sig = 0.1 + 0.9 * jax.nn.softplus(out[:, dim_y:])
            out_ref[:, dim_y:] = sig.astype(out_ref.dtype)
        else:
            # Narrow dim_y: lane-masked select -> one contiguous store, no
            # non-128-aligned in-kernel slices.  (EUP work on the mu lanes is
            # one vreg-worth and is discarded by the select.)
            col = jax.lax.broadcasted_iota(jnp.int32, out.shape, 1)
            sig = 0.1 + 0.9 * jax.nn.softplus(out)
            out_ref[...] = jnp.where(col < dim_y, out, sig).astype(out_ref.dtype)

    return kernel


# --------------------------------------------------------------------------
# One-time parameter preparation (cast + pad; do NOT call per step)
# --------------------------------------------------------------------------
def prepare_decoder_params(params, dim_enc, *, use_ctx=False,
                           lane=128, vpu_x_threshold=8):
    """Pre-cast and pad parameters once.  Returns a dict consumed by
    decoder_forward.  Weights -> bf16 (dim_hid padded to a lane multiple),
    biases -> f32."""
    w_fc = jnp.asarray(params["w_fc"], jnp.float32)
    b_fc = jnp.asarray(params["b_fc"], jnp.float32)
    dim_in, dim_hid = w_fc.shape
    dim_x = dim_in - dim_enc
    hid_pad = _round_up(dim_hid, lane)
    dim_y = params["w_out"].shape[1] // 2

    def pad_cols(a, n):
        return a if a.shape[1] == n else jnp.pad(a, ((0, 0), (0, n - a.shape[1])))

    def pad_rows(a, n):
        return a if a.shape[0] == n else jnp.pad(a, ((0, n - a.shape[0]), (0, 0)))

    x_on_vpu = dim_x <= vpu_x_threshold
    w_enc = pad_cols(w_fc[:dim_enc], hid_pad).astype(jnp.bfloat16)
    w_x = pad_cols(w_fc[dim_enc:], hid_pad).astype(
        jnp.float32 if x_on_vpu else jnp.bfloat16)
    b_fc_p = pad_cols(b_fc.reshape(1, -1), hid_pad).astype(jnp.float32)

    hidden = []
    for (w, b) in params["hidden"]:
        wp = pad_cols(pad_rows(jnp.asarray(w, jnp.float32), hid_pad),
                      hid_pad).astype(jnp.bfloat16)
        bp = pad_cols(jnp.asarray(b, jnp.float32).reshape(1, -1), hid_pad)
        hidden.append((wp, bp))

    w_out = pad_rows(jnp.asarray(params["w_out"], jnp.float32),
                     hid_pad).astype(jnp.bfloat16)
    b_out = jnp.asarray(params["b_out"], jnp.float32).reshape(1, -1)

    prep = dict(dim_enc=dim_enc, dim_x=dim_x, dim_hid=dim_hid, hid_pad=hid_pad,
                dim_y=dim_y, x_on_vpu=x_on_vpu, use_ctx=use_ctx,
                w_enc=w_enc, w_x=w_x, b_fc=b_fc_p, hidden=hidden,
                w_out=w_out, b_out=b_out)
    tensors = [w_enc, w_x, b_fc_p, w_out, b_out] + [t for p in hidden for t in p]
    if use_ctx:
        w_ctx = pad_cols(jnp.asarray(params["w_ctx"], jnp.float32),
                         hid_pad).astype(jnp.bfloat16)
        prep["w_ctx"] = w_ctx
        prep["dim_ctx"] = int(w_ctx.shape[0])
        tensors.append(w_ctx)
    prep["weight_bytes"] = int(sum(int(t.size) * t.dtype.itemsize for t in tensors))
    return prep


# --------------------------------------------------------------------------
# Row-tile selection (VMEM- and generation-aware)
# --------------------------------------------------------------------------
def _pick_tm(M, row_bytes, resident_bytes, vmem_budget, block_rows=None):
    upper = block_rows if block_rows is not None else 1024
    tm_cap = max(16, min(_round_up(upper, 16), _round_up(M, 16)))
    cands = sorted({c for c in (16, 32, 64, 128, 256, 384, 512, 768, 1024,
                                1536, 2048, tm_cap) if 16 <= c <= tm_cap})
    tm = 16
    for c in cands:
        if resident_bytes + c * row_bytes <= vmem_budget:
            tm = c
    return tm


# --------------------------------------------------------------------------
# Forward wrapper
# --------------------------------------------------------------------------
def decoder_forward(encoded, x, prep, ctx=None, block_rows=None):
    """Pallas implementation of Decoder.forward.

    encoded: (B, N, dim_enc), x: (B, N, dim_x), ctx: (B, N, dim_ctx) or None.
    prep: output of prepare_decoder_params (weights pre-cast/padded once).
    Returns (mu, sigma), each (B, N, dim_y) — the Normal parameters.
    """
    B, N, dim_enc = encoded.shape
    dim_x = x.shape[-1]
    assert dim_enc == prep["dim_enc"] and dim_x == prep["dim_x"]
    use_ctx = prep["use_ctx"]
    assert (ctx is not None) == use_ctx
    dim_y = prep["dim_y"]
    hid_pad = prep["hid_pad"]
    num_hidden = len(prep["hidden"])
    dim_ctx = prep.get("dim_ctx", 0)
    out_cols = 2 * dim_y
    M = B * N

    # ---- VMEM budgeting + row-tile selection ------------------------------
    try:
        vmem_cap = int(pltpu.get_tpu_info().vmem_capacity_bytes)
    except Exception:
        vmem_cap = 64 * 1024 * 1024        # conservative (v7x per-TC VMEM)
    weight_bytes = prep["weight_bytes"]
    # per-row VMEM: 2x-buffered bf16 input tiles + 2x-buffered f32 output tile
    # + f32 hidden intermediates (with slack for bf16 copies).
    row_bytes = (2 * 2 * (dim_enc + dim_x + dim_ctx)
                 + 2 * 4 * out_cols
                 + 4 * 4 * hid_pad)
    budget = int(vmem_cap * 0.7)
    TM = _pick_tm(M, row_bytes, weight_bytes, budget, block_rows)
    M_pad = _round_up(M, TM)
    grid_n = M_pad // TM
    # Keep >= 2 (and preferably an even number of) row tiles so v7x's two
    # TensorCores both get work from the "parallel" grid axis.
    if grid_n == 1 and _round_up(M, 16) > 16:
        TM = _round_up(pl.cdiv(M, 2), 16)
        M_pad = _round_up(M, TM); grid_n = M_pad // TM
    elif grid_n > 1 and grid_n % 2 == 1:
        TM = _round_up(pl.cdiv(M, grid_n + 1), 16)
        M_pad = _round_up(M, TM); grid_n = M_pad // TM

    # Explicit scoped-VMEM limit (default is only 16/32 MiB); covers the
    # double-buffered-weights fallback path too.
    vmem_need = 2 * weight_bytes + TM * row_bytes
    vmem_limit = int(min(0.9 * vmem_cap, vmem_need + (16 << 20)))
    # TODO(synk): if the resident weight set ever exceeds the VMEM budget
    # (very deep/wide MLPs on v7x), stream weights layer-by-layer with
    # pltpu.emit_pipeline instead of holding them all resident.

    # ---- activations: bf16, row-padded to M_pad ---------------------------
    def to2d(a, d):
        a2 = a.reshape(M, d).astype(jnp.bfloat16)
        if M_pad != M:
            a2 = jnp.pad(a2, ((0, M_pad - M), (0, 0)))
        return a2

    inputs = [to2d(encoded, dim_enc), to2d(x, dim_x)]
    if use_ctx:
        inputs.append(to2d(ctx, dim_ctx))
    inputs += [prep["w_enc"], prep["w_x"], prep["b_fc"]]
    if use_ctx:
        inputs.append(prep["w_ctx"])
    for (w, b) in prep["hidden"]:
        inputs += [w, b]
    inputs += [prep["w_out"], prep["b_out"]]

    kernel = _make_decoder_kernel(num_hidden, use_ctx, dim_y, dim_x,
                                  prep["x_on_vpu"])

    flops = 2 * M_pad * ((dim_enc + dim_x + dim_ctx) * hid_pad
                         + num_hidden * hid_pad * hid_pad
                         + hid_pad * out_cols)
    transcendentals = M_pad * out_cols
    bytes_accessed = int(sum(int(a.size) * a.dtype.itemsize for a in inputs)
                         + M_pad * out_cols * 4)

    def build_in_specs(single_buffer_weights):
        wkw = ({"pipeline_mode": pl.Buffered(buffer_count=1)}
               if single_buffer_weights else {})

        def wspec(shape):  # constant-index (resident) weight operand
            return pl.BlockSpec(shape, lambda i: (0, 0), **wkw)

        specs = [pl.BlockSpec((TM, dim_enc), lambda i: (i, 0)),
                 pl.BlockSpec((TM, dim_x), lambda i: (i, 0))]
        if use_ctx:
            specs.append(pl.BlockSpec((TM, dim_ctx), lambda i: (i, 0)))
        specs += [wspec(prep["w_enc"].shape), wspec(prep["w_x"].shape),
                  wspec(prep["b_fc"].shape)]
        if use_ctx:
            specs.append(wspec(prep["w_ctx"].shape))
        for (w, b) in prep["hidden"]:
            specs += [wspec(w.shape), wspec(b.shape)]
        specs += [wspec(prep["w_out"].shape), wspec(prep["b_out"].shape)]
        return specs

    def run(single_buffer_weights):
        return pl.pallas_call(
            kernel,
            out_shape=jax.ShapeDtypeStruct((M_pad, out_cols), jnp.float32),
            grid_spec=pltpu.PrefetchScalarGridSpec(
                num_scalar_prefetch=0,
                grid=(grid_n,),
                in_specs=build_in_specs(single_buffer_weights),
                out_specs=pl.BlockSpec((TM, out_cols), lambda i: (i, 0)),
            ),
            compiler_params=pltpu.CompilerParams(
                dimension_semantics=("parallel",),
                vmem_limit_bytes=vmem_limit),
            cost_estimate=pl.CostEstimate(
                flops=int(flops),
                transcendentals=int(transcendentals),
                bytes_accessed=bytes_accessed),
        )(*inputs)

    try:
        out = run(True)        # single-buffer the constant-index weight specs
    except Exception:
        # pl.Buffered(1) unsupported on this JAX/Mosaic version: fall back to
        # default (double-buffered) specs — correctness unchanged.
        out = run(False)

    out = out[:M]
    mu = out[:, :dim_y].reshape(B, N, dim_y)
    sigma = out[:, dim_y:].reshape(B, N, dim_y)
    return mu, sigma


# --------------------------------------------------------------------------
# Parameter init + references
# --------------------------------------------------------------------------
def init_decoder_params(key, dim_x, dim_y, dim_enc, dim_hid, depth, dim_ctx=None):
    """Deterministic parameter init (same shapes as the PyTorch module)."""
    keys = jax.random.split(key, 16)
    k = iter(keys)

    def lin(kw, kb, fan_in, fan_out):
        bound = 1.0 / jnp.sqrt(fan_in)
        w = jax.random.uniform(kw, (fan_in, fan_out), jnp.float32, -bound, bound)
        b = jax.random.uniform(kb, (fan_out,), jnp.float32, -bound, bound)
        return w, b

    params = {}
    params["w_fc"], params["b_fc"] = lin(next(k), next(k), dim_x + dim_enc, dim_hid)
    hidden = []
    for _ in range(depth - 2):
        hidden.append(lin(next(k), next(k), dim_hid, dim_hid))
    params["hidden"] = hidden
    params["w_out"], params["b_out"] = lin(next(k), next(k), dim_hid, 2 * dim_y)
    if dim_ctx is not None:
        bound = 1.0 / jnp.sqrt(dim_ctx)
        params["w_ctx"] = jax.random.uniform(
            next(k), (dim_ctx, dim_hid), jnp.float32, -bound, bound)
    return params


def _reference_forward_f32(encoded, x, params, ctx=None):
    """Pure-JAX f32 reference of the PyTorch forward."""
    packed = jnp.concatenate([encoded, x], axis=-1)
    hid = packed @ params["w_fc"] + params["b_fc"]
    if ctx is not None:
        hid = hid + ctx @ params["w_ctx"]
    h = jnp.maximum(hid, 0.0)
    for (w, b) in params["hidden"]:
        h = jnp.maximum(h @ w + b, 0.0)
    out = h @ params["w_out"] + params["b_out"]
    dim_y = out.shape[-1] // 2
    mu, sig = out[..., :dim_y], out[..., dim_y:]
    return mu, 0.1 + 0.9 * jax.nn.softplus(sig)


def _reference_forward_bf16(encoded, x, params, dim_enc, ctx=None, x_on_vpu=True):
    """Reference emulating the kernel's bf16-MXU / f32-accumulate numerics."""
    bf = jnp.bfloat16

    def mm(a, w):
        return jnp.dot(a.astype(bf), w.astype(bf),
                       preferred_element_type=jnp.float32)

    w_enc = params["w_fc"][:dim_enc]
    w_x = params["w_fc"][dim_enc:]
    hid = mm(encoded, w_enc) + params["b_fc"]
    if x_on_vpu:
        hid = hid + jnp.dot(x.astype(bf).astype(jnp.float32), w_x)
    else:
        hid = hid + mm(x, w_x)
    if ctx is not None:
        hid = hid + mm(ctx, params["w_ctx"])
    h = jnp.maximum(hid, 0.0)
    for (w, b) in params["hidden"]:
        h = jnp.maximum(mm(h, w) + b, 0.0)
    out = mm(h, params["w_out"]) + params["b_out"]
    dim_y = out.shape[-1] // 2
    mu, sig = out[..., :dim_y], out[..., dim_y:]
    return mu, 0.1 + 0.9 * jax.nn.softplus(sig)


# --------------------------------------------------------------------------
if __name__ == "__main__":
    # Small shapes consistent with the module (scaled-down feature dims).
    dim_x, dim_y, dim_enc, dim_hid, depth, dim_ctx = 2, 2, 32, 32, 3, 16
    B, N = 2, 100   # M = 200: exercises row padding, auto TM, and grid = 2.

    key = jax.random.PRNGKey(0)
    k_enc, k_x, k_ctx, k_par = jax.random.split(key, 4)
    encoded = jax.random.normal(k_enc, (B, N, dim_enc), jnp.float32)
    x = jax.random.normal(k_x, (B, N, dim_x), jnp.float32)
    ctx = jax.random.normal(k_ctx, (B, N, dim_ctx), jnp.float32)

    params = init_decoder_params(k_par, dim_x, dim_y, dim_enc, dim_hid, depth,
                                 dim_ctx=dim_ctx)
    prep = prepare_decoder_params(params, dim_enc, use_ctx=True)  # once

    mu, sigma = decoder_forward(encoded, x, prep, ctx=ctx)
    jax.block_until_ready((mu, sigma))

    # Tight check against a reference with matching bf16-matmul numerics.
    mu_bf, sigma_bf = _reference_forward_bf16(encoded, x, params, dim_enc,
                                              ctx=ctx, x_on_vpu=prep["x_on_vpu"])
    assert jnp.allclose(mu, mu_bf, atol=2e-3, rtol=2e-3)
    assert jnp.allclose(sigma, sigma_bf, atol=2e-3, rtol=2e-3)

    # Looser sanity check against the full-f32 semantics of the torch module.
    mu_f32, sigma_f32 = _reference_forward_f32(encoded, x, params, ctx=ctx)
    assert jnp.allclose(mu, mu_f32, atol=7e-2, rtol=7e-2)
    assert jnp.allclose(sigma, sigma_f32, atol=7e-2, rtol=7e-2)
    assert bool(jnp.all(sigma > 0.0))  # valid Normal scale

    print("KERNEL_OK")
</pallas_src>

<mosaic_0001>
module attributes {stable_mosaic.version = 11 : i64} {
  func.func @kernel(%arg0: i32, %arg1: memref<112x32xbf16, #tpu.memory_space<vmem>>, %arg2: memref<112x2xbf16, #tpu.memory_space<vmem>>, %arg3: memref<112x16xbf16, #tpu.memory_space<vmem>>, %arg4: memref<32x128xbf16, #tpu.memory_space<vmem>>, %arg5: memref<2x128xf32, #tpu.memory_space<vmem>>, %arg6: memref<1x128xf32, #tpu.memory_space<vmem>>, %arg7: memref<16x128xbf16, #tpu.memory_space<vmem>>, %arg8: memref<128x128xbf16, #tpu.memory_space<vmem>>, %arg9: memref<1x128xf32, #tpu.memory_space<vmem>>, %arg10: memref<128x4xbf16, #tpu.memory_space<vmem>>, %arg11: memref<1x4xf32, #tpu.memory_space<vmem>>, %arg12: memref<112x4xf32, #tpu.memory_space<vmem>>) attributes {dimension_semantics = [#tpu.dimension_semantics<parallel>], iteration_bounds = array<i64: 2>, scalar_prefetch = 0 : i64, scratch_operands = 0 : i64, tpu.core_type = #tpu.core_type<tc>, window_params = [{transform_indices = @transform_0, window_bounds = array<i64: 112, 32>}, {transform_indices = @transform_1, window_bounds = array<i64: 112, 2>}, {transform_indices = @transform_2, window_bounds = array<i64: 112, 16>}, {pipeline_mode = #tpu.pipeline_mode<synchronous>, transform_indices = @transform_3, window_bounds = array<i64: 32, 128>}, {pipeline_mode = #tpu.pipeline_mode<synchronous>, transform_indices = @transform_4, window_bounds = array<i64: 2, 128>}, {pipeline_mode = #tpu.pipeline_mode<synchronous>, transform_indices = @transform_5, window_bounds = array<i64: 1, 128>}, {pipeline_mode = #tpu.pipeline_mode<synchronous>, transform_indices = @transform_6, window_bounds = array<i64: 16, 128>}, {pipeline_mode = #tpu.pipeline_mode<synchronous>, transform_indices = @transform_7, window_bounds = array<i64: 128, 128>}, {pipeline_mode = #tpu.pipeline_mode<synchronous>, transform_indices = @transform_8, window_bounds = array<i64: 1, 128>}, {pipeline_mode = #tpu.pipeline_mode<synchronous>, transform_indices = @transform_9, window_bounds = array<i64: 128, 4>}, {pipeline_mode = #tpu.pipeline_mode<synchronous>, transform_indices = @transform_10, window_bounds = array<i64: 1, 4>}, {transform_indices = @transform_11, window_bounds = array<i64: 112, 4>}]} {
    %c0 = arith.constant 0 : index
    %c0_0 = arith.constant 0 : index
    %0 = vector.load %arg1[%c0, %c0_0] : memref<112x32xbf16, #tpu.memory_space<vmem>>, vector<112x32xbf16>
    %c0_1 = arith.constant 0 : index
    %c0_2 = arith.constant 0 : index
    %1 = vector.load %arg2[%c0_1, %c0_2] : memref<112x2xbf16, #tpu.memory_space<vmem>>, vector<112x2xbf16>
    %c0_3 = arith.constant 0 : index
    %c0_4 = arith.constant 0 : index
    %2 = vector.load %arg3[%c0_3, %c0_4] : memref<112x16xbf16, #tpu.memory_space<vmem>>, vector<112x16xbf16>
    %c0_5 = arith.constant 0 : index
    %c0_6 = arith.constant 0 : index
    %3 = vector.load %arg4[%c0_5, %c0_6] : memref<32x128xbf16, #tpu.memory_space<vmem>>, vector<32x128xbf16>
    %c0_7 = arith.constant 0 : index
    %c0_8 = arith.constant 0 : index
    %4 = vector.load %arg5[%c0_7, %c0_8] : memref<2x128xf32, #tpu.memory_space<vmem>>, vector<2x128xf32>
    %c0_9 = arith.constant 0 : index
    %c0_10 = arith.constant 0 : index
    %5 = vector.load %arg6[%c0_9, %c0_10] : memref<1x128xf32, #tpu.memory_space<vmem>>, vector<1x128xf32>
    %cst = arith.constant dense<0.000000e+00> : vector<112x128xf32>
    %6 = tpu.matmul %0, %3, %cst {dimension_numbers = #tpu.dot_dimension_numbers<[1], [0], [0], [1], [0, 0, 1, 1], [], []>} : vector<112x32xbf16>, vector<32x128xbf16>, vector<112x128xf32> -> vector<112x128xf32>
    %7 = vector.broadcast %5 : vector<1x128xf32> to vector<112x128xf32>
    %8 = arith.addf %6, %7 : vector<112x128xf32>
    %9 = arith.extf %1 : vector<112x2xbf16> to vector<112x2xf32>
    %10 = vector.extract_strided_slice %9 {offsets = [0, 0], sizes = [112, 1], strides = [1, 1]} : vector<112x2xf32> to vector<112x1xf32>
    %11 = vector.extract_strided_slice %4 {offsets = [0, 0], sizes = [1, 128], strides = [1, 1]} : vector<2x128xf32> to vector<1x128xf32>
    %12 = vector.broadcast %10 : vector<112x1xf32> to vector<112x128xf32>
    %13 = vector.broadcast %11 : vector<1x128xf32> to vector<112x128xf32>
    %14 = arith.mulf %12, %13 : vector<112x128xf32>
    %15 = arith.addf %8, %14 : vector<112x128xf32>
    %16 = vector.extract_strided_slice %9 {offsets = [0, 1], sizes = [112, 1], strides = [1, 1]} : vector<112x2xf32> to vector<112x1xf32>
    %17 = vector.extract_strided_slice %4 {offsets = [1, 0], sizes = [1, 128], strides = [1, 1]} : vector<2x128xf32> to vector<1x128xf32>
    %18 = vector.broadcast %16 : vector<112x1xf32> to vector<112x128xf32>
    %19 = vector.broadcast %17 : vector<1x128xf32> to vector<112x128xf32>
    %20 = arith.mulf %18, %19 : vector<112x128xf32>
    %21 = arith.addf %15, %20 : vector<112x128xf32>
    %c0_11 = arith.constant 0 : index
    %c0_12 = arith.constant 0 : index
    %22 = vector.load %arg7[%c0_11, %c0_12] : memref<16x128xbf16, #tpu.memory_space<vmem>>, vector<16x128xbf16>
    %cst_13 = arith.constant dense<0.000000e+00> : vector<112x128xf32>
    %23 = tpu.matmul %2, %22, %cst_13 {dimension_numbers = #tpu.dot_dimension_numbers<[1], [0], [0], [1], [0, 0, 1, 1], [], []>} : vector<112x16xbf16>, vector<16x128xbf16>, vector<112x128xf32> -> vector<112x128xf32>
    %24 = arith.addf %21, %23 : vector<112x128xf32>
    %cst_14 = arith.constant 0.000000e+00 : f32
    %25 = vector.broadcast %cst_14 : f32 to vector<112x128xf32>
    %26 = arith.maximumf %24, %25 : vector<112x128xf32>
    %c0_15 = arith.constant 0 : index
    %c0_16 = arith.constant 0 : index
    %27 = vector.load %arg8[%c0_15, %c0_16] : memref<128x128xbf16, #tpu.memory_space<vmem>>, vector<128x128xbf16>
    %c0_17 = arith.constant 0 : index
    %c0_18 = arith.constant 0 : index
    %28 = vector.load %arg9[%c0_17, %c0_18] : memref<1x128xf32, #tpu.memory_space<vmem>>, vector<1x128xf32>
    %29 = arith.truncf %26 : vector<112x128xf32> to vector<112x128xbf16>
    %cst_19 = arith.constant dense<0.000000e+00> : vector<112x128xf32>
    %30 = tpu.matmul %29, %27, %cst_19 {dimension_numbers = #tpu.dot_dimension_numbers<[1], [0], [0], [1], [0, 0, 1, 1], [], []>} : vector<112x128xbf16>, vector<128x128xbf16>, vector<112x128xf32> -> vector<112x128xf32>
    %31 = vector.broadcast %28 : vector<1x128xf32> to vector<112x128xf32>
    %32 = arith.addf %30, %31 : vector<112x128xf32>
    %cst_20 = arith.constant 0.000000e+00 : f32
    %33 = vector.broadcast %cst_20 : f32 to vector<112x128xf32>
    %34 = arith.maximumf %32, %33 : vector<112x128xf32>
    %c0_21 = arith.constant 0 : index
    %c0_22 = arith.constant 0 : index
    %35 = vector.load %arg10[%c0_21, %c0_22] : memref<128x4xbf16, #tpu.memory_space<vmem>>, vector<128x4xbf16>
    %c0_23 = arith.constant 0 : index
    %c0_24 = arith.constant 0 : index
    %36 = vector.load %arg11[%c0_23, %c0_24] : memref<1x4xf32, #tpu.memory_space<vmem>>, vector<1x4xf32>
    %37 = arith.truncf %34 : vector<112x128xf32> to vector<112x128xbf16>
    %cst_25 = arith.constant dense<0.000000e+00> : vector<112x4xf32>
    %38 = tpu.matmul %37, %35, %cst_25 {dimension_numbers = #tpu.dot_dimension_numbers<[1], [0], [0], [1], [0, 0, 1, 1], [], []>} : vector<112x128xbf16>, vector<128x4xbf16>, vector<112x4xf32> -> vector<112x4xf32>
    %39 = vector.broadcast %36 : vector<1x4xf32> to vector<112x4xf32>
    %40 = arith.addf %38, %39 : vector<112x4xf32>
    %41 = tpu.iota {dimensions = array<i32: 1>} : vector<112x4xi32>
    %cst_26 = arith.constant 0.000000e+00 : f32
    %42 = vector.broadcast %cst_26 : f32 to vector<112x4xf32>
    %43 = arith.maximumf %40, %42 : vector<112x4xf32>
    %44 = vector.broadcast %cst_26 : f32 to vector<112x4xf32>
    %45 = arith.subf %40, %44 : vector<112x4xf32>
    %46 = arith.cmpf one, %45, %45 : vector<112x4xf32>
    %47 = vector.broadcast %cst_26 : f32 to vector<112x4xf32>
    %48 = arith.addf %40, %47 : vector<112x4xf32>
    %49 = math.absf %45 : vector<112x4xf32>
    %cst_27 = arith.constant 0.000000e+00 : f32
    %50 = vector.broadcast %cst_27 : f32 to vector<112x4xf32>
    %51 = arith.subf %50, %49 : vector<112x4xf32>
    %52 = math.exp %51 : vector<112x4xf32>
    %53 = math.log1p %52 : vector<112x4xf32>
    %54 = arith.addf %43, %53 : vector<112x4xf32>
    %55 = arith.select %46, %48, %54 : vector<112x4xi1>, vector<112x4xf32>
    %cst_28 = arith.constant 0.899999976 : f32
    %56 = vector.broadcast %cst_28 : f32 to vector<112x4xf32>
    %57 = arith.mulf %56, %55 : vector<112x4xf32>
    %cst_29 = arith.constant 1.000000e-01 : f32
    %58 = vector.broadcast %cst_29 : f32 to vector<112x4xf32>
    %59 = arith.addf %58, %57 : vector<112x4xf32>
    %c2_i32 = arith.constant 2 : i32
    %60 = vector.broadcast %c2_i32 : i32 to vector<112x4xi32>
    %61 = arith.cmpi slt, %41, %60 : vector<112x4xi32>
    %62 = arith.select %61, %40, %59 : vector<112x4xi1>, vector<112x4xf32>
    %c0_30 = arith.constant 0 : index
    %c0_31 = arith.constant 0 : index
    %63 = vector.load %arg12[%c0_30, %c0_31] : memref<112x4xf32, #tpu.memory_space<vmem>>, vector<112x4xf32>
    tpu.vector_store %arg12[%c0_30, %c0_31], %62 {strides = array<i32>} : memref<112x4xf32, #tpu.memory_space<vmem>>, vector<112x4xf32>,
    return
  }
  func.func @transform_0(%arg0: i32) -> (i32, i32) {
    %c0_i32 = arith.constant 0 : i32
    %c0_i32_0 = arith.constant 0 : i32
    return %arg0, %c0_i32 : i32, i32
  }
  func.func @transform_1(%arg0: i32) -> (i32, i32) {
    %c0_i32 = arith.constant 0 : i32
    %c0_i32_0 = arith.constant 0 : i32
    return %arg0, %c0_i32 : i32, i32
  }
  func.func @transform_2(%arg0: i32) -> (i32, i32) {
    %c0_i32 = arith.constant 0 : i32
    %c0_i32_0 = arith.constant 0 : i32
    return %arg0, %c0_i32 : i32, i32
  }
  func.func @transform_3(%arg0: i32) -> (i32, i32) {
    %c0_i32 = arith.constant 0 : i32
    %c0_i32_0 = arith.constant 0 : i32
    %c0_i32_1 = arith.constant 0 : i32
    return %c0_i32, %c0_i32_0 : i32, i32
  }
  func.func @transform_4(%arg0: i32) -> (i32, i32) {
    %c0_i32 = arith.constant 0 : i32
    %c0_i32_0 = arith.constant 0 : i32
    %c0_i32_1 = arith.constant 0 : i32
    return %c0_i32, %c0_i32_0 : i32, i32
  }
  func.func @transform_5(%arg0: i32) -> (i32, i32) {
    %c0_i32 = arith.constant 0 : i32
    %c0_i32_0 = arith.constant 0 : i32
    %c0_i32_1 = arith.constant 0 : i32
    return %c0_i32, %c0_i32_0 : i32, i32
  }
  func.func @transform_6(%arg0: i32) -> (i32, i32) {
    %c0_i32 = arith.constant 0 : i32
    %c0_i32_0 = arith.constant 0 : i32
    %c0_i32_1 = arith.constant 0 : i32
    return %c0_i32, %c0_i32_0 : i32, i32
  }
  func.func @transform_7(%arg0: i32) -> (i32, i32) {
    %c0_i32 = arith.constant 0 : i32
    %c0_i32_0 = arith.constant 0 : i32
    %c0_i32_1 = arith.constant 0 : i32
    return %c0_i32, %c0_i32_0 : i32, i32
  }
  func.func @transform_8(%arg0: i32) -> (i32, i32) {
    %c0_i32 = arith.constant 0 : i32
    %c0_i32_0 = arith.constant 0 : i32
    %c0_i32_1 = arith.constant 0 : i32
    return %c0_i32, %c0_i32_0 : i32, i32
  }
  func.func @transform_9(%arg0: i32) -> (i32, i32) {
    %c0_i32 = arith.constant 0 : i32
    %c0_i32_0 = arith.constant 0 : i32
    %c0_i32_1 = arith.constant 0 : i32
    return %c0_i32, %c0_i32_0 : i32, i32
  }
  func.func @transform_10(%arg0: i32) -> (i32, i32) {
    %c0_i32 = arith.constant 0 : i32
    %c0_i32_0 = arith.constant 0 : i32
    %c0_i32_1 = arith.constant 0 : i32
    return %c0_i32, %c0_i32_0 : i32, i32
  }
  func.func @transform_11(%arg0: i32) -> (i32, i32) {
    %c0_i32 = arith.constant 0 : i32
    %c0_i32_0 = arith.constant 0 : i32
    return %arg0, %c0_i32 : i32, i32
  }
}

module attributes {stable_mosaic.version = 11 : i64} {
  func.func @kernel(%arg0: i32, %arg1: memref<112x32xbf16, #tpu.memory_space<vmem>>, %arg2: memref<112x2xbf16, #tpu.memory_space<vmem>>, %arg3: memref<112x16xbf16, #tpu.memory_space<vmem>>, %arg4: memref<32x128xbf16, #tpu.memory_space<vmem>>, %arg5: memref<2x128xf32, #tpu.memory_space<vmem>>, %arg6: memref<1x128xf32, #tpu.memory_space<vmem>>, %arg7: memref<16x128xbf16, #tpu.memory_space<vmem>>, %arg8: memref<128x128xbf16, #tpu.memory_space<vmem>>, %arg9: memref<1x128xf32, #tpu.memory_space<vmem>>, %arg10: memref<128x4xbf16, #tpu.memory_space<vmem>>, %arg11: memref<1x4xf32, #tpu.memory_space<vmem>>, %arg12: memref<112x4xf32, #tpu.memory_space<vmem>>) attributes {dimension_semantics = [#tpu.dimension_semantics<parallel>], iteration_bounds = array<i64: 2>, scalar_prefetch = 0 : i64, scratch_operands = 0 : i64, tpu.core_type = #tpu.core_type<tc>, window_params = [{transform_indices = @transform_0, window_bounds = array<i64: 112, 32>}, {transform_indices = @transform_1, window_bounds = array<i64: 112, 2>}, {transform_indices = @transform_2, window_bounds = array<i64: 112, 16>}, {pipeline_mode = #tpu.pipeline_mode<synchronous>, transform_indices = @transform_3, window_bounds = array<i64: 32, 128>}, {pipeline_mode = #tpu.pipeline_mode<synchronous>, transform_indices = @transform_4, window_bounds = array<i64: 2, 128>}, {pipeline_mode = #tpu.pipeline_mode<synchronous>, transform_indices = @transform_5, window_bounds = array<i64: 1, 128>}, {pipeline_mode = #tpu.pipeline_mode<synchronous>, transform_indices = @transform_6, window_bounds = array<i64: 16, 128>}, {pipeline_mode = #tpu.pipeline_mode<synchronous>, transform_indices = @transform_7, window_bounds = array<i64: 128, 128>}, {pipeline_mode = #tpu.pipeline_mode<synchronous>, transform_indices = @transform_8, window_bounds = array<i64: 1, 128>}, {pipeline_mode = #tpu.pipeline_mode<synchronous>, transform_indices = @transform_9, window_bounds = array<i64: 128, 4>}, {pipeline_mode = #tpu.pipeline_mode<synchronous>, transform_indices = @transform_10, window_bounds = array<i64: 1, 4>}, {transform_indices = @transform_11, window_bounds = array<i64: 112, 4>}]} {
    %c0 = arith.constant 0 : index
    %c0_0 = arith.constant 0 : index
    %0 = vector.load %arg1[%c0, %c0_0] : memref<112x32xbf16, #tpu.memory_space<vmem>>, vector<112x32xbf16>
    %c0_1 = arith.constant 0 : index
    %c0_2 = arith.constant 0 : index
    %1 = vector.load %arg2[%c0_1, %c0_2] : memref<112x2xbf16, #tpu.memory_space<vmem>>, vector<112x2xbf16>
    %c0_3 = arith.constant 0 : index
    %c0_4 = arith.constant 0 : index
    %2 = vector.load %arg3[%c0_3, %c0_4] : memref<112x16xbf16, #tpu.memory_space<vmem>>, vector<112x16xbf16>
    %c0_5 = arith.constant 0 : index
    %c0_6 = arith.constant 0 : index
    %3 = vector.load %arg4[%c0_5, %c0_6] : memref<32x128xbf16, #tpu.memory_space<vmem>>, vector<32x128xbf16>
    %c0_7 = arith.constant 0 : index
    %c0_8 = arith.constant 0 : index
    %4 = vector.load %arg5[%c0_7, %c0_8] : memref<2x128xf32, #tpu.memory_space<vmem>>, vector<2x128xf32>
    %c0_9 = arith.constant 0 : index
    %c0_10 = arith.constant 0 : index
    %5 = vector.load %arg6[%c0_9, %c0_10] : memref<1x128xf32, #tpu.memory_space<vmem>>, vector<1x128xf32>
    %cst = arith.constant dense<0.000000e+00> : vector<112x128xf32>
    %6 = tpu.matmul %0, %3, %cst {dimension_numbers = #tpu.dot_dimension_numbers<[1], [0], [0], [1], [0, 0, 1, 1], [], []>} : vector<112x32xbf16>, vector<32x128xbf16>, vector<112x128xf32> -> vector<112x128xf32>
    %7 = vector.broadcast %5 : vector<1x128xf32> to vector<112x128xf32>
    %8 = arith.addf %6, %7 : vector<112x128xf32>
    %9 = arith.extf %1 : vector<112x2xbf16> to vector<112x2xf32>
    %10 = vector.extract_strided_slice %9 {offsets = [0, 0], sizes = [112, 1], strides = [1, 1]} : vector<112x2xf32> to vector<112x1xf32>
    %11 = vector.extract_strided_slice %4 {offsets = [0, 0], sizes = [1, 128], strides = [1, 1]} : vector<2x128xf32> to vector<1x128xf32>
    %12 = vector.broadcast %10 : vector<112x1xf32> to vector<112x128xf32>
    %13 = vector.broadcast %11 : vector<1x128xf32> to vector<112x128xf32>
    %14 = arith.mulf %12, %13 : vector<112x128xf32>
    %15 = arith.addf %8, %14 : vector<112x128xf32>
    %16 = vector.extract_strided_slice %9 {offsets = [0, 1], sizes = [112, 1], strides = [1, 1]} : vector<112x2xf32> to vector<112x1xf32>
    %17 = vector.extract_strided_slice %4 {offsets = [1, 0], sizes = [1, 128], strides = [1, 1]} : vector<2x128xf32> to vector<1x128xf32>
    %18 = vector.broadcast %16 : vector<112x1xf32> to vector<112x128xf32>
    %19 = vector.broadcast %17 : vector<1x128xf32> to vector<112x128xf32>
    %20 = arith.mulf %18, %19 : vector<112x128xf32>
    %21 = arith.addf %15, %20 : vector<112x128xf32>
    %c0_11 = arith.constant 0 : index
    %c0_12 = arith.constant 0 : index
    %22 = vector.load %arg7[%c0_11, %c0_12] : memref<16x128xbf16, #tpu.memory_space<vmem>>, vector<16x128xbf16>
    %cst_13 = arith.constant dense<0.000000e+00> : vector<112x128xf32>
    %23 = tpu.matmul %2, %22, %cst_13 {dimension_numbers = #tpu.dot_dimension_numbers<[1], [0], [0], [1], [0, 0, 1, 1], [], []>} : vector<112x16xbf16>, vector<16x128xbf16>, vector<112x128xf32> -> vector<112x128xf32>
    %24 = arith.addf %21, %23 : vector<112x128xf32>
    %cst_14 = arith.constant 0.000000e+00 : f32
    %25 = vector.broadcast %cst_14 : f32 to vector<112x128xf32>
    %26 = arith.maximumf %24, %25 : vector<112x128xf32>
    %c0_15 = arith.constant 0 : index
    %c0_16 = arith.constant 0 : index
    %27 = vector.load %arg8[%c0_15, %c0_16] : memref<128x128xbf16, #tpu.memory_space<vmem>>, vector<128x128xbf16>
    %c0_17 = arith.constant 0 : index
    %c0_18 = arith.constant 0 : index
    %28 = vector.load %arg9[%c0_17, %c0_18] : memref<1x128xf32, #tpu.memory_space<vmem>>, vector<1x128xf32>
    %29 = arith.truncf %26 : vector<112x128xf32> to vector<112x128xbf16>
    %cst_19 = arith.constant dense<0.000000e+00> : vector<112x128xf32>
    %30 = tpu.matmul %29, %27, %cst_19 {dimension_numbers = #tpu.dot_dimension_numbers<[1], [0], [0], [1], [0, 0, 1, 1], [], []>} : vector<112x128xbf16>, vector<128x128xbf16>, vector<112x128xf32> -> vector<112x128xf32>
    %31 = vector.broadcast %28 : vector<1x128xf32> to vector<112x128xf32>
    %32 = arith.addf %30, %31 : vector<112x128xf32>
    %cst_20 = arith.constant 0.000000e+00 : f32
    %33 = vector.broadcast %cst_20 : f32 to vector<112x128xf32>
    %34 = arith.maximumf %32, %33 : vector<112x128xf32>
    %c0_21 = arith.constant 0 : index
    %c0_22 = arith.constant 0 : index
    %35 = vector.load %arg10[%c0_21, %c0_22] : memref<128x4xbf16, #tpu.memory_space<vmem>>, vector<128x4xbf16>
    %c0_23 = arith.constant 0 : index
    %c0_24 = arith.constant 0 : index
    %36 = vector.load %arg11[%c0_23, %c0_24] : memref<1x4xf32, #tpu.memory_space<vmem>>, vector<1x4xf32>
    %37 = arith.truncf %34 : vector<112x128xf32> to vector<112x128xbf16>
    %cst_25 = arith.constant dense<0.000000e+00> : vector<112x4xf32>
    %38 = tpu.matmul %37, %35, %cst_25 {dimension_numbers = #tpu.dot_dimension_numbers<[1], [0], [0], [1], [0, 0, 1, 1], [], []>} : vector<112x128xbf16>, vector<128x4xbf16>, vector<112x4xf32> -> vector<112x4xf32>
    %39 = vector.broadcast %36 : vector<1x4xf32> to vector<112x4xf32>
    %40 = arith.addf %38, %39 : vector<112x4xf32>
    %41 = tpu.iota {dimensions = array<i32: 1>} : vector<112x4xi32>
    %cst_26 = arith.constant 0.000000e+00 : f32
    %42 = vector.broadcast %cst_26 : f32 to vector<112x4xf32>
    %43 = arith.maximumf %40, %42 : vector<112x4xf32>
    %44 = vector.broadcast %cst_26 : f32 to vector<112x4xf32>
    %45 = arith.subf %40, %44 : vector<112x4xf32>
    %46 = arith.cmpf one, %45, %45 : vector<112x4xf32>
    %47 = vector.broadcast %cst_26 : f32 to vector<112x4xf32>
    %48 = arith.addf %40, %47 : vector<112x4xf32>
    %49 = math.absf %45 : vector<112x4xf32>
    %cst_27 = arith.constant 0.000000e+00 : f32
    %50 = vector.broadcast %cst_27 : f32 to vector<112x4xf32>
    %51 = arith.subf %50, %49 : vector<112x4xf32>
    %52 = math.exp %51 : vector<112x4xf32>
    %53 = math.log1p %52 : vector<112x4xf32>
    %54 = arith.addf %43, %53 : vector<112x4xf32>
    %55 = arith.select %46, %48, %54 : vector<112x4xi1>, vector<112x4xf32>
    %cst_28 = arith.constant 0.899999976 : f32
    %56 = vector.broadcast %cst_28 : f32 to vector<112x4xf32>
    %57 = arith.mulf %56, %55 : vector<112x4xf32>
    %cst_29 = arith.constant 1.000000e-01 : f32
    %58 = vector.broadcast %cst_29 : f32 to vector<112x4xf32>
    %59 = arith.addf %58, %57 : vector<112x4xf32>
    %c2_i32 = arith.constant 2 : i32
    %60 = vector.broadcast %c2_i32 : i32 to vector<112x4xi32>
    %61 = arith.cmpi slt, %41, %60 : vector<112x4xi32>
    %62 = arith.select %61, %40, %59 : vector<112x4xi1>, vector<112x4xf32>
    %c0_30 = arith.constant 0 : index
    %c0_31 = arith.constant 0 : index
    %63 = vector.load %arg12[%c0_30, %c0_31] : memref<112x4xf32, #tpu.memory_space<vmem>>, vector<112x4xf32>
    tpu.vector_store %arg12[%c0_30, %c0_31], %62 {strides = array<i32>} : memref<112x4xf32, #tpu.memory_space<vmem>>, vector<112x4xf32>,
    return
  }
  func.func @transform_0(%arg0: i32) -> (i32, i32) {
    %c0_i32 = arith.constant 0 : i32
    %c0_i32_0 = arith.constant 0 : i32
    return %arg0, %c0_i32 : i32, i32
  }
  func.func @transform_1(%arg0: i32) -> (i32, i32) {
    %c0_i32 = arith.constant 0 : i32
    %c0_i32_0 = arith.constant 0 : i32
    return %arg0, %c0_i32 : i32, i32
  }
  func.func @transform_2(%arg0: i32) -> (i32, i32) {
    %c0_i32 = arith.constant 0 : i32
    %c0_i32_0 = arith.constant 0 : i32
    return %arg0, %c0_i32 : i32, i32
  }
  func.func @transform_3(%arg0: i32) -> (i32, i32) {
    %c0_i32 = arith.constant 0 : i32
    %c0_i32_0 = arith.constant 0 : i32
    %c0_i32_1 = arith.constant 0 : i32
    return %c0_i32, %c0_i32_0 : i32, i32
  }
  func.func @transform_4(%arg0: i32) -> (i32, i32) {
    %c0_i32 = arith.constant 0 : i32
    %c0_i32_0 = arith.constant 0 : i32
    %c0_i32_1 = arith.constant 0 : i32
    return %c0_i32, %c0_i32_0 : i32, i32
  }
  func.func @transform_5(%arg0: i32) -> (i32, i32) {
    %c0_i32 = arith.constant 0 : i32
    %c0_i32_0 = arith.constant 0 : i32
    %c0_i32_1 = arith.constant 0 : i32
    return %c0_i32, %c0_i32_0 : i32, i32
  }
  func.func @transform_6(%arg0: i32) -> (i32, i32) {
    %c0_i32 = arith.constant 0 : i32
    %c0_i32_0 = arith.constant 0 : i32
    %c0_i32_1 = arith.constant 0 : i32
    return %c0_i32, %c0_i32_0 : i32, i32
  }
  func.func @transform_7(%arg0: i32) -> (i32, i32) {
    %c0_i32 = arith.constant 0 : i32
    %c0_i32_0 = arith.constant 0 : i32
    %c0_i32_1 = arith.constant 0 : i32
    return %c0_i32, %c0_i32_0 : i32, i32
  }
  func.func @transform_8(%arg0: i32) -> (i32, i32) {
    %c0_i32 = arith.constant 0 : i32
    %c0_i32_0 = arith.constant 0 : i32
    %c0_i32_1 = arith.constant 0 : i32
    return %c0_i32, %c0_i32_0 : i32, i32
  }
  func.func @transform_9(%arg0: i32) -> (i32, i32) {
    %c0_i32 = arith.constant 0 : i32
    %c0_i32_0 = arith.constant 0 : i32
    %c0_i32_1 = arith.constant 0 : i32
    return %c0_i32, %c0_i32_0 : i32, i32
  }
  func.func @transform_10(%arg0: i32) -> (i32, i32) {
    %c0_i32 = arith.constant 0 : i32
    %c0_i32_0 = arith.constant 0 : i32
    %c0_i32_1 = arith.constant 0 : i32
    return %c0_i32, %c0_i32_0 : i32, i32
  }
  func.func @transform_11(%arg0: i32) -> (i32, i32) {
    %c0_i32 = arith.constant 0 : i32
    %c0_i32_0 = arith.constant 0 : i32
    return %arg0, %c0_i32 : i32, i32
  }
}

</mosaic_0001>

<llo_original>
// kernel: tpu_custom_call.1
$region0: #{tpu_custom_call.1}
  #allocation0 [shape = 'u32[]', space=smem, size = 0x4, offset = 0x4, fixed_abs, tag = 'smem constant byte address 0x4 - core index']
  #allocation1 [shape = 'u32[144,128]{1,0:T(1,128)}', space=vmem, size = 0x12000, scoped, tag = 'internal scratch']
  %s0 = inlined_call_operand.vmem [shape: bf16[224,32], index: 0, kind: input, shape index: {}]
  %s1 = inlined_call_operand.vmem [shape: bf16[224,2], index: 1, kind: input, shape index: {}]
  %s2 = inlined_call_operand.vmem [shape: bf16[224,16], index: 2, kind: input, shape index: {}]
  %s3 = inlined_call_operand.vmem [shape: bf16[32,128], index: 3, kind: input, shape index: {}]
  %s4 = inlined_call_operand.vmem [shape: f32[2,128], index: 4, kind: input, shape index: {}]
  %s5 = inlined_call_operand.vmem [shape: f32[1,128], index: 5, kind: input, shape index: {}]
  %s6 = inlined_call_operand.vmem [shape: bf16[16,128], index: 6, kind: input, shape index: {}]
  %s7 = inlined_call_operand.vmem [shape: bf16[128,128], index: 7, kind: input, shape index: {}]
  %s8 = inlined_call_operand.vmem [shape: f32[1,128], index: 8, kind: input, shape index: {}]
  %s9 = inlined_call_operand.vmem [shape: bf16[128,4], index: 9, kind: input, shape index: {}]
  %s10 = inlined_call_operand.vmem [shape: f32[1,4], index: 10, kind: input, shape index: {}]
  %s11 = inlined_call_operand.vmem [shape: f32[224,4], index: 11, kind: output, shape index: {}]
  %s12 = sld [smem:[#allocation0]]
  $region77: #{tpu_custom_call.1} parent=0
    _
  %s14 = ssub.s32 1, %s12
  %s15 = scalar_select 0, %s14, %s12
  loop: start=0, step=1, limit=4
  $region2: #{tpu_custom_call.1} parent=0 // loop_pre_header
    _
  $region3: #{tpu_custom_call.1} parent=0 // loop_header
    %s17 = sphi 0, %s21
    %p18 = scmp.ge.s32.totalorder %s17, 4
    %s27 = sphi 0, %s29
    %s30 = sphi 0, %s27
    %s31 = sphi 0, %s30
    %s47 = sphi 0, %s31
    %s53 = sphi 0, %s55
    %s56 = sphi 0, %s53
    %s57 = sphi 0, %s56
    %s73 = sphi 0, %s57
    %s79 = sphi 0, %s81
    %s82 = sphi 0, %s79
    %s83 = sphi 0, %s82
    %s99 = sphi 0, %s83
    %s103 = sphi 0, %s103
    %s105 = sphi 0, %s103
    %s106 = sphi 0, %s105
    %s120 = sphi 0, %s106
    %s124 = sphi 0, %s124
    %s126 = sphi 0, %s124
    %s127 = sphi 0, %s126
    %s141 = sphi 0, %s127
    %s145 = sphi 0, %s145
    %s147 = sphi 0, %s145
    %s148 = sphi 0, %s147
    %s162 = sphi 0, %s148
    %s166 = sphi 0, %s166
    %s168 = sphi 0, %s166
    %s169 = sphi 0, %s168
    %s183 = sphi 0, %s169
    %s187 = sphi 0, %s187
    %s189 = sphi 0, %s187
    %s190 = sphi 0, %s189
    %s204 = sphi 0, %s190
    %s208 = sphi 0, %s208
    %s210 = sphi 0, %s208
    %s211 = sphi 0, %s210
    %s225 = sphi 0, %s211
    %s229 = sphi 0, %s229
    %s231 = sphi 0, %s229
    %s232 = sphi 0, %s231
    %s246 = sphi 0, %s232
    %s250 = sphi 0, %s250
    %s252 = sphi 0, %s250
    %s253 = sphi 0, %s252
    %s267 = sphi 0, %s253
    %s273 = sphi 0, %s275
    %s276 = sphi 0, %s273
    %s277 = sphi 0, %s276
    %s293 = sphi 0, %s277
  $region4: #{tpu_custom_call.1} parent=0 // loop_header_branch
    %20 = sbr.rel (%p18) target = $region8
  $region5: #{tpu_custom_call.1} parent=0 // loop_body
    %s22 = ssub.s32 %s17, 1
    %s23 = ssub.s32 %s17, 2
    %s24 = sadd.s32 %s17, 1
    %s25 = ssub.s32 %s17, %s24
    %p26 = scmp.eq.s32.totalorder %s25, 0
    %s28 = sadd.s32 %s27, 1
    %s29 = scalar_select %p26, %s27, %s28
    %p32 = pneg %p26
    %p33 = scmp.eq.s32.totalorder %s17, 1
    %p34 = por %p32, %p33
    %p35 = scmp.ne.s32.totalorder %s27, %s30
    %p36 = scmp.eq.s32.totalorder %s17, 0
    %p37 = por %p35, %p36
    %p38 = scmp.ne.s32.totalorder %s27, %s30
    %p39 = scmp.eq.s32.totalorder %s22, 1
    %p40 = por %p38, %p39
    %p41 = scmp.ne.s32.totalorder %s30, %s31
    %p42 = scmp.eq.s32.totalorder %s22, 0
    %p43 = por %p41, %p42
    %p44 = scmp.ne.s32.totalorder %s30, %s31
    %p45 = scmp.eq.s32.totalorder %s23, 1
    %p46 = por %p44, %p45
    %p48 = scmp.ne.s32.totalorder %s31, %s47
    %p49 = scmp.eq.s32.totalorder %s23, 0
    %p50 = por %p48, %p49
    %s51 = ssub.s32 %s17, %s24
    %p52 = scmp.eq.s32.totalorder %s51, 0
    %s54 = sadd.s32 %s53, 1
    %s55 = scalar_select %p52, %s53, %s54
    %p58 = pneg %p52
    %p59 = scmp.eq.s32.totalorder %s17, 1
    %p60 = por %p58, %p59
    %p61 = scmp.ne.s32.totalorder %s53, %s56
    %p62 = scmp.eq.s32.totalorder %s17, 0
    %p63 = por %p61, %p62
    %p64 = scmp.ne.s32.totalorder %s53, %s56
    %p65 = scmp.eq.s32.totalorder %s22, 1
    %p66 = por %p64, %p65
    %p67 = scmp.ne.s32.totalorder %s56, %s57
    %p68 = scmp.eq.s32.totalorder %s22, 0
    %p69 = por %p67, %p68
    %p70 = scmp.ne.s32.totalorder %s56, %s57
    %p71 = scmp.eq.s32.totalorder %s23, 1
    %p72 = por %p70, %p71
    %p74 = scmp.ne.s32.totalorder %s57, %s73
    %p75 = scmp.eq.s32.totalorder %s23, 0
    %p76 = por %p74, %p75
    %s77 = ssub.s32 %s17, %s24
    %p78 = scmp.eq.s32.totalorder %s77, 0
    %s80 = sadd.s32 %s79, 1
    %s81 = scalar_select %p78, %s79, %s80
    %p84 = pneg %p78
    %p85 = scmp.eq.s32.totalorder %s17, 1
    %p86 = por %p84, %p85
    %p87 = scmp.ne.s32.totalorder %s79, %s82
    %p88 = scmp.eq.s32.totalorder %s17, 0
    %p89 = por %p87, %p88
    %p90 = scmp.ne.s32.totalorder %s79, %s82
    %p91 = scmp.eq.s32.totalorder %s22, 1
    %p92 = por %p90, %p91
    %p93 = scmp.ne.s32.totalorder %s82, %s83
    %p94 = scmp.eq.s32.totalorder %s22, 0
    %p95 = por %p93, %p94
    %p96 = scmp.ne.s32.totalorder %s82, %s83
    %p97 = scmp.eq.s32.totalorder %s23, 1
    %p98 = por %p96, %p97
    %p100 = scmp.ne.s32.totalorder %s83, %s99
    %p101 = scmp.eq.s32.totalorder %s23, 0
    %p102 = por %p100, %p101
    %s104 = sadd.s32 %s103, 1
    %p107 = scmp.eq.s32.totalorder %s17, 1
    %p108 = scmp.ne.s32.totalorder %s103, %s105
    %p109 = scmp.eq.s32.totalorder %s17, 0
    %p110 = por %p108, %p109
    %p111 = scmp.ne.s32.totalorder %s103, %s105
    %p112 = scmp.eq.s32.totalorder %s22, 1
    %p113 = por %p111, %p112
    %p114 = scmp.ne.s32.totalorder %s105, %s106
    %p115 = scmp.eq.s32.totalorder %s22, 0
    %p116 = por %p114, %p115
    %p117 = scmp.ne.s32.totalorder %s105, %s106
    %p118 = scmp.eq.s32.totalorder %s23, 1
    %p119 = por %p117, %p118
    %p121 = scmp.ne.s32.totalorder %s106, %s120
    %p122 = scmp.eq.s32.totalorder %s23, 0
    %p123 = por %p121, %p122
    %s125 = sadd.s32 %s124, 1
    %p128 = scmp.eq.s32.totalorder %s17, 1
    %p129 = scmp.ne.s32.totalorder %s124, %s126
    %p130 = scmp.eq.s32.totalorder %s17, 0
    %p131 = por %p129, %p130
    %p132 = scmp.ne.s32.totalorder %s124, %s126
    %p133 = scmp.eq.s32.totalorder %s22, 1
    %p134 = por %p132, %p133
    %p135 = scmp.ne.s32.totalorder %s126, %s127
    %p136 = scmp.eq.s32.totalorder %s22, 0
    %p137 = por %p135, %p136
    %p138 = scmp.ne.s32.totalorder %s126, %s127
    %p139 = scmp.eq.s32.totalorder %s23, 1
    %p140 = por %p138, %p139
    %p142 = scmp.ne.s32.totalorder %s127, %s141
    %p143 = scmp.eq.s32.totalorder %s23, 0
    %p144 = por %p142, %p143
    %s146 = sadd.s32 %s145, 1
    %p149 = scmp.eq.s32.totalorder %s17, 1
    %p150 = scmp.ne.s32.totalorder %s145, %s147
    %p151 = scmp.eq.s32.totalorder %s17, 0
    %p152 = por %p150, %p151
    %p153 = scmp.ne.s32.totalorder %s145, %s147
    %p154 = scmp.eq.s32.totalorder %s22, 1
    %p155 = por %p153, %p154
    %p156 = scmp.ne.s32.totalorder %s147, %s148
    %p157 = scmp.eq.s32.totalorder %s22, 0
    %p158 = por %p156, %p157
    %p159 = scmp.ne.s32.totalorder %s147, %s148
    %p160 = scmp.eq.s32.totalorder %s23, 1
    %p161 = por %p159, %p160
    %p163 = scmp.ne.s32.totalorder %s148, %s162
    %p164 = scmp.eq.s32.totalorder %s23, 0
    %p165 = por %p163, %p164
    %s167 = sadd.s32 %s166, 1
    %p170 = scmp.eq.s32.totalorder %s17, 1
    %p171 = scmp.ne.s32.totalorder %s166, %s168
    %p172 = scmp.eq.s32.totalorder %s17, 0
    %p173 = por %p171, %p172
    %p174 = scmp.ne.s32.totalorder %s166, %s168
    %p175 = scmp.eq.s32.totalorder %s22, 1
    %p176 = por %p174, %p175
    %p177 = scmp.ne.s32.totalorder %s168, %s169
    %p178 = scmp.eq.s32.totalorder %s22, 0
    %p179 = por %p177, %p178
    %p180 = scmp.ne.s32.totalorder %s168, %s169
    %p181 = scmp.eq.s32.totalorder %s23, 1
    %p182 = por %p180, %p181
    %p184 = scmp.ne.s32.totalorder %s169, %s183
    %p185 = scmp.eq.s32.totalorder %s23, 0
    %p186 = por %p184, %p185
    %s188 = sadd.s32 %s187, 1
    %p191 = scmp.eq.s32.totalorder %s17, 1
    %p192 = scmp.ne.s32.totalorder %s187, %s189
    %p193 = scmp.eq.s32.totalorder %s17, 0
    %p194 = por %p192, %p193
    %p195 = scmp.ne.s32.totalorder %s187, %s189
    %p196 = scmp.eq.s32.totalorder %s22, 1
    %p197 = por %p195, %p196
    %p198 = scmp.ne.s32.totalorder %s189, %s190
    %p199 = scmp.eq.s32.totalorder %s22, 0
    %p200 = por %p198, %p199
    %p201 = scmp.ne.s32.totalorder %s189, %s190
    %p202 = scmp.eq.s32.totalorder %s23, 1
    %p203 = por %p201, %p202
    %p205 = scmp.ne.s32.totalorder %s190, %s204
    %p206 = scmp.eq.s32.totalorder %s23, 0
    %p207 = por %p205, %p206
    %s209 = sadd.s32 %s208, 1
    %p212 = scmp.eq.s32.totalorder %s17, 1
    %p213 = scmp.ne.s32.totalorder %s208, %s210
    %p214 = scmp.eq.s32.totalorder %s17, 0
    %p215 = por %p213, %p214
    %p216 = scmp.ne.s32.totalorder %s208, %s210
    %p217 = scmp.eq.s32.totalorder %s22, 1
    %p218 = por %p216, %p217
    %p219 = scmp.ne.s32.totalorder %s210, %s211
    %p220 = scmp.eq.s32.totalorder %s22, 0
    %p221 = por %p219, %p220
    %p222 = scmp.ne.s32.totalorder %s210, %s211
    %p223 = scmp.eq.s32.totalorder %s23, 1
    %p224 = por %p222, %p223
    %p226 = scmp.ne.s32.totalorder %s211, %s225
    %p227 = scmp.eq.s32.totalorder %s23, 0
    %p228 = por %p226, %p227
    %s230 = sadd.s32 %s229, 1
    %p233 = scmp.eq.s32.totalorder %s17, 1
    %p234 = scmp.ne.s32.totalorder %s229, %s231
    %p235 = scmp.eq.s32.totalorder %s17, 0
    %p236 = por %p234, %p235
    %p237 = scmp.ne.s32.totalorder %s229, %s231
    %p238 = scmp.eq.s32.totalorder %s22, 1
    %p239 = por %p237, %p238
    %p240 = scmp.ne.s32.totalorder %s231, %s232
    %p241 = scmp.eq.s32.totalorder %s22, 0
    %p242 = por %p240, %p241
    %p243 = scmp.ne.s32.totalorder %s231, %s232
    %p244 = scmp.eq.s32.totalorder %s23, 1
    %p245 = por %p243, %p244
    %p247 = scmp.ne.s32.totalorder %s232, %s246
    %p248 = scmp.eq.s32.totalorder %s23, 0
    %p249 = por %p247, %p248
    %s251 = sadd.s32 %s250, 1
    %p254 = scmp.eq.s32.totalorder %s17, 1
    %p255 = scmp.ne.s32.totalorder %s250, %s252
    %p256 = scmp.eq.s32.totalorder %s17, 0
    %p257 = por %p255, %p256
    %p258 = scmp.ne.s32.totalorder %s250, %s252
    %p259 = scmp.eq.s32.totalorder %s22, 1
    %p260 = por %p258, %p259
    %p261 = scmp.ne.s32.totalorder %s252, %s253
    %p262 = scmp.eq.s32.totalorder %s22, 0
    %p263 = por %p261, %p262
    %p264 = scmp.ne.s32.totalorder %s252, %s253
    %p265 = scmp.eq.s32.totalorder %s23, 1
    %p266 = por %p264, %p265
    %p268 = scmp.ne.s32.totalorder %s253, %s267
    %p269 = scmp.eq.s32.totalorder %s23, 0
    %p270 = por %p268, %p269
    %s271 = ssub.s32 %s17, %s24
    %p272 = scmp.eq.s32.totalorder %s271, 0
    %s274 = sadd.s32 %s273, 1
    %s275 = scalar_select %p272, %s273, %s274
    %p278 = pneg %p272
    %p279 = scmp.eq.s32.totalorder %s17, 1
    %p280 = por %p278, %p279
    %p281 = scmp.ne.s32.totalorder %s273, %s276
    %p282 = scmp.eq.s32.totalorder %s17, 0
    %p283 = por %p281, %p282
    %p284 = scmp.ne.s32.totalorder %s273, %s276
    %p285 = scmp.eq.s32.totalorder %s22, 1
    %p286 = por %p284, %p285
    %p287 = scmp.ne.s32.totalorder %s276, %s277
    %p288 = scmp.eq.s32.totalorder %s22, 0
    %p289 = por %p287, %p288
    %p290 = scmp.ne.s32.totalorder %s276, %s277
    %p291 = scmp.eq.s32.totalorder %s23, 1
    %p292 = por %p290, %p291
    %p294 = scmp.ne.s32.totalorder %s277, %s293
    %p295 = scmp.eq.s32.totalorder %s23, 0
    %p296 = por %p294, %p295
    %p297 = scmp.le.s32.totalorder 1, %s17
    %p298 = scmp.lt.s32.totalorder %s17, 3
    %p299 = pnand %p297, %p298
    %p300 = pneg %p299
    // Predicated region
    $region9: #{tpu_custom_call.1} parent=5 // pred_check
      _
    $region10: #{tpu_custom_call.1} parent=5 // pred_check_branch
      %302 = sbr.rel (%p299) target = $region12
    $region11: #{tpu_custom_call.1} parent=5 // pred_region
      %s303 = ssub.s32 %s17, 1
      // Predicated region
      $region13: #{tpu_custom_call.1} parent=11 // pred_check
        %p304 = pneg %p116
      $region14: #{tpu_custom_call.1} parent=11 // pred_check_branch
        %306 = sbr.rel (%p304) target = $region16
      $region15: #{tpu_custom_call.1} parent=11 // pred_region
        _
      $region16: #{tpu_custom_call.1} parent=11 // pred_fallthru
        _
      // Predicated region
      $region17: #{tpu_custom_call.1} parent=11 // pred_check
        %p307 = pneg %p137
      $region18: #{tpu_custom_call.1} parent=11 // pred_check_branch
        %309 = sbr.rel (%p307) target = $region20
      $region19: #{tpu_custom_call.1} parent=11 // pred_region
        _
      $region20: #{tpu_custom_call.1} parent=11 // pred_fallthru
        _
      // Predicated region
      $region21: #{tpu_custom_call.1} parent=11 // pred_check
        %p310 = pneg %p158
      $region22: #{tpu_custom_call.1} parent=11 // pred_check_branch
        %312 = sbr.rel (%p310) target = $region24
      $region23: #{tpu_custom_call.1} parent=11 // pred_region
        _
      $region24: #{tpu_custom_call.1} parent=11 // pred_fallthru
        _
      // Predicated region
      $region25: #{tpu_custom_call.1} parent=11 // pred_check
        %p313 = pneg %p179
      $region26: #{tpu_custom_call.1} parent=11 // pred_check_branch
        %315 = sbr.rel (%p313) target = $region28
      $region27: #{tpu_custom_call.1} parent=11 // pred_region
        _
      $region28: #{tpu_custom_call.1} parent=11 // pred_fallthru
        _
      // Predicated region
      $region29: #{tpu_custom_call.1} parent=11 // pred_check
        %p316 = pneg %p200
      $region30: #{tpu_custom_call.1} parent=11 // pred_check_branch
        %318 = sbr.rel (%p316) target = $region32
      $region31: #{tpu_custom_call.1} parent=11 // pred_region
        _
      $region32: #{tpu_custom_call.1} parent=11 // pred_fallthru
        _
      // Predicated region
      $region33: #{tpu_custom_call.1} parent=11 // pred_check
        %p319 = pneg %p221
      $region34: #{tpu_custom_call.1} parent=11 // pred_check_branch
        %321 = sbr.rel (%p319) target = $region36
      $region35: #{tpu_custom_call.1} parent=11 // pred_region
        _
      $region36: #{tpu_custom_call.1} parent=11 // pred_fallthru
        _
      // Predicated region
      $region37: #{tpu_custom_call.1} parent=11 // pred_check
        %p322 = pneg %p242
      $region38: #{tpu_custom_call.1} parent=11 // pred_check_branch
        %324 = sbr.rel (%p322) target = $region40
      $region39: #{tpu_custom_call.1} parent=11 // pred_region
        _
      $region40: #{tpu_custom_call.1} parent=11 // pred_fallthru
        _
      // Predicated region
      $region41: #{tpu_custom_call.1} parent=11 // pred_check
        %p325 = pneg %p263
      $region42: #{tpu_custom_call.1} parent=11 // pred_check_branch
        %327 = sbr.rel (%p325) target = $region44
      $region43: #{tpu_custom_call.1} parent=11 // pred_region
        _
      $region44: #{tpu_custom_call.1} parent=11 // pred_fallthru
        _
    $region12: #{tpu_custom_call.1} parent=5 // pred_fallthru
      _
    %p328 = scmp.lt.s32.totalorder %s17, 2
    // Predicated region
    $region45: #{tpu_custom_call.1} parent=5 // pred_check
      %p329 = pneg %p328
    $region46: #{tpu_custom_call.1} parent=5 // pred_check_branch
      %331 = sbr.rel (%p329) target = $region48
    $region47: #{tpu_custom_call.1} parent=5 // pred_region
      // Predicated region
      $region49: #{tpu_custom_call.1} parent=47 // pred_check
        %p332 = pneg %p37
      $region50: #{tpu_custom_call.1} parent=47 // pred_check_branch
        %334 = sbr.rel (%p332) target = $region52
      $region51: #{tpu_custom_call.1} parent=47 // pred_region
        %s335 = smul.u32 14, %s17
        %p336 = scmp.lt.s32.totalorder %s335, 27
        %s337 = scalar_select %p336, %s335, 27
        %s338 = smul.addr %s337, 4
        %s339 = scalar_lea.vmem %s0, %s338
        %s340 = smul.u32 14, %s17
      $region52: #{tpu_custom_call.1} parent=47 // pred_fallthru
        _
      // Predicated region
      $region53: #{tpu_custom_call.1} parent=47 // pred_check
        %p341 = pneg %p63
      $region54: #{tpu_custom_call.1} parent=47 // pred_check_branch
        %343 = sbr.rel (%p341) target = $region56
      $region55: #{tpu_custom_call.1} parent=47 // pred_region
        %s344 = smul.u32 14, %s17
        %p345 = scmp.lt.s32.totalorder %s344, 27
        %s346 = scalar_select %p345, %s344, 27
        %s347 = smul.addr %s346, 4
        %s348 = scalar_lea.vmem %s1, %s347
        %s349 = smul.u32 14, %s17
      $region56: #{tpu_custom_call.1} parent=47 // pred_fallthru
        _
      // Predicated region
      $region57: #{tpu_custom_call.1} parent=47 // pred_check
        %p350 = pneg %p89
      $region58: #{tpu_custom_call.1} parent=47 // pred_check_branch
        %352 = sbr.rel (%p350) target = $region60
      $region59: #{tpu_custom_call.1} parent=47 // pred_region
        %s353 = smul.u32 14, %s17
        %p354 = scmp.lt.s32.totalorder %s353, 27
        %s355 = scalar_select %p354, %s353, 27
        %s356 = smul.addr %s355, 4
        %s357 = scalar_lea.vmem %s2, %s356
        %s358 = smul.u32 14, %s17
      $region60: #{tpu_custom_call.1} parent=47 // pred_fallthru
        _
    $region48: #{tpu_custom_call.1} parent=5 // pred_fallthru
      _
    %p359 = scmp.le.s32.totalorder 1, %s17
    %p360 = scmp.lt.s32.totalorder %s17, 3
    %p361 = pnand %p359, %p360
    %p362 = pneg %p361
    // Predicated region
    $region61: #{tpu_custom_call.1} parent=5 // pred_check
      _
    $region62: #{tpu_custom_call.1} parent=5 // pred_check_branch
      %364 = sbr.rel (%p361) target = $region64
    $region63: #{tpu_custom_call.1} parent=5 // pred_region
      %s365 = ssub.s32 %s17, 1
      %s366 = smul.u32 14, %s22
      %p367 = scmp.lt.s32.totalorder %s366, 27
      %s368 = scalar_select %p367, %s366, 27
      %s369 = smul.addr %s368, 4
      %s370 = scalar_lea.vmem %s0, %s369
      %p371 = pneg %p43
      %p372 = pneg %p40
      %s373 = smul.u32 14, %s22
      %p374 = scmp.lt.s32.totalorder %s373, 27
      %s375 = scalar_select %p374, %s373, 27
      %s376 = smul.addr %s375, 4
      %s377 = scalar_lea.vmem %s1, %s376
      %p378 = pneg %p69
      %p379 = pneg %p66
      %s380 = smul.u32 14, %s22
      %p381 = scmp.lt.s32.totalorder %s380, 27
      %s382 = scalar_select %p381, %s380, 27
      %s383 = smul.addr %s382, 4
      %s384 = scalar_lea.vmem %s2, %s383
      %p385 = pneg %p95
      %p386 = pneg %p92
      %p387 = pneg %p116
      %p388 = pneg %p113
      %p389 = pneg %p137
      %p390 = pneg %p134
      %p391 = pneg %p158
      %p392 = pneg %p155
      %p393 = pneg %p179
      %p394 = pneg %p176
      %p395 = pneg %p200
      %p396 = pneg %p197
      %p397 = pneg %p221
      %p398 = pneg %p218
      %p399 = pneg %p242
      %p400 = pneg %p239
      %p401 = pneg %p263
      %p402 = pneg %p260
      %p403 = pneg %p289
      %p404 = pneg %p286
      %s405 = smul.u32 14, %s22
      %p406 = scmp.lt.s32.totalorder %s405, 27
      %s407 = scalar_select %p406, %s405, 27
      %s408 = smul.addr %s407, 8
      %s409 = scalar_lea.vmem %s11, %s408
      %s410 = smul.u32 14, %s22
      %p411 = scmp.lt.s32.totalorder %s410, 27
      %s412 = scalar_select %p411, %s410, 27
      %s413 = smul.addr %s412, 4
      %s414 = scalar_lea.vmem %s0, %s413
      %s415 = smul.u32 14, %s22
      %s416 = smul.u32 14, %s22
      %p417 = scmp.lt.s32.totalorder %s416, 27
      %s418 = scalar_select %p417, %s416, 27
      %s419 = smul.addr %s418, 4
      %s420 = scalar_lea.vmem %s1, %s419
      %s421 = smul.u32 14, %s22
      %s422 = smul.u32 14, %s22
      %p423 = scmp.lt.s32.totalorder %s422, 27
      %s424 = scalar_select %p423, %s422, 27
      %s425 = smul.addr %s424, 4
      %s426 = scalar_lea.vmem %s2, %s425
      %s427 = smul.u32 14, %s22
      %s428 = smul.u32 14, %s22
      %p429 = scmp.lt.s32.totalorder %s428, 27
      %s430 = scalar_select %p429, %s428, 27
      %s431 = smul.addr %s430, 8
      %s432 = scalar_lea.vmem %s11, %s431
      %s433 = smul.u32 14, %s22
      %v435 = vld [vmem:[%s414] sm:$0xf]
      %v436 = vld [vmem:[%s414 + $0x4] sm:$0xf]
      %v437 = vld [vmem:[%s414 + $0x8] sm:$0xf]
      %v438 = vld [vmem:[%s414 + $0xc] sm:$0xf]
      %v439 = vld [vmem:[%s414 + $0x10] sm:$0xf]
      %v440 = vld [vmem:[%s414 + $0x14] sm:$0xf]
      %v441 = vld [vmem:[%s414 + $0x18] sm:$0xf]
      %v442 = vld [vmem:[%s414 + $0x1c] sm:$0xf]
      %v443 = vld [vmem:[%s414 + $0x20] sm:$0xf]
      %v444 = vld [vmem:[%s414 + $0x24] sm:$0xf]
      %v445 = vld [vmem:[%s414 + $0x28] sm:$0xf]
      %v446 = vld [vmem:[%s414 + $0x2c] sm:$0xf]
      %v447 = vld [vmem:[%s414 + $0x30] sm:$0xf]
      %v448 = vld [vmem:[%s414 + $0x34] sm:$0xf]
      %v449 = vld [vmem:[%s420] sm:$0xf]
      %v450 = vld [vmem:[%s420 + $0x4] sm:$0xf]
      %v451 = vld [vmem:[%s420 + $0x8] sm:$0xf]
      %v452 = vld [vmem:[%s420 + $0xc] sm:$0xf]
      %v453 = vld [vmem:[%s420 + $0x10] sm:$0xf]
      %v454 = vld [vmem:[%s420 + $0x14] sm:$0xf]
      %v455 = vld [vmem:[%s420 + $0x18] sm:$0xf]
      %v456 = vld [vmem:[%s420 + $0x1c] sm:$0xf]
      %v457 = vld [vmem:[%s420 + $0x20] sm:$0xf]
      %v458 = vld [vmem:[%s420 + $0x24] sm:$0xf]
      %v459 = vld [vmem:[%s420 + $0x28] sm:$0xf]
      %v460 = vld [vmem:[%s420 + $0x2c] sm:$0xf]
      %v461 = vld [vmem:[%s420 + $0x30] sm:$0xf]
      %v462 = vld [vmem:[%s420 + $0x34] sm:$0xf]
      %v463 = vld [vmem:[%s426] sm:$0xf]
      %v464 = vld [vmem:[%s426 + $0x4] sm:$0xf]
      %v465 = vld [vmem:[%s426 + $0x8] sm:$0xf]
      %v466 = vld [vmem:[%s426 + $0xc] sm:$0xf]
      %v467 = vld [vmem:[%s426 + $0x10] sm:$0xf]
      %v468 = vld [vmem:[%s426 + $0x14] sm:$0xf]
      %v469 = vld [vmem:[%s426 + $0x18] sm:$0xf]
      %v470 = vld [vmem:[%s426 + $0x1c] sm:$0xf]
      %v471 = vld [vmem:[%s426 + $0x20] sm:$0xf]
      %v472 = vld [vmem:[%s426 + $0x24] sm:$0xf]
      %v473 = vld [vmem:[%s426 + $0x28] sm:$0xf]
      %v474 = vld [vmem:[%s426 + $0x2c] sm:$0xf]
      %v475 = vld [vmem:[%s426 + $0x30] sm:$0xf]
      %v476 = vld [vmem:[%s426 + $0x34] sm:$0xf]
      %v477 = vld [vmem:[%s3] sm:$0xf]
      %v478 = vld [vmem:[%s3 + $0x4] sm:$0xf]
      %v479 = vld [vmem:[%s3 + $0x8] sm:$0xf]
      %v480 = vld [vmem:[%s3 + $0xc] sm:$0xf]
      %v481 = vld [vmem:[%s4] sm:$0x3]
      %v482 = vld [vmem:[%s5] sm:$0x1]
      %v484 = vlaneseq
      %v485 = vshrl.u32 %v484, 7
      %v486 = vsub.s32 0, %v485
      %v487 = vrot.slane %v482, %v486
      %v503 = vunpack.c.l.b16 %v435
      %v504 = vunpack.c.l.b16 %v436
      %v505 = vunpack.c.l.b16 %v437
      %v506 = vunpack.c.l.b16 %v438
      %v507 = vunpack.c.l.b16 %v439
      %v508 = vunpack.c.l.b16 %v440
      %v509 = vunpack.c.l.b16 %v441
      %v510 = vunpack.c.l.b16 %v442
      %v511 = vunpack.c.l.b16 %v443
      %v512 = vunpack.c.l.b16 %v444
      %v513 = vunpack.c.l.b16 %v445
      %v514 = vunpack.c.l.b16 %v446
      %v515 = vunpack.c.l.b16 %v447
      %v516 = vunpack.c.l.b16 %v448
      %v517 = vpack.c.b16 %v504, %v503
      %v518 = vpack.c.b16 %v506, %v505
      %v519 = vpack.c.b16 %v508, %v507
      %v520 = vpack.c.b16 %v510, %v509
      %v521 = vpack.c.b16 %v512, %v511
      %v522 = vpack.c.b16 %v514, %v513
      %v523 = vpack.c.b16 %v516, %v515
      %v528 = vunpack.c.l.b16 %v477
      %v529 = vunpack.c.l.b16 %v478
      %v530 = vunpack.c.l.b16 %v479
      %v531 = vunpack.c.l.b16 %v480
      %v532 = vpack.c.b16 %v529, %v528
      %v533 = vpack.c.b16 %v531, %v530
      %vm536 = vcmask 261120
      %v538 = vsel %vm536, %v517, 0
      %v541 = vsel %vm536, %v518, 0
      %v544 = vsel %vm536, %v519, 0
      %v547 = vsel %vm536, %v520, 0
      %v550 = vsel %vm536, %v521, 0
      %v553 = vsel %vm536, %v522, 0
      %v556 = vsel %vm536, %v523, 0
      %558 = vmatprep.subr.bf16.mxu0 0
      %559 = vmatpush1.bf16.msra.mxu0 0
      %560 = vmatprep.subr.bf16.mxu0 0
      %561 = vmatpush1.bf16.msra.mxu0 0
      %562 = vmatprep.subr.bf16.mxu0 0
      %563 = vmatpush1.bf16.msra.mxu0 0
      %564 = vmatprep.subr.bf16.mxu0 0
      %565 = vmatpush1.bf16.msra.mxu0 0
      %566 = vmatprep.subr.bf16.mxu0 0
      %567 = vmatpush1.bf16.msra.mxu0 0
      %568 = vmatprep.subr.bf16.mxu0 0
      %569 = vmatpush1.bf16.msra.mxu0 0
      %570 = vmatprep.subr.bf16.mxu0 0
      %571 = vmatpush1.bf16.msra.mxu0 %v533
      %572 = vmatprep.subr.bf16.mxu0 0
      %573 = vmatpush1.bf16.msra.mxu0 %v532
      %574 = vmatprep.subr.bf16.mxu0 0
      %575 = vmatpush2.bf16.msra.mxu0 0
      %576 = vmatprep.subr.bf16.mxu0 0
      %577 = vmatpush2.bf16.msra.mxu0 0
      %578 = vmatprep.subr.bf16.mxu0 0
      %579 = vmatpush2.bf16.msra.mxu0 0
      %580 = vmatprep.subr.bf16.mxu0 0
      %581 = vmatpush2.bf16.msra.mxu0 0
      %582 = vmatprep.subr.bf16.mxu0 0
      %583 = vmatpush2.bf16.msra.mxu0 0
      %584 = vmatprep.subr.bf16.mxu0 0
      %585 = vmatpush2.bf16.msra.mxu0 0
      %586 = vmatprep.subr.bf16.mxu0 0
      %587 = vmatpush2.bf16.msra.mxu0 0
      %588 = vmatprep.subr.bf16.mxu0 0
      %589 = vmatpush2.bf16.msra.mxu0 0
      %590 = vmatprep.mubr.bf16.mxu0 0
      %591 = vmatmul.mubr.bf16.gmra.mxu0 %v538
      %v592 = vpop.f32.mrf.mxu0
      %v593 = vadd.f32 %v487, %v592
      %v594 = vpop.f32.mrf.mxu0
      %v595 = vpop.f32.mrf.mxu0
      %v596 = vadd.f32 %v487, %v595
      %v597 = vpop.f32.mrf.mxu0
      %598 = vmatprep.mubr.bf16.mxu0 0
      %599 = vmatmul.mubr.bf16.gmra.mxu0 %v541
      %v600 = vpop.f32.mrf.mxu0
      %v601 = vadd.f32 %v487, %v600
      %v602 = vpop.f32.mrf.mxu0
      %v603 = vpop.f32.mrf.mxu0
      %v604 = vadd.f32 %v487, %v603
      %v605 = vpop.f32.mrf.mxu0
      %606 = vmatprep.mubr.bf16.mxu0 0
      %607 = vmatmul.mubr.bf16.gmra.mxu0 %v544
      %v608 = vpop.f32.mrf.mxu0
      %v609 = vadd.f32 %v487, %v608
      %v610 = vpop.f32.mrf.mxu0
      %v611 = vpop.f32.mrf.mxu0
      %v612 = vadd.f32 %v487, %v611
      %v613 = vpop.f32.mrf.mxu0
      %614 = vmatprep.mubr.bf16.mxu0 0
      %615 = vmatmul.mubr.bf16.gmra.mxu0 %v547
      %v616 = vpop.f32.mrf.mxu0
      %v617 = vadd.f32 %v487, %v616
      %v618 = vpop.f32.mrf.mxu0
      %v619 = vpop.f32.mrf.mxu0
      %v620 = vadd.f32 %v487, %v619
      %v621 = vpop.f32.mrf.mxu0
      %622 = vmatprep.mubr.bf16.mxu0 0
      %623 = vmatmul.mubr.bf16.gmra.mxu0 %v550
      %v624 = vpop.f32.mrf.mxu0
      %v625 = vadd.f32 %v487, %v624
      %v626 = vpop.f32.mrf.mxu0
      %v627 = vpop.f32.mrf.mxu0
      %v628 = vadd.f32 %v487, %v627
      %v629 = vpop.f32.mrf.mxu0
      %630 = vmatprep.mubr.bf16.mxu0 0
      %631 = vmatmul.mubr.bf16.gmra.mxu0 %v553
      %v632 = vpop.f32.mrf.mxu0
      %v633 = vadd.f32 %v487, %v632
      %v634 = vpop.f32.mrf.mxu0
      %v635 = vpop.f32.mrf.mxu0
      %v636 = vadd.f32 %v487, %v635
      %v637 = vpop.f32.mrf.mxu0
      %638 = vmatprep.mubr.bf16.mxu0 0
      %639 = vmatmul.mubr.bf16.gmra.mxu0 %v556
      %v640 = vpop.f32.mrf.mxu0
      %v641 = vadd.f32 %v487, %v640
      %v642 = vpop.f32.mrf.mxu0
      %v643 = vpop.f32.mrf.mxu0
      %v644 = vadd.f32 %v487, %v643
      %v645 = vpop.f32.mrf.mxu0
      %646 = vdwg.mxu0
      %v647 = vunpack.c.l.bf16 %v449
      %v648 = vunpack.c.l.bf16 %v450
      %v649 = vunpack.c.l.bf16 %v451
      %v650 = vunpack.c.l.bf16 %v452
      %v651 = vunpack.c.l.bf16 %v453
      %v652 = vunpack.c.l.bf16 %v454
      %v653 = vunpack.c.l.bf16 %v455
      %v654 = vunpack.c.l.bf16 %v456
      %v655 = vunpack.c.l.bf16 %v457
      %v656 = vunpack.c.l.bf16 %v458
      %v657 = vunpack.c.l.bf16 %v459
      %v658 = vunpack.c.l.bf16 %v460
      %v659 = vunpack.c.l.bf16 %v461
      %v660 = vunpack.c.l.bf16 %v462
      %662 = vset.pattern.permute.xlu0 0
      %663 = vperm.xlu0 %662, %v647
      %v664 = vpop.permute.xlu0 %663
      %667 = vset.pattern.permute.xlu0 0
      %668 = vperm.xlu0 %667, %v648
      %v669 = vpop.permute.xlu0 %668
      %672 = vset.pattern.permute.xlu0 0
      %673 = vperm.xlu0 %672, %v649
      %v674 = vpop.permute.xlu0 %673
      %677 = vset.pattern.permute.xlu0 0
      %678 = vperm.xlu0 %677, %v650
      %v679 = vpop.permute.xlu0 %678
      %682 = vset.pattern.permute.xlu0 0
      %683 = vperm.xlu0 %682, %v651
      %v684 = vpop.permute.xlu0 %683
      %687 = vset.pattern.permute.xlu0 0
      %688 = vperm.xlu0 %687, %v652
      %v689 = vpop.permute.xlu0 %688
      %692 = vset.pattern.permute.xlu0 0
      %693 = vperm.xlu0 %692, %v653
      %v694 = vpop.permute.xlu0 %693
      %697 = vset.pattern.permute.xlu0 0
      %698 = vperm.xlu0 %697, %v654
      %v699 = vpop.permute.xlu0 %698
      %702 = vset.pattern.permute.xlu0 0
      %703 = vperm.xlu0 %702, %v655
      %v704 = vpop.permute.xlu0 %703
      %707 = vset.pattern.permute.xlu0 0
      %708 = vperm.xlu0 %707, %v656
      %v709 = vpop.permute.xlu0 %708
      %712 = vset.pattern.permute.xlu0 0
      %713 = vperm.xlu0 %712, %v657
      %v714 = vpop.permute.xlu0 %713
      %717 = vset.pattern.permute.xlu0 0
      %718 = vperm.xlu0 %717, %v658
      %v719 = vpop.permute.xlu0 %718
      %722 = vset.pattern.permute.xlu0 0
      %723 = vperm.xlu0 %722, %v659
      %v724 = vpop.permute.xlu0 %723
      %727 = vset.pattern.permute.xlu0 0
      %728 = vperm.xlu0 %727, %v660
      %v729 = vpop.permute.xlu0 %728
      %v731 = vlaneseq
      %v732 = vshrl.u32 %v731, 7
      %v733 = vsub.s32 0, %v732
      %v734 = vrot.slane %v481, %v733
      %v735 = vmul.f32 %v664, %v734
      %v736 = vmul.f32 %v669, %v734
      %v737 = vmul.f32 %v674, %v734
      %v738 = vmul.f32 %v679, %v734
      %v739 = vmul.f32 %v684, %v734
      %v740 = vmul.f32 %v689, %v734
      %v741 = vmul.f32 %v694, %v734
      %v742 = vmul.f32 %v699, %v734
      %v743 = vmul.f32 %v704, %v734
      %v744 = vmul.f32 %v709, %v734
      %v745 = vmul.f32 %v714, %v734
      %v746 = vmul.f32 %v719, %v734
      %v747 = vmul.f32 %v724, %v734
      %v748 = vmul.f32 %v729, %v734
      %v749 = vadd.f32 %v593, %v735
      %v750 = vadd.f32 %v596, %v736
      %v751 = vadd.f32 %v601, %v737
      %v752 = vadd.f32 %v604, %v738
      %v753 = vadd.f32 %v609, %v739
      %v754 = vadd.f32 %v612, %v740
      %v755 = vadd.f32 %v617, %v741
      %v756 = vadd.f32 %v620, %v742
      %v757 = vadd.f32 %v625, %v743
      %v758 = vadd.f32 %v628, %v744
      %v759 = vadd.f32 %v633, %v745
      %v760 = vadd.f32 %v636, %v746
      %v761 = vadd.f32 %v641, %v747
      %v762 = vadd.f32 %v644, %v748
      %763 = vset.pattern.permute.xlu0 1
      %764 = vperm.xlu0 %763, %v647
      %v765 = vpop.permute.xlu0 %764
      %767 = vset.pattern.permute.xlu0 1
      %768 = vperm.xlu0 %767, %v648
      %v769 = vpop.permute.xlu0 %768
      %771 = vset.pattern.permute.xlu0 1
      %772 = vperm.xlu0 %771, %v649
      %v773 = vpop.permute.xlu0 %772
      %775 = vset.pattern.permute.xlu0 1
      %776 = vperm.xlu0 %775, %v650
      %v777 = vpop.permute.xlu0 %776
      %779 = vset.pattern.permute.xlu0 1
      %780 = vperm.xlu0 %779, %v651
      %v781 = vpop.permute.xlu0 %780
      %783 = vset.pattern.permute.xlu0 1
      %784 = vperm.xlu0 %783, %v652
      %v785 = vpop.permute.xlu0 %784
      %787 = vset.pattern.permute.xlu0 1
      %788 = vperm.xlu0 %787, %v653
      %v789 = vpop.permute.xlu0 %788
      %791 = vset.pattern.permute.xlu0 1
      %792 = vperm.xlu0 %791, %v654
      %v793 = vpop.permute.xlu0 %792
      %795 = vset.pattern.permute.xlu0 1
      %796 = vperm.xlu0 %795, %v655
      %v797 = vpop.permute.xlu0 %796
      %799 = vset.pattern.permute.xlu0 1
      %800 = vperm.xlu0 %799, %v656
      %v801 = vpop.permute.xlu0 %800
      %803 = vset.pattern.permute.xlu0 1
      %804 = vperm.xlu0 %803, %v657
      %v805 = vpop.permute.xlu0 %804
      %807 = vset.pattern.permute.xlu0 1
      %808 = vperm.xlu0 %807, %v658
      %v809 = vpop.permute.xlu0 %808
      %811 = vset.pattern.permute.xlu0 1
      %812 = vperm.xlu0 %811, %v659
      %v813 = vpop.permute.xlu0 %812
      %815 = vset.pattern.permute.xlu0 1
      %816 = vperm.xlu0 %815, %v660
      %v817 = vpop.permute.xlu0 %816
      %v819 = vlaneseq
      %v820 = vshrl.u32 %v819, 7
      %v821 = vsub.s32 1, %v820
      %v822 = vrot.slane %v481, %v821
      %v823 = vmul.f32 %v765, %v822
      %v824 = vmul.f32 %v769, %v822
      %v825 = vmul.f32 %v773, %v822
      %v826 = vmul.f32 %v777, %v822
      %v827 = vmul.f32 %v781, %v822
      %v828 = vmul.f32 %v785, %v822
      %v829 = vmul.f32 %v789, %v822
      %v830 = vmul.f32 %v793, %v822
      %v831 = vmul.f32 %v797, %v822
      %v832 = vmul.f32 %v801, %v822
      %v833 = vmul.f32 %v805, %v822
      %v834 = vmul.f32 %v809, %v822
      %v835 = vmul.f32 %v813, %v822
      %v836 = vmul.f32 %v817, %v822
      %v837 = vadd.f32 %v749, %v823
      %v838 = vadd.f32 %v750, %v824
      %v839 = vadd.f32 %v751, %v825
      %v840 = vadd.f32 %v752, %v826
      %v841 = vadd.f32 %v753, %v827
      %v842 = vadd.f32 %v754, %v828
      %v843 = vadd.f32 %v755, %v829
      %v844 = vadd.f32 %v756, %v830
      %v845 = vadd.f32 %v757, %v831
      %v846 = vadd.f32 %v758, %v832
      %v847 = vadd.f32 %v759, %v833
      %v848 = vadd.f32 %v760, %v834
      %v849 = vadd.f32 %v761, %v835
      %v850 = vadd.f32 %v762, %v836
      %v851 = vld [vmem:[%s6] sm:$0xf]
      %v852 = vld [vmem:[%s6 + $0x4] sm:$0xf]
      %v867 = vunpack.c.l.b16 %v463
      %v868 = vunpack.c.l.b16 %v464
      %v869 = vunpack.c.l.b16 %v465
      %v870 = vunpack.c.l.b16 %v466
      %v871 = vunpack.c.l.b16 %v467
      %v872 = vunpack.c.l.b16 %v468
      %v873 = vunpack.c.l.b16 %v469
      %v874 = vunpack.c.l.b16 %v470
      %v875 = vunpack.c.l.b16 %v471
      %v876 = vunpack.c.l.b16 %v472
      %v877 = vunpack.c.l.b16 %v473
      %v878 = vunpack.c.l.b16 %v474
      %v879 = vunpack.c.l.b16 %v475
      %v880 = vunpack.c.l.b16 %v476
      %v881 = vpack.c.b16 %v868, %v867
      %v882 = vpack.c.b16 %v870, %v869
      %v883 = vpack.c.b16 %v872, %v871
      %v884 = vpack.c.b16 %v874, %v873
      %v885 = vpack.c.b16 %v876, %v875
      %v886 = vpack.c.b16 %v878, %v877
      %v887 = vpack.c.b16 %v880, %v879
      %v890 = vunpack.c.l.b16 %v851
      %v891 = vunpack.c.l.b16 %v852
      %v892 = vpack.c.b16 %v891, %v890
      %vm894 = vcmask 130048
      %v896 = vsel %vm894, %v881, 0
      %v899 = vsel %vm894, %v882, 0
      %v902 = vsel %vm894, %v883, 0
      %v905 = vsel %vm894, %v884, 0
      %v908 = vsel %vm894, %v885, 0
      %v911 = vsel %vm894, %v886, 0
      %v914 = vsel %vm894, %v887, 0
      %916 = vmatprep.subr.bf16.mxu0 0
      %917 = vmatpush1.bf16.msra.mxu0 0
      %918 = vmatprep.subr.bf16.mxu0 0
      %919 = vmatpush1.bf16.msra.mxu0 0
      %920 = vmatprep.subr.bf16.mxu0 0
      %921 = vmatpush1.bf16.msra.mxu0 0
      %922 = vmatprep.subr.bf16.mxu0 0
      %923 = vmatpush1.bf16.msra.mxu0 0
      %924 = vmatprep.subr.bf16.mxu0 0
      %925 = vmatpush1.bf16.msra.mxu0 0
      %926 = vmatprep.subr.bf16.mxu0 0
      %927 = vmatpush1.bf16.msra.mxu0 0
      %928 = vmatprep.subr.bf16.mxu0 0
      %929 = vmatpush1.bf16.msra.mxu0 0
      %930 = vmatprep.subr.bf16.mxu0 0
      %931 = vmatpush1.bf16.msra.mxu0 %v892
      %932 = vmatprep.subr.bf16.mxu0 0
      %933 = vmatpush2.bf16.msra.mxu0 0
      %934 = vmatprep.subr.bf16.mxu0 0
      %935 = vmatpush2.bf16.msra.mxu0 0
      %936 = vmatprep.subr.bf16.mxu0 0
      %937 = vmatpush2.bf16.msra.mxu0 0
      %938 = vmatprep.subr.bf16.mxu0 0
      %939 = vmatpush2.bf16.msra.mxu0 0
      %940 = vmatprep.subr.bf16.mxu0 0
      %941 = vmatpush2.bf16.msra.mxu0 0
      %942 = vmatprep.subr.bf16.mxu0 0
      %943 = vmatpush2.bf16.msra.mxu0 0
      %944 = vmatprep.subr.bf16.mxu0 0
      %945 = vmatpush2.bf16.msra.mxu0 0
      %946 = vmatprep.subr.bf16.mxu0 0
      %947 = vmatpush2.bf16.msra.mxu0 0
      %948 = vmatprep.mubr.bf16.mxu0 0
      %949 = vmatmul.mubr.bf16.gmra.mxu0 %v896
      %v950 = vpop.f32.mrf.mxu0
      %v951 = vadd.f32 0.0, %v950
      %v952 = vpop.f32.mrf.mxu0
      %v953 = vpop.f32.mrf.mxu0
      %v954 = vadd.f32 0.0, %v953
      %v955 = vpop.f32.mrf.mxu0
      %956 = vmatprep.mubr.bf16.mxu0 0
      %957 = vmatmul.mubr.bf16.gmra.mxu0 %v899
      %v958 = vpop.f32.mrf.mxu0
      %v959 = vadd.f32 0.0, %v958
      %v960 = vpop.f32.mrf.mxu0
      %v961 = vpop.f32.mrf.mxu0
      %v962 = vadd.f32 0.0, %v961
      %v963 = vpop.f32.mrf.mxu0
      %964 = vmatprep.mubr.bf16.mxu0 0
      %965 = vmatmul.mubr.bf16.gmra.mxu0 %v902
      %v966 = vpop.f32.mrf.mxu0
      %v967 = vadd.f32 0.0, %v966
      %v968 = vpop.f32.mrf.mxu0
      %v969 = vpop.f32.mrf.mxu0
      %v970 = vadd.f32 0.0, %v969
      %v971 = vpop.f32.mrf.mxu0
      %972 = vmatprep.mubr.bf16.mxu0 0
      %973 = vmatmul.mubr.bf16.gmra.mxu0 %v905
      %v974 = vpop.f32.mrf.mxu0
      %v975 = vadd.f32 0.0, %v974
      %v976 = vpop.f32.mrf.mxu0
      %v977 = vpop.f32.mrf.mxu0
      %v978 = vadd.f32 0.0, %v977
      %v979 = vpop.f32.mrf.mxu0
      %980 = vmatprep.mubr.bf16.mxu0 0
      %981 = vmatmul.mubr.bf16.gmra.mxu0 %v908
      %v982 = vpop.f32.mrf.mxu0
      %v983 = vadd.f32 0.0, %v982
      %v984 = vpop.f32.mrf.mxu0
      %v985 = vpop.f32.mrf.mxu0
      %v986 = vadd.f32 0.0, %v985
      %v987 = vpop.f32.mrf.mxu0
      %988 = vmatprep.mubr.bf16.mxu0 0
      %989 = vmatmul.mubr.bf16.gmra.mxu0 %v911
      %v990 = vpop.f32.mrf.mxu0
      %v991 = vadd.f32 0.0, %v990
      %v992 = vpop.f32.mrf.mxu0
      %v993 = vpop.f32.mrf.mxu0
      %v994 = vadd.f32 0.0, %v993
      %v995 = vpop.f32.mrf.mxu0
      %996 = vmatprep.mubr.bf16.mxu0 0
      %997 = vmatmul.mubr.bf16.gmra.mxu0 %v914
      %v998 = vpop.f32.mrf.mxu0
      %v999 = vadd.f32 0.0, %v998
      %v1000 = vpop.f32.mrf.mxu0
      %v1001 = vpop.f32.mrf.mxu0
      %v1002 = vadd.f32 0.0, %v1001
      %v1003 = vpop.f32.mrf.mxu0
      %1004 = vdwg.mxu0
      %v1005 = vadd.f32 %v837, %v951
      %v1006 = vadd.f32 %v838, %v954
      %v1007 = vadd.f32 %v839, %v959
      %v1008 = vadd.f32 %v840, %v962
      %v1009 = vadd.f32 %v841, %v967
      %v1010 = vadd.f32 %v842, %v970
      %v1011 = vadd.f32 %v843, %v975
      %v1012 = vadd.f32 %v844, %v978
      %v1013 = vadd.f32 %v845, %v983
      %v1014 = vadd.f32 %v846, %v986
      %v1015 = vadd.f32 %v847, %v991
      %v1016 = vadd.f32 %v848, %v994
      %v1017 = vadd.f32 %v849, %v999
      %v1018 = vadd.f32 %v850, %v1002
      %v1019 = vmax.f32 %v1005, 0.0
      %v1020 = vmax.f32 %v1006, 0.0
      %v1021 = vmax.f32 %v1007, 0.0
      %v1022 = vmax.f32 %v1008, 0.0
      %v1023 = vmax.f32 %v1009, 0.0
      %v1024 = vmax.f32 %v1010, 0.0
      %v1025 = vmax.f32 %v1011, 0.0
      %v1026 = vmax.f32 %v1012, 0.0
      %v1027 = vmax.f32 %v1013, 0.0
      %v1028 = vmax.f32 %v1014, 0.0
      %v1029 = vmax.f32 %v1015, 0.0
      %v1030 = vmax.f32 %v1016, 0.0
      %v1031 = vmax.f32 %v1017, 0.0
      %v1032 = vmax.f32 %v1018, 0.0
      %v1033 = vld [vmem:[%s7] sm:$0xf]
      %v1034 = vld [vmem:[%s7 + $0x4] sm:$0xf]
      %v1035 = vld [vmem:[%s7 + $0x8] sm:$0xf]
      %v1036 = vld [vmem:[%s7 + $0xc] sm:$0xf]
      %v1037 = vld [vmem:[%s7 + $0x10] sm:$0xf]
      %v1038 = vld [vmem:[%s7 + $0x14] sm:$0xf]
      %v1039 = vld [vmem:[%s7 + $0x18] sm:$0xf]
      %v1040 = vld [vmem:[%s7 + $0x1c] sm:$0xf]
      %v1041 = vld [vmem:[%s7 + $0x20] sm:$0xf]
      %v1042 = vld [vmem:[%s7 + $0x24] sm:$0xf]
      %v1043 = vld [vmem:[%s7 + $0x28] sm:$0xf]
      %v1044 = vld [vmem:[%s7 + $0x2c] sm:$0xf]
      %v1045 = vld [vmem:[%s7 + $0x30] sm:$0xf]
      %v1046 = vld [vmem:[%s7 + $0x34] sm:$0xf]
      %v1047 = vld [vmem:[%s7 + $0x38] sm:$0xf]
      %v1048 = vld [vmem:[%s7 + $0x3c] sm:$0xf]
      %v1049 = vld [vmem:[%s8] sm:$0x1]
      %v1050 = vpack.c.bf16 %v1020, %v1019
      %v1051 = vpack.c.bf16 %v1022, %v1021
      %v1052 = vpack.c.bf16 %v1024, %v1023
      %v1053 = vpack.c.bf16 %v1026, %v1025
      %v1054 = vpack.c.bf16 %v1028, %v1027
      %v1055 = vpack.c.bf16 %v1030, %v1029
      %v1056 = vpack.c.bf16 %v1032, %v1031
      %v1058 = vlaneseq
      %v1059 = vshrl.u32 %v1058, 7
      %v1060 = vsub.s32 0, %v1059
      %v1061 = vrot.slane %v1049, %v1060
      %v1079 = vunpack.c.l.b16 %v1033
      %v1080 = vunpack.c.l.b16 %v1034
      %v1081 = vunpack.c.l.b16 %v1035
      %v1082 = vunpack.c.l.b16 %v1036
      %v1083 = vunpack.c.l.b16 %v1037
      %v1084 = vunpack.c.l.b16 %v1038
      %v1085 = vunpack.c.l.b16 %v1039
      %v1086 = vunpack.c.l.b16 %v1040
      %v1087 = vunpack.c.l.b16 %v1041
      %v1088 = vunpack.c.l.b16 %v1042
      %v1089 = vunpack.c.l.b16 %v1043
      %v1090 = vunpack.c.l.b16 %v1044
      %v1091 = vunpack.c.l.b16 %v1045
      %v1092 = vunpack.c.l.b16 %v1046
      %v1093 = vunpack.c.l.b16 %v1047
      %v1094 = vunpack.c.l.b16 %v1048
      %v1095 = vpack.c.b16 %v1080, %v1079
      %v1096 = vpack.c.b16 %v1082, %v1081
      %v1097 = vpack.c.b16 %v1084, %v1083
      %v1098 = vpack.c.b16 %v1086, %v1085
      %v1099 = vpack.c.b16 %v1088, %v1087
      %v1100 = vpack.c.b16 %v1090, %v1089
      %v1101 = vpack.c.b16 %v1092, %v1091
      %v1102 = vpack.c.b16 %v1094, %v1093
      %1111 = vmatprep.subr.bf16.mxu0 0
      %1112 = vmatpush1.bf16.msra.mxu0 %v1102
      %1113 = vmatprep.subr.bf16.mxu0 0
      %1114 = vmatpush1.bf16.msra.mxu0 %v1101
      %1115 = vmatprep.subr.bf16.mxu0 0
      %1116 = vmatpush1.bf16.msra.mxu0 %v1100
      %1117 = vmatprep.subr.bf16.mxu0 0
      %1118 = vmatpush1.bf16.msra.mxu0 %v1099
      %1119 = vmatprep.subr.bf16.mxu0 0
      %1120 = vmatpush1.bf16.msra.mxu0 %v1098
      %1121 = vmatprep.subr.bf16.mxu0 0
      %1122 = vmatpush1.bf16.msra.mxu0 %v1097
      %1123 = vmatprep.subr.bf16.mxu0 0
      %1124 = vmatpush1.bf16.msra.mxu0 %v1096
      %1125 = vmatprep.subr.bf16.mxu0 0
      %1126 = vmatpush1.bf16.msra.mxu0 %v1095
      %1127 = vmatprep.subr.bf16.mxu0 0
      %1128 = vmatpush2.bf16.msra.mxu0 0
      %1129 = vmatprep.subr.bf16.mxu0 0
      %1130 = vmatpush2.bf16.msra.mxu0 0
      %1131 = vmatprep.subr.bf16.mxu0 0
      %1132 = vmatpush2.bf16.msra.mxu0 0
      %1133 = vmatprep.subr.bf16.mxu0 0
      %1134 = vmatpush2.bf16.msra.mxu0 0
      %1135 = vmatprep.subr.bf16.mxu0 0
      %1136 = vmatpush2.bf16.msra.mxu0 0
      %1137 = vmatprep.subr.bf16.mxu0 0
      %1138 = vmatpush2.bf16.msra.mxu0 0
      %1139 = vmatprep.subr.bf16.mxu0 0
      %1140 = vmatpush2.bf16.msra.mxu0 0
      %1141 = vmatprep.subr.bf16.mxu0 0
      %1142 = vmatpush2.bf16.msra.mxu0 0
      %1143 = vmatprep.mubr.bf16.mxu0 0
      %1144 = vmatmul.mubr.bf16.gmra.mxu0 %v1050
      %v1145 = vpop.f32.mrf.mxu0
      %v1146 = vadd.f32 %v1061, %v1145
      %v1147 = vpop.f32.mrf.mxu0
      %v1148 = vpop.f32.mrf.mxu0
      %v1149 = vadd.f32 %v1061, %v1148
      %v1150 = vpop.f32.mrf.mxu0
      %1151 = vmatprep.mubr.bf16.mxu0 0
      %1152 = vmatmul.mubr.bf16.gmra.mxu0 %v1051
      %v1153 = vpop.f32.mrf.mxu0
      %v1154 = vadd.f32 %v1061, %v1153
      %v1155 = vpop.f32.mrf.mxu0
      %v1156 = vpop.f32.mrf.mxu0
      %v1157 = vadd.f32 %v1061, %v1156
      %v1158 = vpop.f32.mrf.mxu0
      %1159 = vmatprep.mubr.bf16.mxu0 0
      %1160 = vmatmul.mubr.bf16.gmra.mxu0 %v1052
      %v1161 = vpop.f32.mrf.mxu0
      %v1162 = vadd.f32 %v1061, %v1161
      %v1163 = vpop.f32.mrf.mxu0
      %v1164 = vpop.f32.mrf.mxu0
      %v1165 = vadd.f32 %v1061, %v1164
      %v1166 = vpop.f32.mrf.mxu0
      %1167 = vmatprep.mubr.bf16.mxu0 0
      %1168 = vmatmul.mubr.bf16.gmra.mxu0 %v1053
      %v1169 = vpop.f32.mrf.mxu0
      %v1170 = vadd.f32 %v1061, %v1169
      %v1171 = vpop.f32.mrf.mxu0
      %v1172 = vpop.f32.mrf.mxu0
      %v1173 = vadd.f32 %v1061, %v1172
      %v1174 = vpop.f32.mrf.mxu0
      %1175 = vmatprep.mubr.bf16.mxu0 0
      %1176 = vmatmul.mubr.bf16.gmra.mxu0 %v1054
      %v1177 = vpop.f32.mrf.mxu0
      %v1178 = vadd.f32 %v1061, %v1177
      %v1179 = vpop.f32.mrf.mxu0
      %v1180 = vpop.f32.mrf.mxu0
      %v1181 = vadd.f32 %v1061, %v1180
      %v1182 = vpop.f32.mrf.mxu0
      %1183 = vmatprep.mubr.bf16.mxu0 0
      %1184 = vmatmul.mubr.bf16.gmra.mxu0 %v1055
      %v1185 = vpop.f32.mrf.mxu0
      %v1186 = vadd.f32 %v1061, %v1185
      %v1187 = vpop.f32.mrf.mxu0
      %v1188 = vpop.f32.mrf.mxu0
      %v1189 = vadd.f32 %v1061, %v1188
      %v1190 = vpop.f32.mrf.mxu0
      %1191 = vmatprep.mubr.bf16.mxu0 0
      %1192 = vmatmul.mubr.bf16.gmra.mxu0 %v1056
      %v1193 = vpop.f32.mrf.mxu0
      %v1194 = vadd.f32 %v1061, %v1193
      %v1195 = vpop.f32.mrf.mxu0
      %v1196 = vpop.f32.mrf.mxu0
      %v1197 = vadd.f32 %v1061, %v1196
      %v1198 = vpop.f32.mrf.mxu0
      %1199 = vdwg.mxu0
      %v1200 = vmax.f32 %v1146, 0.0
      %v1201 = vmax.f32 %v1149, 0.0
      %v1202 = vmax.f32 %v1154, 0.0
      %v1203 = vmax.f32 %v1157, 0.0
      %v1204 = vmax.f32 %v1162, 0.0
      %v1205 = vmax.f32 %v1165, 0.0
      %v1206 = vmax.f32 %v1170, 0.0
      %v1207 = vmax.f32 %v1173, 0.0
      %v1208 = vmax.f32 %v1178, 0.0
      %v1209 = vmax.f32 %v1181, 0.0
      %v1210 = vmax.f32 %v1186, 0.0
      %v1211 = vmax.f32 %v1189, 0.0
      %v1212 = vmax.f32 %v1194, 0.0
      %v1213 = vmax.f32 %v1197, 0.0
      %v1214 = vld [vmem:[%s9] sm:$0xf]
      %v1215 = vld [vmem:[%s9 + $0x4] sm:$0xf]
      %v1216 = vld [vmem:[%s9 + $0x8] sm:$0xf]
      %v1217 = vld [vmem:[%s9 + $0xc] sm:$0xf]
      %v1218 = vld [vmem:[%s9 + $0x10] sm:$0xf]
      %v1219 = vld [vmem:[%s9 + $0x14] sm:$0xf]
      %v1220 = vld [vmem:[%s9 + $0x18] sm:$0xf]
      %v1221 = vld [vmem:[%s9 + $0x1c] sm:$0xf]
      %v1222 = vld [vmem:[%s9 + $0x20] sm:$0xf]
      %v1223 = vld [vmem:[%s9 + $0x24] sm:$0xf]
      %v1224 = vld [vmem:[%s9 + $0x28] sm:$0xf]
      %v1225 = vld [vmem:[%s9 + $0x2c] sm:$0xf]
      %v1226 = vld [vmem:[%s9 + $0x30] sm:$0xf]
      %v1227 = vld [vmem:[%s9 + $0x34] sm:$0xf]
      %v1228 = vld [vmem:[%s9 + $0x38] sm:$0xf]
      %v1229 = vld [vmem:[%s9 + $0x3c] sm:$0xf]
      %v1230 = vld [vmem:[%s10] sm:$0x1]
      %v1231 = vpack.c.bf16 %v1201, %v1200
      %v1232 = vpack.c.bf16 %v1203, %v1202
      %v1233 = vpack.c.bf16 %v1205, %v1204
      %v1234 = vpack.c.bf16 %v1207, %v1206
      %v1235 = vpack.c.bf16 %v1209, %v1208
      %v1236 = vpack.c.bf16 %v1211, %v1210
      %v1237 = vpack.c.bf16 %v1213, %v1212
      %v1239 = vlaneseq
      %v1240 = vshrl.u32 %v1239, 7
      %v1241 = vsub.s32 0, %v1240
      %v1242 = vrot.slane %v1230, %v1241
      %v1260 = vunpack.c.l.b16 %v1214
      %v1261 = vunpack.c.l.b16 %v1215
      %v1262 = vunpack.c.l.b16 %v1216
      %v1263 = vunpack.c.l.b16 %v1217
      %v1264 = vunpack.c.l.b16 %v1218
      %v1265 = vunpack.c.l.b16 %v1219
      %v1266 = vunpack.c.l.b16 %v1220
      %v1267 = vunpack.c.l.b16 %v1221
      %v1268 = vunpack.c.l.b16 %v1222
      %v1269 = vunpack.c.l.b16 %v1223
      %v1270 = vunpack.c.l.b16 %v1224
      %v1271 = vunpack.c.l.b16 %v1225
      %v1272 = vunpack.c.l.b16 %v1226
      %v1273 = vunpack.c.l.b16 %v1227
      %v1274 = vunpack.c.l.b16 %v1228
      %v1275 = vunpack.c.l.b16 %v1229
      %v1276 = vpack.c.b16 %v1261, %v1260
      %v1277 = vpack.c.b16 %v1263, %v1262
      %v1278 = vpack.c.b16 %v1265, %v1264
      %v1279 = vpack.c.b16 %v1267, %v1266
      %v1280 = vpack.c.b16 %v1269, %v1268
      %v1281 = vpack.c.b16 %v1271, %v1270
      %v1282 = vpack.c.b16 %v1273, %v1272
      %v1283 = vpack.c.b16 %v1275, %v1274
      %1292 = vmatprep.subr.bf16.mxu0 0
      %1293 = vmatpush1.bf16.msra.mxu0 %v1283
      %1294 = vmatprep.subr.bf16.mxu0 0
      %1295 = vmatpush1.bf16.msra.mxu0 %v1282
      %1296 = vmatprep.subr.bf16.mxu0 0
      %1297 = vmatpush1.bf16.msra.mxu0 %v1281
      %1298 = vmatprep.subr.bf16.mxu0 0
      %1299 = vmatpush1.bf16.msra.mxu0 %v1280
      %1300 = vmatprep.subr.bf16.mxu0 0
      %1301 = vmatpush1.bf16.msra.mxu0 %v1279
      %1302 = vmatprep.subr.bf16.mxu0 0
      %1303 = vmatpush1.bf16.msra.mxu0 %v1278
      %1304 = vmatprep.subr.bf16.mxu0 0
      %1305 = vmatpush1.bf16.msra.mxu0 %v1277
      %1306 = vmatprep.subr.bf16.mxu0 0
      %1307 = vmatpush1.bf16.msra.mxu0 %v1276
      %1308 = vmatprep.subr.bf16.mxu0 0
      %1309 = vmatpush2.bf16.msra.mxu0 0
      %1310 = vmatprep.subr.bf16.mxu0 0
      %1311 = vmatpush2.bf16.msra.mxu0 0
      %1312 = vmatprep.subr.bf16.mxu0 0
      %1313 = vmatpush2.bf16.msra.mxu0 0
      %1314 = vmatprep.subr.bf16.mxu0 0
      %1315 = vmatpush2.bf16.msra.mxu0 0
      %1316 = vmatprep.subr.bf16.mxu0 0
      %1317 = vmatpush2.bf16.msra.mxu0 0
      %1318 = vmatprep.subr.bf16.mxu0 0
      %1319 = vmatpush2.bf16.msra.mxu0 0
      %1320 = vmatprep.subr.bf16.mxu0 0
      %1321 = vmatpush2.bf16.msra.mxu0 0
      %1322 = vmatprep.subr.bf16.mxu0 0
      %1323 = vmatpush2.bf16.msra.mxu0 0
      %1324 = vmatprep.mubr.bf16.mxu0 0
      %1325 = vmatmul.mubr.bf16.gmra.mxu0 %v1231
      %v1326 = vpop.f32.mrf.mxu0
      %v1327 = vadd.f32 %v1242, %v1326
      %v1328 = vpop.f32.mrf.mxu0
      %v1329 = vpop.f32.mrf.mxu0
      %v1330 = vadd.f32 %v1242, %v1329
      %v1331 = vpop.f32.mrf.mxu0
      %1332 = vmatprep.mubr.bf16.mxu0 0
      %1333 = vmatmul.mubr.bf16.gmra.mxu0 %v1232
      %v1334 = vpop.f32.mrf.mxu0
      %v1335 = vadd.f32 %v1242, %v1334
      %v1336 = vpop.f32.mrf.mxu0
      %v1337 = vpop.f32.mrf.mxu0
      %v1338 = vadd.f32 %v1242, %v1337
      %v1339 = vpop.f32.mrf.mxu0
      %1340 = vmatprep.mubr.bf16.mxu0 0
      %1341 = vmatmul.mubr.bf16.gmra.mxu0 %v1233
      %v1342 = vpop.f32.mrf.mxu0
      %v1343 = vadd.f32 %v1242, %v1342
      %v1344 = vpop.f32.mrf.mxu0
      %v1345 = vpop.f32.mrf.mxu0
      %v1346 = vadd.f32 %v1242, %v1345
      %v1347 = vpop.f32.mrf.mxu0
      %1348 = vmatprep.mubr.bf16.mxu0 0
      %1349 = vmatmul.mubr.bf16.gmra.mxu0 %v1234
      %v1350 = vpop.f32.mrf.mxu0
      %v1351 = vadd.f32 %v1242, %v1350
      %v1352 = vpop.f32.mrf.mxu0
      %v1353 = vpop.f32.mrf.mxu0
      %v1354 = vadd.f32 %v1242, %v1353
      %v1355 = vpop.f32.mrf.mxu0
      %1356 = vmatprep.mubr.bf16.mxu0 0
      %1357 = vmatmul.mubr.bf16.gmra.mxu0 %v1235
      %v1358 = vpop.f32.mrf.mxu0
      %v1359 = vadd.f32 %v1242, %v1358
      %v1360 = vpop.f32.mrf.mxu0
      %v1361 = vpop.f32.mrf.mxu0
      %v1362 = vadd.f32 %v1242, %v1361
      %v1363 = vpop.f32.mrf.mxu0
      %1364 = vmatprep.mubr.bf16.mxu0 0
      %1365 = vmatmul.mubr.bf16.gmra.mxu0 %v1236
      %v1366 = vpop.f32.mrf.mxu0
      %v1367 = vadd.f32 %v1242, %v1366
      %v1368 = vpop.f32.mrf.mxu0
      %v1369 = vpop.f32.mrf.mxu0
      %v1370 = vadd.f32 %v1242, %v1369
      %v1371 = vpop.f32.mrf.mxu0
      %1372 = vmatprep.mubr.bf16.mxu0 0
      %1373 = vmatmul.mubr.bf16.gmra.mxu0 %v1237
      %v1374 = vpop.f32.mrf.mxu0
      %v1375 = vadd.f32 %v1242, %v1374
      %v1376 = vpop.f32.mrf.mxu0
      %v1377 = vpop.f32.mrf.mxu0
      %v1378 = vadd.f32 %v1242, %v1377
      %v1379 = vpop.f32.mrf.mxu0
      %1380 = vdwg.mxu0
      %v1381 = vlaneseq
      %v1382 = vand.u32 %v1381, 127
      %v1383 = vmax.f32 %v1327, 0.0
      %v1384 = vmax.f32 %v1330, 0.0
      %v1385 = vmax.f32 %v1335, 0.0
      %v1386 = vmax.f32 %v1338, 0.0
      %v1387 = vmax.f32 %v1343, 0.0
      %v1388 = vmax.f32 %v1346, 0.0
      %v1389 = vmax.f32 %v1351, 0.0
      %v1390 = vmax.f32 %v1354, 0.0
      %v1391 = vmax.f32 %v1359, 0.0
      %v1392 = vmax.f32 %v1362, 0.0
      %v1393 = vmax.f32 %v1367, 0.0
      %v1394 = vmax.f32 %v1370, 0.0
      %v1395 = vmax.f32 %v1375, 0.0
      %v1396 = vmax.f32 %v1378, 0.0
      %vm1397 = vcmp.ne.f32.partialorder %v1327, %v1327
      %vm1398 = vcmp.ne.f32.partialorder %v1330, %v1330
      %vm1399 = vcmp.ne.f32.partialorder %v1335, %v1335
      %vm1400 = vcmp.ne.f32.partialorder %v1338, %v1338
      %vm1401 = vcmp.ne.f32.partialorder %v1343, %v1343
      %vm1402 = vcmp.ne.f32.partialorder %v1346, %v1346
      %vm1403 = vcmp.ne.f32.partialorder %v1351, %v1351
      %vm1404 = vcmp.ne.f32.partialorder %v1354, %v1354
      %vm1405 = vcmp.ne.f32.partialorder %v1359, %v1359
      %vm1406 = vcmp.ne.f32.partialorder %v1362, %v1362
      %vm1407 = vcmp.ne.f32.partialorder %v1367, %v1367
      %vm1408 = vcmp.ne.f32.partialorder %v1370, %v1370
      %vm1409 = vcmp.ne.f32.partialorder %v1375, %v1375
      %vm1410 = vcmp.ne.f32.partialorder %v1378, %v1378
      %v1411 = vadd.f32 %v1327, 0.0
      %v1412 = vadd.f32 %v1330, 0.0
      %v1413 = vadd.f32 %v1335, 0.0
      %v1414 = vadd.f32 %v1338, 0.0
      %v1415 = vadd.f32 %v1343, 0.0
      %v1416 = vadd.f32 %v1346, 0.0
      %v1417 = vadd.f32 %v1351, 0.0
      %v1418 = vadd.f32 %v1354, 0.0
      %v1419 = vadd.f32 %v1359, 0.0
      %v1420 = vadd.f32 %v1362, 0.0
      %v1421 = vadd.f32 %v1367, 0.0
      %v1422 = vadd.f32 %v1370, 0.0
      %v1423 = vadd.f32 %v1375, 0.0
      %v1424 = vadd.f32 %v1378, 0.0
      %v1425 = vand.u32 2147483647, %v1327
      %v1426 = vand.u32 2147483647, %v1330
      %v1427 = vand.u32 2147483647, %v1335
      %v1428 = vand.u32 2147483647, %v1338
      %v1429 = vand.u32 2147483647, %v1343
      %v1430 = vand.u32 2147483647, %v1346
      %v1431 = vand.u32 2147483647, %v1351
      %v1432 = vand.u32 2147483647, %v1354
      %v1433 = vand.u32 2147483647, %v1359
      %v1434 = vand.u32 2147483647, %v1362
      %v1435 = vand.u32 2147483647, %v1367
      %v1436 = vand.u32 2147483647, %v1370
      %v1437 = vand.u32 2147483647, %v1375
      %v1438 = vand.u32 2147483647, %v1378
      %v1439 = vsub.f32 0.0, %v1425
      %v1440 = vsub.f32 0.0, %v1426
      %v1441 = vsub.f32 0.0, %v1427
      %v1442 = vsub.f32 0.0, %v1428
      %v1443 = vsub.f32 0.0, %v1429
      %v1444 = vsub.f32 0.0, %v1430
      %v1445 = vsub.f32 0.0, %v1431
      %v1446 = vsub.f32 0.0, %v1432
      %v1447 = vsub.f32 0.0, %v1433
      %v1448 = vsub.f32 0.0, %v1434
      %v1449 = vsub.f32 0.0, %v1435
      %v1450 = vsub.f32 0.0, %v1436
      %v1451 = vsub.f32 0.0, %v1437
      %v1452 = vsub.f32 0.0, %v1438
      %v1453 = vmul.f32 %v1439, 1.442695
      %v1454 = vpow.pop %v1453
      %v1455 = vmul.f32 %v1440, 1.442695
      %v1456 = vpow.pop %v1455
      %v1457 = vmul.f32 %v1441, 1.442695
      %v1458 = vpow.pop %v1457
      %v1459 = vmul.f32 %v1442, 1.442695
      %v1460 = vpow.pop %v1459
      %v1461 = vmul.f32 %v1443, 1.442695
      %v1462 = vpow.pop %v1461
      %v1463 = vmul.f32 %v1444, 1.442695
      %v1464 = vpow.pop %v1463
      %v1465 = vmul.f32 %v1445, 1.442695
      %v1466 = vpow.pop %v1465
      %v1467 = vmul.f32 %v1446, 1.442695
      %v1468 = vpow.pop %v1467
      %v1469 = vmul.f32 %v1447, 1.442695
      %v1470 = vpow.pop %v1469
      %v1471 = vmul.f32 %v1448, 1.442695
      %v1472 = vpow.pop %v1471
      %v1473 = vmul.f32 %v1449, 1.442695
      %v1474 = vpow.pop %v1473
      %v1475 = vmul.f32 %v1450, 1.442695
      %v1476 = vpow.pop %v1475
      %v1477 = vmul.f32 %v1451, 1.442695
      %v1478 = vpow.pop %v1477
      %v1479 = vmul.f32 %v1452, 1.442695
      %v1480 = vpow.pop %v1479
      %v1481 = vadd.f32 %v1454, 1.0
      %v1482 = vlog2.pop %v1481
      %v1483 = vmul.f32 %v1482, 0.6931472
      %v1484 = vmul.f32 -0.5, %v1454
      %v1485 = vadd.f32 %v1484, 1.0
      %v1486 = vmul.f32 %v1485, %v1454
      %v1487 = vand.u32 2147483647, %v1454
      %vm1488 = vcmp.lt.f32.partialorder %v1487, 0.0004427343
      %v1489 = vsel %vm1488, %v1486, %v1483
      %v1490 = vadd.f32 %v1456, 1.0
      %v1491 = vlog2.pop %v1490
      %v1492 = vmul.f32 %v1491, 0.6931472
      %v1493 = vmul.f32 -0.5, %v1456
      %v1494 = vadd.f32 %v1493, 1.0
      %v1495 = vmul.f32 %v1494, %v1456
      %v1496 = vand.u32 2147483647, %v1456
      %vm1497 = vcmp.lt.f32.partialorder %v1496, 0.0004427343
      %v1498 = vsel %vm1497, %v1495, %v1492
      %v1499 = vadd.f32 %v1458, 1.0
      %v1500 = vlog2.pop %v1499
      %v1501 = vmul.f32 %v1500, 0.6931472
      %v1502 = vmul.f32 -0.5, %v1458
      %v1503 = vadd.f32 %v1502, 1.0
      %v1504 = vmul.f32 %v1503, %v1458
      %v1505 = vand.u32 2147483647, %v1458
      %vm1506 = vcmp.lt.f32.partialorder %v1505, 0.0004427343
      %v1507 = vsel %vm1506, %v1504, %v1501
      %v1508 = vadd.f32 %v1460, 1.0
      %v1509 = vlog2.pop %v1508
      %v1510 = vmul.f32 %v1509, 0.6931472
      %v1511 = vmul.f32 -0.5, %v1460
      %v1512 = vadd.f32 %v1511, 1.0
      %v1513 = vmul.f32 %v1512, %v1460
      %v1514 = vand.u32 2147483647, %v1460
      %vm1515 = vcmp.lt.f32.partialorder %v1514, 0.0004427343
      %v1516 = vsel %vm1515, %v1513, %v1510
      %v1517 = vadd.f32 %v1462, 1.0
      %v1518 = vlog2.pop %v1517
      %v1519 = vmul.f32 %v1518, 0.6931472
      %v1520 = vmul.f32 -0.5, %v1462
      %v1521 = vadd.f32 %v1520, 1.0
      %v1522 = vmul.f32 %v1521, %v1462
      %v1523 = vand.u32 2147483647, %v1462
      %vm1524 = vcmp.lt.f32.partialorder %v1523, 0.0004427343
      %v1525 = vsel %vm1524, %v1522, %v1519
      %v1526 = vadd.f32 %v1464, 1.0
      %v1527 = vlog2.pop %v1526
      %v1528 = vmul.f32 %v1527, 0.6931472
      %v1529 = vmul.f32 -0.5, %v1464
      %v1530 = vadd.f32 %v1529, 1.0
      %v1531 = vmul.f32 %v1530, %v1464
      %v1532 = vand.u32 2147483647, %v1464
      %vm1533 = vcmp.lt.f32.partialorder %v1532, 0.0004427343
      %v1534 = vsel %vm1533, %v1531, %v1528
      %v1535 = vadd.f32 %v1466, 1.0
      %v1536 = vlog2.pop %v1535
      %v1537 = vmul.f32 %v1536, 0.6931472
      %v1538 = vmul.f32 -0.5, %v1466
      %v1539 = vadd.f32 %v1538, 1.0
      %v1540 = vmul.f32 %v1539, %v1466
      %v1541 = vand.u32 2147483647, %v1466
      %vm1542 = vcmp.lt.f32.partialorder %v1541, 0.0004427343
      %v1543 = vsel %vm1542, %v1540, %v1537
      %v1544 = vadd.f32 %v1468, 1.0
      %v1545 = vlog2.pop %v1544
      %v1546 = vmul.f32 %v1545, 0.6931472
      %v1547 = vmul.f32 -0.5, %v1468
      %v1548 = vadd.f32 %v1547, 1.0
      %v1549 = vmul.f32 %v1548, %v1468
      %v1550 = vand.u32 2147483647, %v1468
      %vm1551 = vcmp.lt.f32.partialorder %v1550, 0.0004427343
      %v1552 = vsel %vm1551, %v1549, %v1546
      %v1553 = vadd.f32 %v1470, 1.0
      %v1554 = vlog2.pop %v1553
      %v1555 = vmul.f32 %v1554, 0.6931472
      %v1556 = vmul.f32 -0.5, %v1470
      %v1557 = vadd.f32 %v1556, 1.0
      %v1558 = vmul.f32 %v1557, %v1470
      %v1559 = vand.u32 2147483647, %v1470
      %vm1560 = vcmp.lt.f32.partialorder %v1559, 0.0004427343
      %v1561 = vsel %vm1560, %v1558, %v1555
      %v1562 = vadd.f32 %v1472, 1.0
      %v1563 = vlog2.pop %v1562
      %v1564 = vmul.f32 %v1563, 0.6931472
      %v1565 = vmul.f32 -0.5, %v1472
      %v1566 = vadd.f32 %v1565, 1.0
      %v1567 = vmul.f32 %v1566, %v1472
      %v1568 = vand.u32 2147483647, %v1472
      %vm1569 = vcmp.lt.f32.partialorder %v1568, 0.0004427343
      %v1570 = vsel %vm1569, %v1567, %v1564
      %v1571 = vadd.f32 %v1474, 1.0
      %v1572 = vlog2.pop %v1571
      %v1573 = vmul.f32 %v1572, 0.6931472
      %v1574 = vmul.f32 -0.5, %v1474
      %v1575 = vadd.f32 %v1574, 1.0
      %v1576 = vmul.f32 %v1575, %v1474
      %v1577 = vand.u32 2147483647, %v1474
      %vm1578 = vcmp.lt.f32.partialorder %v1577, 0.0004427343
      %v1579 = vsel %vm1578, %v1576, %v1573
      %v1580 = vadd.f32 %v1476, 1.0
      %v1581 = vlog2.pop %v1580
      %v1582 = vmul.f32 %v1581, 0.6931472
      %v1583 = vmul.f32 -0.5, %v1476
      %v1584 = vadd.f32 %v1583, 1.0
      %v1585 = vmul.f32 %v1584, %v1476
      %v1586 = vand.u32 2147483647, %v1476
      %vm1587 = vcmp.lt.f32.partialorder %v1586, 0.0004427343
      %v1588 = vsel %vm1587, %v1585, %v1582
      %v1589 = vadd.f32 %v1478, 1.0
      %v1590 = vlog2.pop %v1589
      %v1591 = vmul.f32 %v1590, 0.6931472
      %v1592 = vmul.f32 -0.5, %v1478
      %v1593 = vadd.f32 %v1592, 1.0
      %v1594 = vmul.f32 %v1593, %v1478
      %v1595 = vand.u32 2147483647, %v1478
      %vm1596 = vcmp.lt.f32.partialorder %v1595, 0.0004427343
      %v1597 = vsel %vm1596, %v1594, %v1591
      %v1598 = vadd.f32 %v1480, 1.0
      %v1599 = vlog2.pop %v1598
      %v1600 = vmul.f32 %v1599, 0.6931472
      %v1601 = vmul.f32 -0.5, %v1480
      %v1602 = vadd.f32 %v1601, 1.0
      %v1603 = vmul.f32 %v1602, %v1480
      %v1604 = vand.u32 2147483647, %v1480
      %vm1605 = vcmp.lt.f32.partialorder %v1604, 0.0004427343
      %v1606 = vsel %vm1605, %v1603, %v1600
      %v1607 = vadd.f32 %v1383, %v1489
      %v1608 = vadd.f32 %v1384, %v1498
      %v1609 = vadd.f32 %v1385, %v1507
      %v1610 = vadd.f32 %v1386, %v1516
      %v1611 = vadd.f32 %v1387, %v1525
      %v1612 = vadd.f32 %v1388, %v1534
      %v1613 = vadd.f32 %v1389, %v1543
      %v1614 = vadd.f32 %v1390, %v1552
      %v1615 = vadd.f32 %v1391, %v1561
      %v1616 = vadd.f32 %v1392, %v1570
      %v1617 = vadd.f32 %v1393, %v1579
      %v1618 = vadd.f32 %v1394, %v1588
      %v1619 = vadd.f32 %v1395, %v1597
      %v1620 = vadd.f32 %v1396, %v1606
      %v1621 = vsel %vm1397, %v1411, %v1607
      %v1622 = vsel %vm1398, %v1412, %v1608
      %v1623 = vsel %vm1399, %v1413, %v1609
      %v1624 = vsel %vm1400, %v1414, %v1610
      %v1625 = vsel %vm1401, %v1415, %v1611
      %v1626 = vsel %vm1402, %v1416, %v1612
      %v1627 = vsel %vm1403, %v1417, %v1613
      %v1628 = vsel %vm1404, %v1418, %v1614
      %v1629 = vsel %vm1405, %v1419, %v1615
      %v1630 = vsel %vm1406, %v1420, %v1616
      %v1631 = vsel %vm1407, %v1421, %v1617
      %v1632 = vsel %vm1408, %v1422, %v1618
      %v1633 = vsel %vm1409, %v1423, %v1619
      %v1634 = vsel %vm1410, %v1424, %v1620
      %v1635 = vmul.f32 %v1621, 0.9
      %v1636 = vmul.f32 %v1622, 0.9
      %v1637 = vmul.f32 %v1623, 0.9
      %v1638 = vmul.f32 %v1624, 0.9
      %v1639 = vmul.f32 %v1625, 0.9
      %v1640 = vmul.f32 %v1626, 0.9
      %v1641 = vmul.f32 %v1627, 0.9
      %v1642 = vmul.f32 %v1628, 0.9
      %v1643 = vmul.f32 %v1629, 0.9
      %v1644 = vmul.f32 %v1630, 0.9
      %v1645 = vmul.f32 %v1631, 0.9
      %v1646 = vmul.f32 %v1632, 0.9
      %v1647 = vmul.f32 %v1633, 0.9
      %v1648 = vmul.f32 %v1634, 0.9
      %v1649 = vadd.f32 %v1635, 0.1
      %v1650 = vadd.f32 %v1636, 0.1
      %v1651 = vadd.f32 %v1637, 0.1
      %v1652 = vadd.f32 %v1638, 0.1
      %v1653 = vadd.f32 %v1639, 0.1
      %v1654 = vadd.f32 %v1640, 0.1
      %v1655 = vadd.f32 %v1641, 0.1
      %v1656 = vadd.f32 %v1642, 0.1
      %v1657 = vadd.f32 %v1643, 0.1
      %v1658 = vadd.f32 %v1644, 0.1
      %v1659 = vadd.f32 %v1645, 0.1
      %v1660 = vadd.f32 %v1646, 0.1
      %v1661 = vadd.f32 %v1647, 0.1
      %v1662 = vadd.f32 %v1648, 0.1
      %vm1663 = vcmp.lt.s32.totalorder %v1382, 2
      %v1664 = vsel %vm1663, %v1327, %v1649
      %v1665 = vsel %vm1663, %v1330, %v1650
      %v1666 = vsel %vm1663, %v1335, %v1651
      %v1667 = vsel %vm1663, %v1338, %v1652
      %v1668 = vsel %vm1663, %v1343, %v1653
      %v1669 = vsel %vm1663, %v1346, %v1654
      %v1670 = vsel %vm1663, %v1351, %v1655
      %v1671 = vsel %vm1663, %v1354, %v1656
      %v1672 = vsel %vm1663, %v1359, %v1657
      %v1673 = vsel %vm1663, %v1362, %v1658
      %v1674 = vsel %vm1663, %v1367, %v1659
      %v1675 = vsel %vm1663, %v1370, %v1660
      %v1676 = vsel %vm1663, %v1375, %v1661
      %v1677 = vsel %vm1663, %v1378, %v1662
      %vm1678 = vcmask 31744
      %1679 = vst.msk [vmem:[%s432] sm:$0xff] %vm1678, %v1664
      %1680 = vst.msk [vmem:[%s432 + $0x8] sm:$0xff] %vm1678, %v1665
      %1681 = vst.msk [vmem:[%s432 + $0x10] sm:$0xff] %vm1678, %v1666
      %1682 = vst.msk [vmem:[%s432 + $0x18] sm:$0xff] %vm1678, %v1667
      %1683 = vst.msk [vmem:[%s432 + $0x20] sm:$0xff] %vm1678, %v1668
      %1684 = vst.msk [vmem:[%s432 + $0x28] sm:$0xff] %vm1678, %v1669
      %1685 = vst.msk [vmem:[%s432 + $0x30] sm:$0xff] %vm1678, %v1670
      %1686 = vst.msk [vmem:[%s432 + $0x38] sm:$0xff] %vm1678, %v1671
      %1687 = vst.msk [vmem:[%s432 + $0x40] sm:$0xff] %vm1678, %v1672
      %1688 = vst.msk [vmem:[%s432 + $0x48] sm:$0xff] %vm1678, %v1673
      %1689 = vst.msk [vmem:[%s432 + $0x50] sm:$0xff] %vm1678, %v1674
      %1690 = vst.msk [vmem:[%s432 + $0x58] sm:$0xff] %vm1678, %v1675
      %1691 = vst.msk [vmem:[%s432 + $0x60] sm:$0xff] %vm1678, %v1676
      %1692 = vst.msk [vmem:[%s432 + $0x68] sm:$0xff] %vm1678, %v1677
      %s1693 = smul.u32 14, %s22
      %p1694 = scmp.lt.s32.totalorder %s1693, 27
      %s1695 = scalar_select %p1694, %s1693, 27
      %s1696 = smul.addr %s1695, 8
      %s1697 = scalar_lea.vmem %s11, %s1696
      // Predicated region
      $region65: #{tpu_custom_call.1} parent=63 // pred_check
        %p1698 = pneg %p286
      $region66: #{tpu_custom_call.1} parent=63 // pred_check_branch
        %1700 = sbr.rel (%p1698) target = $region68
      $region67: #{tpu_custom_call.1} parent=63 // pred_region
        %s1701 = smul.u32 14, %s22
      $region68: #{tpu_custom_call.1} parent=63 // pred_fallthru
        _
    $region64: #{tpu_custom_call.1} parent=5 // pred_fallthru
      _
    %p1702 = scmp.le.s32.totalorder 2, %s17
    // Predicated region
    $region69: #{tpu_custom_call.1} parent=5 // pred_check
      %p1703 = pneg %p1702
    $region70: #{tpu_custom_call.1} parent=5 // pred_check_branch
      %1705 = sbr.rel (%p1703) target = $region72
    $region71: #{tpu_custom_call.1} parent=5 // pred_region
      %s1706 = ssub.s32 %s17, 2
      // Predicated region
      $region73: #{tpu_custom_call.1} parent=71 // pred_check
        %p1707 = pneg %p292
      $region74: #{tpu_custom_call.1} parent=71 // pred_check_branch
        %1709 = sbr.rel (%p1707) target = $region76
      $region75: #{tpu_custom_call.1} parent=71 // pred_region
        %s1710 = smul.u32 14, %s23
        %p1711 = scmp.lt.s32.totalorder %s1710, 27
        %s1712 = scalar_select %p1711, %s1710, 27
        %s1713 = smul.addr %s1712, 8
        %s1714 = scalar_lea.vmem %s11, %s1713
      $region76: #{tpu_custom_call.1} parent=71 // pred_fallthru
        _
    $region72: #{tpu_custom_call.1} parent=5 // pred_fallthru
      _
  $region6: #{tpu_custom_call.1} parent=0 // loop_footer
    %s21 = sadd.s32 1, %s17
  $region7: #{tpu_custom_call.1} parent=0 // loop_footer_branch
    %16 = sbr.rel target = $region3
  $region8: #{tpu_custom_call.1} parent=0 // loop_exit
    _

// kernel: tpu_custom_call.1
$region0: #{tpu_custom_call.1}
  #allocation0 [shape = 'u32[]', space=smem, size = 0x4, offset = 0x4, fixed_abs, tag = 'smem constant byte address 0x4 - core index']
  #allocation1 [shape = 'u32[144,128]{1,0:T(1,128)}', space=vmem, size = 0x12000, scoped, tag = 'internal scratch']
  %s0 = inlined_call_operand.vmem [shape: bf16[224,32], index: 0, kind: input, shape index: {}]
  %s1 = inlined_call_operand.vmem [shape: bf16[224,2], index: 1, kind: input, shape index: {}]
  %s2 = inlined_call_operand.vmem [shape: bf16[224,16], index: 2, kind: input, shape index: {}]
  %s3 = inlined_call_operand.vmem [shape: bf16[32,128], index: 3, kind: input, shape index: {}]
  %s4 = inlined_call_operand.vmem [shape: f32[2,128], index: 4, kind: input, shape index: {}]
  %s5 = inlined_call_operand.vmem [shape: f32[1,128], index: 5, kind: input, shape index: {}]
  %s6 = inlined_call_operand.vmem [shape: bf16[16,128], index: 6, kind: input, shape index: {}]
  %s7 = inlined_call_operand.vmem [shape: bf16[128,128], index: 7, kind: input, shape index: {}]
  %s8 = inlined_call_operand.vmem [shape: f32[1,128], index: 8, kind: input, shape index: {}]
  %s9 = inlined_call_operand.vmem [shape: bf16[128,4], index: 9, kind: input, shape index: {}]
  %s10 = inlined_call_operand.vmem [shape: f32[1,4], index: 10, kind: input, shape index: {}]
  %s11 = inlined_call_operand.vmem [shape: f32[224,4], index: 11, kind: output, shape index: {}]
  %s12 = sld [smem:[#allocation0]]
  $region77: #{tpu_custom_call.1} parent=0
    _
  %s14 = ssub.s32 1, %s12
  %s15 = scalar_select 0, %s14, %s12
  loop: start=0, step=1, limit=4
  $region2: #{tpu_custom_call.1} parent=0 // loop_pre_header
    _
  $region3: #{tpu_custom_call.1} parent=0 // loop_header
    %s17 = sphi 0, %s21
    %p18 = scmp.ge.s32.totalorder %s17, 4
    %s27 = sphi 0, %s29
    %s30 = sphi 0, %s27
    %s31 = sphi 0, %s30
    %s47 = sphi 0, %s31
    %s53 = sphi 0, %s55
    %s56 = sphi 0, %s53
    %s57 = sphi 0, %s56
    %s73 = sphi 0, %s57
    %s79 = sphi 0, %s81
    %s82 = sphi 0, %s79
    %s83 = sphi 0, %s82
    %s99 = sphi 0, %s83
    %s103 = sphi 0, %s103
    %s105 = sphi 0, %s103
    %s106 = sphi 0, %s105
    %s120 = sphi 0, %s106
    %s124 = sphi 0, %s124
    %s126 = sphi 0, %s124
    %s127 = sphi 0, %s126
    %s141 = sphi 0, %s127
    %s145 = sphi 0, %s145
    %s147 = sphi 0, %s145
    %s148 = sphi 0, %s147
    %s162 = sphi 0, %s148
    %s166 = sphi 0, %s166
    %s168 = sphi 0, %s166
    %s169 = sphi 0, %s168
    %s183 = sphi 0, %s169
    %s187 = sphi 0, %s187
    %s189 = sphi 0, %s187
    %s190 = sphi 0, %s189
    %s204 = sphi 0, %s190
    %s208 = sphi 0, %s208
    %s210 = sphi 0, %s208
    %s211 = sphi 0, %s210
    %s225 = sphi 0, %s211
    %s229 = sphi 0, %s229
    %s231 = sphi 0, %s229
    %s232 = sphi 0, %s231
    %s246 = sphi 0, %s232
    %s250 = sphi 0, %s250
    %s252 = sphi 0, %s250
    %s253 = sphi 0, %s252
    %s267 = sphi 0, %s253
    %s273 = sphi 0, %s275
    %s276 = sphi 0, %s273
    %s277 = sphi 0, %s276
    %s293 = sphi 0, %s277
  $region4: #{tpu_custom_call.1} parent=0 // loop_header_branch
    %20 = sbr.rel (%p18) target = $region8
  $region5: #{tpu_custom_call.1} parent=0 // loop_body
    %s22 = ssub.s32 %s17, 1
    %s23 = ssub.s32 %s17, 2
    %s24 = sadd.s32 %s17, 1
    %s25 = ssub.s32 %s17, %s24
    %p26 = scmp.eq.s32.totalorder %s25, 0
    %s28 = sadd.s32 %s27, 1
    %s29 = scalar_select %p26, %s27, %s28
    %p32 = pneg %p26
    %p33 = scmp.eq.s32.totalorder %s17, 1
    %p34 = por %p32, %p33
    %p35 = scmp.ne.s32.totalorder %s27, %s30
    %p36 = scmp.eq.s32.totalorder %s17, 0
    %p37 = por %p35, %p36
    %p38 = scmp.ne.s32.totalorder %s27, %s30
    %p39 = scmp.eq.s32.totalorder %s22, 1
    %p40 = por %p38, %p39
    %p41 = scmp.ne.s32.totalorder %s30, %s31
    %p42 = scmp.eq.s32.totalorder %s22, 0
    %p43 = por %p41, %p42
    %p44 = scmp.ne.s32.totalorder %s30, %s31
    %p45 = scmp.eq.s32.totalorder %s23, 1
    %p46 = por %p44, %p45
    %p48 = scmp.ne.s32.totalorder %s31, %s47
    %p49 = scmp.eq.s32.totalorder %s23, 0
    %p50 = por %p48, %p49
    %s51 = ssub.s32 %s17, %s24
    %p52 = scmp.eq.s32.totalorder %s51, 0
    %s54 = sadd.s32 %s53, 1
    %s55 = scalar_select %p52, %s53, %s54
    %p58 = pneg %p52
    %p59 = scmp.eq.s32.totalorder %s17, 1
    %p60 = por %p58, %p59
    %p61 = scmp.ne.s32.totalorder %s53, %s56
    %p62 = scmp.eq.s32.totalorder %s17, 0
    %p63 = por %p61, %p62
    %p64 = scmp.ne.s32.totalorder %s53, %s56
    %p65 = scmp.eq.s32.totalorder %s22, 1
    %p66 = por %p64, %p65
    %p67 = scmp.ne.s32.totalorder %s56, %s57
    %p68 = scmp.eq.s32.totalorder %s22, 0
    %p69 = por %p67, %p68
    %p70 = scmp.ne.s32.totalorder %s56, %s57
    %p71 = scmp.eq.s32.totalorder %s23, 1
    %p72 = por %p70, %p71
    %p74 = scmp.ne.s32.totalorder %s57, %s73
    %p75 = scmp.eq.s32.totalorder %s23, 0
    %p76 = por %p74, %p75
    %s77 = ssub.s32 %s17, %s24
    %p78 = scmp.eq.s32.totalorder %s77, 0
    %s80 = sadd.s32 %s79, 1
    %s81 = scalar_select %p78, %s79, %s80
    %p84 = pneg %p78
    %p85 = scmp.eq.s32.totalorder %s17, 1
    %p86 = por %p84, %p85
    %p87 = scmp.ne.s32.totalorder %s79, %s82
    %p88 = scmp.eq.s32.totalorder %s17, 0
    %p89 = por %p87, %p88
    %p90 = scmp.ne.s32.totalorder %s79, %s82
    %p91 = scmp.eq.s32.totalorder %s22, 1
    %p92 = por %p90, %p91
    %p93 = scmp.ne.s32.totalorder %s82, %s83
    %p94 = scmp.eq.s32.totalorder %s22, 0
    %p95 = por %p93, %p94
    %p96 = scmp.ne.s32.totalorder %s82, %s83
    %p97 = scmp.eq.s32.totalorder %s23, 1
    %p98 = por %p96, %p97
    %p100 = scmp.ne.s32.totalorder %s83, %s99
    %p101 = scmp.eq.s32.totalorder %s23, 0
    %p102 = por %p100, %p101
    %s104 = sadd.s32 %s103, 1
    %p107 = scmp.eq.s32.totalorder %s17, 1
    %p108 = scmp.ne.s32.totalorder %s103, %s105
    %p109 = scmp.eq.s32.totalorder %s17, 0
    %p110 = por %p108, %p109
    %p111 = scmp.ne.s32.totalorder %s103, %s105
    %p112 = scmp.eq.s32.totalorder %s22, 1
    %p113 = por %p111, %p112
    %p114 = scmp.ne.s32.totalorder %s105, %s106
    %p115 = scmp.eq.s32.totalorder %s22, 0
    %p116 = por %p114, %p115
    %p117 = scmp.ne.s32.totalorder %s105, %s106
    %p118 = scmp.eq.s32.totalorder %s23, 1
    %p119 = por %p117, %p118
    %p121 = scmp.ne.s32.totalorder %s106, %s120
    %p122 = scmp.eq.s32.totalorder %s23, 0
    %p123 = por %p121, %p122
    %s125 = sadd.s32 %s124, 1
    %p128 = scmp.eq.s32.totalorder %s17, 1
    %p129 = scmp.ne.s32.totalorder %s124, %s126
    %p130 = scmp.eq.s32.totalorder %s17, 0
    %p131 = por %p129, %p130
    %p132 = scmp.ne.s32.totalorder %s124, %s126
    %p133 = scmp.eq.s32.totalorder %s22, 1
    %p134 = por %p132, %p133
    %p135 = scmp.ne.s32.totalorder %s126, %s127
    %p136 = scmp.eq.s32.totalorder %s22, 0
    %p137 = por %p135, %p136
    %p138 = scmp.ne.s32.totalorder %s126, %s127
    %p139 = scmp.eq.s32.totalorder %s23, 1
    %p140 = por %p138, %p139
    %p142 = scmp.ne.s32.totalorder %s127, %s141
    %p143 = scmp.eq.s32.totalorder %s23, 0
    %p144 = por %p142, %p143
    %s146 = sadd.s32 %s145, 1
    %p149 = scmp.eq.s32.totalorder %s17, 1
    %p150 = scmp.ne.s32.totalorder %s145, %s147
    %p151 = scmp.eq.s32.totalorder %s17, 0
    %p152 = por %p150, %p151
    %p153 = scmp.ne.s32.totalorder %s145, %s147
    %p154 = scmp.eq.s32.totalorder %s22, 1
    %p155 = por %p153, %p154
    %p156 = scmp.ne.s32.totalorder %s147, %s148
    %p157 = scmp.eq.s32.totalorder %s22, 0
    %p158 = por %p156, %p157
    %p159 = scmp.ne.s32.totalorder %s147, %s148
    %p160 = scmp.eq.s32.totalorder %s23, 1
    %p161 = por %p159, %p160
    %p163 = scmp.ne.s32.totalorder %s148, %s162
    %p164 = scmp.eq.s32.totalorder %s23, 0
    %p165 = por %p163, %p164
    %s167 = sadd.s32 %s166, 1
    %p170 = scmp.eq.s32.totalorder %s17, 1
    %p171 = scmp.ne.s32.totalorder %s166, %s168
    %p172 = scmp.eq.s32.totalorder %s17, 0
    %p173 = por %p171, %p172
    %p174 = scmp.ne.s32.totalorder %s166, %s168
    %p175 = scmp.eq.s32.totalorder %s22, 1
    %p176 = por %p174, %p175
    %p177 = scmp.ne.s32.totalorder %s168, %s169
    %p178 = scmp.eq.s32.totalorder %s22, 0
    %p179 = por %p177, %p178
    %p180 = scmp.ne.s32.totalorder %s168, %s169
    %p181 = scmp.eq.s32.totalorder %s23, 1
    %p182 = por %p180, %p181
    %p184 = scmp.ne.s32.totalorder %s169, %s183
    %p185 = scmp.eq.s32.totalorder %s23, 0
    %p186 = por %p184, %p185
    %s188 = sadd.s32 %s187, 1
    %p191 = scmp.eq.s32.totalorder %s17, 1
    %p192 = scmp.ne.s32.totalorder %s187, %s189
    %p193 = scmp.eq.s32.totalorder %s17, 0
    %p194 = por %p192, %p193
    %p195 = scmp.ne.s32.totalorder %s187, %s189
    %p196 = scmp.eq.s32.totalorder %s22, 1
    %p197 = por %p195, %p196
    %p198 = scmp.ne.s32.totalorder %s189, %s190
    %p199 = scmp.eq.s32.totalorder %s22, 0
    %p200 = por %p198, %p199
    %p201 = scmp.ne.s32.totalorder %s189, %s190
    %p202 = scmp.eq.s32.totalorder %s23, 1
    %p203 = por %p201, %p202
    %p205 = scmp.ne.s32.totalorder %s190, %s204
    %p206 = scmp.eq.s32.totalorder %s23, 0
    %p207 = por %p205, %p206
    %s209 = sadd.s32 %s208, 1
    %p212 = scmp.eq.s32.totalorder %s17, 1
    %p213 = scmp.ne.s32.totalorder %s208, %s210
    %p214 = scmp.eq.s32.totalorder %s17, 0
    %p215 = por %p213, %p214
    %p216 = scmp.ne.s32.totalorder %s208, %s210
    %p217 = scmp.eq.s32.totalorder %s22, 1
    %p218 = por %p216, %p217
    %p219 = scmp.ne.s32.totalorder %s210, %s211
    %p220 = scmp.eq.s32.totalorder %s22, 0
    %p221 = por %p219, %p220
    %p222 = scmp.ne.s32.totalorder %s210, %s211
    %p223 = scmp.eq.s32.totalorder %s23, 1
    %p224 = por %p222, %p223
    %p226 = scmp.ne.s32.totalorder %s211, %s225
    %p227 = scmp.eq.s32.totalorder %s23, 0
    %p228 = por %p226, %p227
    %s230 = sadd.s32 %s229, 1
    %p233 = scmp.eq.s32.totalorder %s17, 1
    %p234 = scmp.ne.s32.totalorder %s229, %s231
    %p235 = scmp.eq.s32.totalorder %s17, 0
    %p236 = por %p234, %p235
    %p237 = scmp.ne.s32.totalorder %s229, %s231
    %p238 = scmp.eq.s32.totalorder %s22, 1
    %p239 = por %p237, %p238
    %p240 = scmp.ne.s32.totalorder %s231, %s232
    %p241 = scmp.eq.s32.totalorder %s22, 0
    %p242 = por %p240, %p241
    %p243 = scmp.ne.s32.totalorder %s231, %s232
    %p244 = scmp.eq.s32.totalorder %s23, 1
    %p245 = por %p243, %p244
    %p247 = scmp.ne.s32.totalorder %s232, %s246
    %p248 = scmp.eq.s32.totalorder %s23, 0
    %p249 = por %p247, %p248
    %s251 = sadd.s32 %s250, 1
    %p254 = scmp.eq.s32.totalorder %s17, 1
    %p255 = scmp.ne.s32.totalorder %s250, %s252
    %p256 = scmp.eq.s32.totalorder %s17, 0
    %p257 = por %p255, %p256
    %p258 = scmp.ne.s32.totalorder %s250, %s252
    %p259 = scmp.eq.s32.totalorder %s22, 1
    %p260 = por %p258, %p259
    %p261 = scmp.ne.s32.totalorder %s252, %s253
    %p262 = scmp.eq.s32.totalorder %s22, 0
    %p263 = por %p261, %p262
    %p264 = scmp.ne.s32.totalorder %s252, %s253
    %p265 = scmp.eq.s32.totalorder %s23, 1
    %p266 = por %p264, %p265
    %p268 = scmp.ne.s32.totalorder %s253, %s267
    %p269 = scmp.eq.s32.totalorder %s23, 0
    %p270 = por %p268, %p269
    %s271 = ssub.s32 %s17, %s24
    %p272 = scmp.eq.s32.totalorder %s271, 0
    %s274 = sadd.s32 %s273, 1
    %s275 = scalar_select %p272, %s273, %s274
    %p278 = pneg %p272
    %p279 = scmp.eq.s32.totalorder %s17, 1
    %p280 = por %p278, %p279
    %p281 = scmp.ne.s32.totalorder %s273, %s276
    %p282 = scmp.eq.s32.totalorder %s17, 0
    %p283 = por %p281, %p282
    %p284 = scmp.ne.s32.totalorder %s273, %s276
    %p285 = scmp.eq.s32.totalorder %s22, 1
    %p286 = por %p284, %p285
    %p287 = scmp.ne.s32.totalorder %s276, %s277
    %p288 = scmp.eq.s32.totalorder %s22, 0
    %p289 = por %p287, %p288
    %p290 = scmp.ne.s32.totalorder %s276, %s277
    %p291 = scmp.eq.s32.totalorder %s23, 1
    %p292 = por %p290, %p291
    %p294 = scmp.ne.s32.totalorder %s277, %s293
    %p295 = scmp.eq.s32.totalorder %s23, 0
    %p296 = por %p294, %p295
    %p297 = scmp.le.s32.totalorder 1, %s17
    %p298 = scmp.lt.s32.totalorder %s17, 3
    %p299 = pnand %p297, %p298
    %p300 = pneg %p299
    // Predicated region
    $region9: #{tpu_custom_call.1} parent=5 // pred_check
      _
    $region10: #{tpu_custom_call.1} parent=5 // pred_check_branch
      %302 = sbr.rel (%p299) target = $region12
    $region11: #{tpu_custom_call.1} parent=5 // pred_region
      %s303 = ssub.s32 %s17, 1
      // Predicated region
      $region13: #{tpu_custom_call.1} parent=11 // pred_check
        %p304 = pneg %p116
      $region14: #{tpu_custom_call.1} parent=11 // pred_check_branch
        %306 = sbr.rel (%p304) target = $region16
      $region15: #{tpu_custom_call.1} parent=11 // pred_region
        _
      $region16: #{tpu_custom_call.1} parent=11 // pred_fallthru
        _
      // Predicated region
      $region17: #{tpu_custom_call.1} parent=11 // pred_check
        %p307 = pneg %p137
      $region18: #{tpu_custom_call.1} parent=11 // pred_check_branch
        %309 = sbr.rel (%p307) target = $region20
      $region19: #{tpu_custom_call.1} parent=11 // pred_region
        _
      $region20: #{tpu_custom_call.1} parent=11 // pred_fallthru
        _
      // Predicated region
      $region21: #{tpu_custom_call.1} parent=11 // pred_check
        %p310 = pneg %p158
      $region22: #{tpu_custom_call.1} parent=11 // pred_check_branch
        %312 = sbr.rel (%p310) target = $region24
      $region23: #{tpu_custom_call.1} parent=11 // pred_region
        _
      $region24: #{tpu_custom_call.1} parent=11 // pred_fallthru
        _
      // Predicated region
      $region25: #{tpu_custom_call.1} parent=11 // pred_check
        %p313 = pneg %p179
      $region26: #{tpu_custom_call.1} parent=11 // pred_check_branch
        %315 = sbr.rel (%p313) target = $region28
      $region27: #{tpu_custom_call.1} parent=11 // pred_region
        _
      $region28: #{tpu_custom_call.1} parent=11 // pred_fallthru
        _
      // Predicated region
      $region29: #{tpu_custom_call.1} parent=11 // pred_check
        %p316 = pneg %p200
      $region30: #{tpu_custom_call.1} parent=11 // pred_check_branch
        %318 = sbr.rel (%p316) target = $region32
      $region31: #{tpu_custom_call.1} parent=11 // pred_region
        _
      $region32: #{tpu_custom_call.1} parent=11 // pred_fallthru
        _
      // Predicated region
      $region33: #{tpu_custom_call.1} parent=11 // pred_check
        %p319 = pneg %p221
      $region34: #{tpu_custom_call.1} parent=11 // pred_check_branch
        %321 = sbr.rel (%p319) target = $region36
      $region35: #{tpu_custom_call.1} parent=11 // pred_region
        _
      $region36: #{tpu_custom_call.1} parent=11 // pred_fallthru
        _
      // Predicated region
      $region37: #{tpu_custom_call.1} parent=11 // pred_check
        %p322 = pneg %p242
      $region38: #{tpu_custom_call.1} parent=11 // pred_check_branch
        %324 = sbr.rel (%p322) target = $region40
      $region39: #{tpu_custom_call.1} parent=11 // pred_region
        _
      $region40: #{tpu_custom_call.1} parent=11 // pred_fallthru
        _
      // Predicated region
      $region41: #{tpu_custom_call.1} parent=11 // pred_check
        %p325 = pneg %p263
      $region42: #{tpu_custom_call.1} parent=11 // pred_check_branch
        %327 = sbr.rel (%p325) target = $region44
      $region43: #{tpu_custom_call.1} parent=11 // pred_region
        _
      $region44: #{tpu_custom_call.1} parent=11 // pred_fallthru
        _
    $region12: #{tpu_custom_call.1} parent=5 // pred_fallthru
      _
    %p328 = scmp.lt.s32.totalorder %s17, 2
    // Predicated region
    $region45: #{tpu_custom_call.1} parent=5 // pred_check
      %p329 = pneg %p328
    $region46: #{tpu_custom_call.1} parent=5 // pred_check_branch
      %331 = sbr.rel (%p329) target = $region48
    $region47: #{tpu_custom_call.1} parent=5 // pred_region
      // Predicated region
      $region49: #{tpu_custom_call.1} parent=47 // pred_check
        %p332 = pneg %p37
      $region50: #{tpu_custom_call.1} parent=47 // pred_check_branch
        %334 = sbr.rel (%p332) target = $region52
      $region51: #{tpu_custom_call.1} parent=47 // pred_region
        %s335 = smul.u32 14, %s17
        %p336 = scmp.lt.s32.totalorder %s335, 27
        %s337 = scalar_select %p336, %s335, 27
        %s338 = smul.addr %s337, 4
        %s339 = scalar_lea.vmem %s0, %s338
        %s340 = smul.u32 14, %s17
      $region52: #{tpu_custom_call.1} parent=47 // pred_fallthru
        _
      // Predicated region
      $region53: #{tpu_custom_call.1} parent=47 // pred_check
        %p341 = pneg %p63
      $region54: #{tpu_custom_call.1} parent=47 // pred_check_branch
        %343 = sbr.rel (%p341) target = $region56
      $region55: #{tpu_custom_call.1} parent=47 // pred_region
        %s344 = smul.u32 14, %s17
        %p345 = scmp.lt.s32.totalorder %s344, 27
        %s346 = scalar_select %p345, %s344, 27
        %s347 = smul.addr %s346, 4
        %s348 = scalar_lea.vmem %s1, %s347
        %s349 = smul.u32 14, %s17
      $region56: #{tpu_custom_call.1} parent=47 // pred_fallthru
        _
      // Predicated region
      $region57: #{tpu_custom_call.1} parent=47 // pred_check
        %p350 = pneg %p89
      $region58: #{tpu_custom_call.1} parent=47 // pred_check_branch
        %352 = sbr.rel (%p350) target = $region60
      $region59: #{tpu_custom_call.1} parent=47 // pred_region
        %s353 = smul.u32 14, %s17
        %p354 = scmp.lt.s32.totalorder %s353, 27
        %s355 = scalar_select %p354, %s353, 27
        %s356 = smul.addr %s355, 4
        %s357 = scalar_lea.vmem %s2, %s356
        %s358 = smul.u32 14, %s17
      $region60: #{tpu_custom_call.1} parent=47 // pred_fallthru
        _
    $region48: #{tpu_custom_call.1} parent=5 // pred_fallthru
      _
    %p359 = scmp.le.s32.totalorder 1, %s17
    %p360 = scmp.lt.s32.totalorder %s17, 3
    %p361 = pnand %p359, %p360
    %p362 = pneg %p361
    // Predicated region
    $region61: #{tpu_custom_call.1} parent=5 // pred_check
      _
    $region62: #{tpu_custom_call.1} parent=5 // pred_check_branch
      %364 = sbr.rel (%p361) target = $region64
    $region63: #{tpu_custom_call.1} parent=5 // pred_region
      %s365 = ssub.s32 %s17, 1
      %s366 = smul.u32 14, %s22
      %p367 = scmp.lt.s32.totalorder %s366, 27
      %s368 = scalar_select %p367, %s366, 27
      %s369 = smul.addr %s368, 4
      %s370 = scalar_lea.vmem %s0, %s369
      %p371 = pneg %p43
      %p372 = pneg %p40
      %s373 = smul.u32 14, %s22
      %p374 = scmp.lt.s32.totalorder %s373, 27
      %s375 = scalar_select %p374, %s373, 27
      %s376 = smul.addr %s375, 4
      %s377 = scalar_lea.vmem %s1, %s376
      %p378 = pneg %p69
      %p379 = pneg %p66
      %s380 = smul.u32 14, %s22
      %p381 = scmp.lt.s32.totalorder %s380, 27
      %s382 = scalar_select %p381, %s380, 27
      %s383 = smul.addr %s382, 4
      %s384 = scalar_lea.vmem %s2, %s383
      %p385 = pneg %p95
      %p386 = pneg %p92
      %p387 = pneg %p116
      %p388 = pneg %p113
      %p389 = pneg %p137
      %p390 = pneg %p134
      %p391 = pneg %p158
      %p392 = pneg %p155
      %p393 = pneg %p179
      %p394 = pneg %p176
      %p395 = pneg %p200
      %p396 = pneg %p197
      %p397 = pneg %p221
      %p398 = pneg %p218
      %p399 = pneg %p242
      %p400 = pneg %p239
      %p401 = pneg %p263
      %p402 = pneg %p260
      %p403 = pneg %p289
      %p404 = pneg %p286
      %s405 = smul.u32 14, %s22
      %p406 = scmp.lt.s32.totalorder %s405, 27
      %s407 = scalar_select %p406, %s405, 27
      %s408 = smul.addr %s407, 8
      %s409 = scalar_lea.vmem %s11, %s408
      %s410 = smul.u32 14, %s22
      %p411 = scmp.lt.s32.totalorder %s410, 27
      %s412 = scalar_select %p411, %s410, 27
      %s413 = smul.addr %s412, 4
      %s414 = scalar_lea.vmem %s0, %s413
      %s415 = smul.u32 14, %s22
      %s416 = smul.u32 14, %s22
      %p417 = scmp.lt.s32.totalorder %s416, 27
      %s418 = scalar_select %p417, %s416, 27
      %s419 = smul.addr %s418, 4
      %s420 = scalar_lea.vmem %s1, %s419
      %s421 = smul.u32 14, %s22
      %s422 = smul.u32 14, %s22
      %p423 = scmp.lt.s32.totalorder %s422, 27
      %s424 = scalar_select %p423, %s422, 27
      %s425 = smul.addr %s424, 4
      %s426 = scalar_lea.vmem %s2, %s425
      %s427 = smul.u32 14, %s22
      %s428 = smul.u32 14, %s22
      %p429 = scmp.lt.s32.totalorder %s428, 27
      %s430 = scalar_select %p429, %s428, 27
      %s431 = smul.addr %s430, 8
      %s432 = scalar_lea.vmem %s11, %s431
      %s433 = smul.u32 14, %s22
      %v435 = vld [vmem:[%s414] sm:$0xf]
      %v436 = vld [vmem:[%s414 + $0x4] sm:$0xf]
      %v437 = vld [vmem:[%s414 + $0x8] sm:$0xf]
      %v438 = vld [vmem:[%s414 + $0xc] sm:$0xf]
      %v439 = vld [vmem:[%s414 + $0x10] sm:$0xf]
      %v440 = vld [vmem:[%s414 + $0x14] sm:$0xf]
      %v441 = vld [vmem:[%s414 + $0x18] sm:$0xf]
      %v442 = vld [vmem:[%s414 + $0x1c] sm:$0xf]
      %v443 = vld [vmem:[%s414 + $0x20] sm:$0xf]
      %v444 = vld [vmem:[%s414 + $0x24] sm:$0xf]
      %v445 = vld [vmem:[%s414 + $0x28] sm:$0xf]
      %v446 = vld [vmem:[%s414 + $0x2c] sm:$0xf]
      %v447 = vld [vmem:[%s414 + $0x30] sm:$0xf]
      %v448 = vld [vmem:[%s414 + $0x34] sm:$0xf]
      %v449 = vld [vmem:[%s420] sm:$0xf]
      %v450 = vld [vmem:[%s420 + $0x4] sm:$0xf]
      %v451 = vld [vmem:[%s420 + $0x8] sm:$0xf]
      %v452 = vld [vmem:[%s420 + $0xc] sm:$0xf]
      %v453 = vld [vmem:[%s420 + $0x10] sm:$0xf]
      %v454 = vld [vmem:[%s420 + $0x14] sm:$0xf]
      %v455 = vld [vmem:[%s420 + $0x18] sm:$0xf]
      %v456 = vld [vmem:[%s420 + $0x1c] sm:$0xf]
      %v457 = vld [vmem:[%s420 + $0x20] sm:$0xf]
      %v458 = vld [vmem:[%s420 + $0x24] sm:$0xf]
      %v459 = vld [vmem:[%s420 + $0x28] sm:$0xf]
      %v460 = vld [vmem:[%s420 + $0x2c] sm:$0xf]
      %v461 = vld [vmem:[%s420 + $0x30] sm:$0xf]
      %v462 = vld [vmem:[%s420 + $0x34] sm:$0xf]
      %v463 = vld [vmem:[%s426] sm:$0xf]
      %v464 = vld [vmem:[%s426 + $0x4] sm:$0xf]
      %v465 = vld [vmem:[%s426 + $0x8] sm:$0xf]
      %v466 = vld [vmem:[%s426 + $0xc] sm:$0xf]
      %v467 = vld [vmem:[%s426 + $0x10] sm:$0xf]
      %v468 = vld [vmem:[%s426 + $0x14] sm:$0xf]
      %v469 = vld [vmem:[%s426 + $0x18] sm:$0xf]
      %v470 = vld [vmem:[%s426 + $0x1c] sm:$0xf]
      %v471 = vld [vmem:[%s426 + $0x20] sm:$0xf]
      %v472 = vld [vmem:[%s426 + $0x24] sm:$0xf]
      %v473 = vld [vmem:[%s426 + $0x28] sm:$0xf]
      %v474 = vld [vmem:[%s426 + $0x2c] sm:$0xf]
      %v475 = vld [vmem:[%s426 + $0x30] sm:$0xf]
      %v476 = vld [vmem:[%s426 + $0x34] sm:$0xf]
      %v477 = vld [vmem:[%s3] sm:$0xf]
      %v478 = vld [vmem:[%s3 + $0x4] sm:$0xf]
      %v479 = vld [vmem:[%s3 + $0x8] sm:$0xf]
      %v480 = vld [vmem:[%s3 + $0xc] sm:$0xf]
      %v481 = vld [vmem:[%s4] sm:$0x3]
      %v482 = vld [vmem:[%s5] sm:$0x1]
      %v484 = vlaneseq
      %v485 = vshrl.u32 %v484, 7
      %v486 = vsub.s32 0, %v485
      %v487 = vrot.slane %v482, %v486
      %v503 = vunpack.c.l.b16 %v435
      %v504 = vunpack.c.l.b16 %v436
      %v505 = vunpack.c.l.b16 %v437
      %v506 = vunpack.c.l.b16 %v438
      %v507 = vunpack.c.l.b16 %v439
      %v508 = vunpack.c.l.b16 %v440
      %v509 = vunpack.c.l.b16 %v441
      %v510 = vunpack.c.l.b16 %v442
      %v511 = vunpack.c.l.b16 %v443
      %v512 = vunpack.c.l.b16 %v444
      %v513 = vunpack.c.l.b16 %v445
      %v514 = vunpack.c.l.b16 %v446
      %v515 = vunpack.c.l.b16 %v447
      %v516 = vunpack.c.l.b16 %v448
      %v517 = vpack.c.b16 %v504, %v503
      %v518 = vpack.c.b16 %v506, %v505
      %v519 = vpack.c.b16 %v508, %v507
      %v520 = vpack.c.b16 %v510, %v509
      %v521 = vpack.c.b16 %v512, %v511
      %v522 = vpack.c.b16 %v514, %v513
      %v523 = vpack.c.b16 %v516, %v515
      %v528 = vunpack.c.l.b16 %v477
      %v529 = vunpack.c.l.b16 %v478
      %v530 = vunpack.c.l.b16 %v479
      %v531 = vunpack.c.l.b16 %v480
      %v532 = vpack.c.b16 %v529, %v528
      %v533 = vpack.c.b16 %v531, %v530
      %vm536 = vcmask 261120
      %v538 = vsel %vm536, %v517, 0
      %v541 = vsel %vm536, %v518, 0
      %v544 = vsel %vm536, %v519, 0
      %v547 = vsel %vm536, %v520, 0
      %v550 = vsel %vm536, %v521, 0
      %v553 = vsel %vm536, %v522, 0
      %v556 = vsel %vm536, %v523, 0
      %558 = vmatprep.subr.bf16.mxu0 0
      %559 = vmatpush1.bf16.msra.mxu0 0
      %560 = vmatprep.subr.bf16.mxu0 0
      %561 = vmatpush1.bf16.msra.mxu0 0
      %562 = vmatprep.subr.bf16.mxu0 0
      %563 = vmatpush1.bf16.msra.mxu0 0
      %564 = vmatprep.subr.bf16.mxu0 0
      %565 = vmatpush1.bf16.msra.mxu0 0
      %566 = vmatprep.subr.bf16.mxu0 0
      %567 = vmatpush1.bf16.msra.mxu0 0
      %568 = vmatprep.subr.bf16.mxu0 0
      %569 = vmatpush1.bf16.msra.mxu0 0
      %570 = vmatprep.subr.bf16.mxu0 0
      %571 = vmatpush1.bf16.msra.mxu0 %v533
      %572 = vmatprep.subr.bf16.mxu0 0
      %573 = vmatpush1.bf16.msra.mxu0 %v532
      %574 = vmatprep.subr.bf16.mxu0 0
      %575 = vmatpush2.bf16.msra.mxu0 0
      %576 = vmatprep.subr.bf16.mxu0 0
      %577 = vmatpush2.bf16.msra.mxu0 0
      %578 = vmatprep.subr.bf16.mxu0 0
      %579 = vmatpush2.bf16.msra.mxu0 0
      %580 = vmatprep.subr.bf16.mxu0 0
      %581 = vmatpush2.bf16.msra.mxu0 0
      %582 = vmatprep.subr.bf16.mxu0 0
      %583 = vmatpush2.bf16.msra.mxu0 0
      %584 = vmatprep.subr.bf16.mxu0 0
      %585 = vmatpush2.bf16.msra.mxu0 0
      %586 = vmatprep.subr.bf16.mxu0 0
      %587 = vmatpush2.bf16.msra.mxu0 0
      %588 = vmatprep.subr.bf16.mxu0 0
      %589 = vmatpush2.bf16.msra.mxu0 0
      %590 = vmatprep.mubr.bf16.mxu0 0
      %591 = vmatmul.mubr.bf16.gmra.mxu0 %v538
      %v592 = vpop.f32.mrf.mxu0
      %v593 = vadd.f32 %v487, %v592
      %v594 = vpop.f32.mrf.mxu0
      %v595 = vpop.f32.mrf.mxu0
      %v596 = vadd.f32 %v487, %v595
      %v597 = vpop.f32.mrf.mxu0
      %598 = vmatprep.mubr.bf16.mxu0 0
      %599 = vmatmul.mubr.bf16.gmra.mxu0 %v541
      %v600 = vpop.f32.mrf.mxu0
      %v601 = vadd.f32 %v487, %v600
      %v602 = vpop.f32.mrf.mxu0
      %v603 = vpop.f32.mrf.mxu0
      %v604 = vadd.f32 %v487, %v603
      %v605 = vpop.f32.mrf.mxu0
      %606 = vmatprep.mubr.bf16.mxu0 0
      %607 = vmatmul.mubr.bf16.gmra.mxu0 %v544
      %v608 = vpop.f32.mrf.mxu0
      %v609 = vadd.f32 %v487, %v608
      %v610 = vpop.f32.mrf.mxu0
      %v611 = vpop.f32.mrf.mxu0
      %v612 = vadd.f32 %v487, %v611
      %v613 = vpop.f32.mrf.mxu0
      %614 = vmatprep.mubr.bf16.mxu0 0
      %615 = vmatmul.mubr.bf16.gmra.mxu0 %v547
      %v616 = vpop.f32.mrf.mxu0
      %v617 = vadd.f32 %v487, %v616
      %v618 = vpop.f32.mrf.mxu0
      %v619 = vpop.f32.mrf.mxu0
      %v620 = vadd.f32 %v487, %v619
      %v621 = vpop.f32.mrf.mxu0
      %622 = vmatprep.mubr.bf16.mxu0 0
      %623 = vmatmul.mubr.bf16.gmra.mxu0 %v550
      %v624 = vpop.f32.mrf.mxu0
      %v625 = vadd.f32 %v487, %v624
      %v626 = vpop.f32.mrf.mxu0
      %v627 = vpop.f32.mrf.mxu0
      %v628 = vadd.f32 %v487, %v627
      %v629 = vpop.f32.mrf.mxu0
      %630 = vmatprep.mubr.bf16.mxu0 0
      %631 = vmatmul.mubr.bf16.gmra.mxu0 %v553
      %v632 = vpop.f32.mrf.mxu0
      %v633 = vadd.f32 %v487, %v632
      %v634 = vpop.f32.mrf.mxu0
      %v635 = vpop.f32.mrf.mxu0
      %v636 = vadd.f32 %v487, %v635
      %v637 = vpop.f32.mrf.mxu0
      %638 = vmatprep.mubr.bf16.mxu0 0
      %639 = vmatmul.mubr.bf16.gmra.mxu0 %v556
      %v640 = vpop.f32.mrf.mxu0
      %v641 = vadd.f32 %v487, %v640
      %v642 = vpop.f32.mrf.mxu0
      %v643 = vpop.f32.mrf.mxu0
      %v644 = vadd.f32 %v487, %v643
      %v645 = vpop.f32.mrf.mxu0
      %646 = vdwg.mxu0
      %v647 = vunpack.c.l.bf16 %v449
      %v648 = vunpack.c.l.bf16 %v450
      %v649 = vunpack.c.l.bf16 %v451
      %v650 = vunpack.c.l.bf16 %v452
      %v651 = vunpack.c.l.bf16 %v453
      %v652 = vunpack.c.l.bf16 %v454
      %v653 = vunpack.c.l.bf16 %v455
      %v654 = vunpack.c.l.bf16 %v456
      %v655 = vunpack.c.l.bf16 %v457
      %v656 = vunpack.c.l.bf16 %v458
      %v657 = vunpack.c.l.bf16 %v459
      %v658 = vunpack.c.l.bf16 %v460
      %v659 = vunpack.c.l.bf16 %v461
      %v660 = vunpack.c.l.bf16 %v462
      %662 = vset.pattern.permute.xlu0 0
      %663 = vperm.xlu0 %662, %v647
      %v664 = vpop.permute.xlu0 %663
      %667 = vset.pattern.permute.xlu0 0
      %668 = vperm.xlu0 %667, %v648
      %v669 = vpop.permute.xlu0 %668
      %672 = vset.pattern.permute.xlu0 0
      %673 = vperm.xlu0 %672, %v649
      %v674 = vpop.permute.xlu0 %673
      %677 = vset.pattern.permute.xlu0 0
      %678 = vperm.xlu0 %677, %v650
      %v679 = vpop.permute.xlu0 %678
      %682 = vset.pattern.permute.xlu0 0
      %683 = vperm.xlu0 %682, %v651
      %v684 = vpop.permute.xlu0 %683
      %687 = vset.pattern.permute.xlu0 0
      %688 = vperm.xlu0 %687, %v652
      %v689 = vpop.permute.xlu0 %688
      %692 = vset.pattern.permute.xlu0 0
      %693 = vperm.xlu0 %692, %v653
      %v694 = vpop.permute.xlu0 %693
      %697 = vset.pattern.permute.xlu0 0
      %698 = vperm.xlu0 %697, %v654
      %v699 = vpop.permute.xlu0 %698
      %702 = vset.pattern.permute.xlu0 0
      %703 = vperm.xlu0 %702, %v655
      %v704 = vpop.permute.xlu0 %703
      %707 = vset.pattern.permute.xlu0 0
      %708 = vperm.xlu0 %707, %v656
      %v709 = vpop.permute.xlu0 %708
      %712 = vset.pattern.permute.xlu0 0
      %713 = vperm.xlu0 %712, %v657
      %v714 = vpop.permute.xlu0 %713
      %717 = vset.pattern.permute.xlu0 0
      %718 = vperm.xlu0 %717, %v658
      %v719 = vpop.permute.xlu0 %718
      %722 = vset.pattern.permute.xlu0 0
      %723 = vperm.xlu0 %722, %v659
      %v724 = vpop.permute.xlu0 %723
      %727 = vset.pattern.permute.xlu0 0
      %728 = vperm.xlu0 %727, %v660
      %v729 = vpop.permute.xlu0 %728
      %v731 = vlaneseq
      %v732 = vshrl.u32 %v731, 7
      %v733 = vsub.s32 0, %v732
      %v734 = vrot.slane %v481, %v733
      %v735 = vmul.f32 %v664, %v734
      %v736 = vmul.f32 %v669, %v734
      %v737 = vmul.f32 %v674, %v734
      %v738 = vmul.f32 %v679, %v734
      %v739 = vmul.f32 %v684, %v734
      %v740 = vmul.f32 %v689, %v734
      %v741 = vmul.f32 %v694, %v734
      %v742 = vmul.f32 %v699, %v734
      %v743 = vmul.f32 %v704, %v734
      %v744 = vmul.f32 %v709, %v734
      %v745 = vmul.f32 %v714, %v734
      %v746 = vmul.f32 %v719, %v734
      %v747 = vmul.f32 %v724, %v734
      %v748 = vmul.f32 %v729, %v734
      %v749 = vadd.f32 %v593, %v735
      %v750 = vadd.f32 %v596, %v736
      %v751 = vadd.f32 %v601, %v737
      %v752 = vadd.f32 %v604, %v738
      %v753 = vadd.f32 %v609, %v739
      %v754 = vadd.f32 %v612, %v740
      %v755 = vadd.f32 %v617, %v741
      %v756 = vadd.f32 %v620, %v742
      %v757 = vadd.f32 %v625, %v743
      %v758 = vadd.f32 %v628, %v744
      %v759 = vadd.f32 %v633, %v745
      %v760 = vadd.f32 %v636, %v746
      %v761 = vadd.f32 %v641, %v747
      %v762 = vadd.f32 %v644, %v748
      %763 = vset.pattern.permute.xlu0 1
      %764 = vperm.xlu0 %763, %v647
      %v765 = vpop.permute.xlu0 %764
      %767 = vset.pattern.permute.xlu0 1
      %768 = vperm.xlu0 %767, %v648
      %v769 = vpop.permute.xlu0 %768
      %771 = vset.pattern.permute.xlu0 1
      %772 = vperm.xlu0 %771, %v649
      %v773 = vpop.permute.xlu0 %772
      %775 = vset.pattern.permute.xlu0 1
      %776 = vperm.xlu0 %775, %v650
      %v777 = vpop.permute.xlu0 %776
      %779 = vset.pattern.permute.xlu0 1
      %780 = vperm.xlu0 %779, %v651
      %v781 = vpop.permute.xlu0 %780
      %783 = vset.pattern.permute.xlu0 1
      %784 = vperm.xlu0 %783, %v652
      %v785 = vpop.permute.xlu0 %784
      %787 = vset.pattern.permute.xlu0 1
      %788 = vperm.xlu0 %787, %v653
      %v789 = vpop.permute.xlu0 %788
      %791 = vset.pattern.permute.xlu0 1
      %792 = vperm.xlu0 %791, %v654
      %v793 = vpop.permute.xlu0 %792
      %795 = vset.pattern.permute.xlu0 1
      %796 = vperm.xlu0 %795, %v655
      %v797 = vpop.permute.xlu0 %796
      %799 = vset.pattern.permute.xlu0 1
      %800 = vperm.xlu0 %799, %v656
      %v801 = vpop.permute.xlu0 %800
      %803 = vset.pattern.permute.xlu0 1
      %804 = vperm.xlu0 %803, %v657
      %v805 = vpop.permute.xlu0 %804
      %807 = vset.pattern.permute.xlu0 1
      %808 = vperm.xlu0 %807, %v658
      %v809 = vpop.permute.xlu0 %808
      %811 = vset.pattern.permute.xlu0 1
      %812 = vperm.xlu0 %811, %v659
      %v813 = vpop.permute.xlu0 %812
      %815 = vset.pattern.permute.xlu0 1
      %816 = vperm.xlu0 %815, %v660
      %v817 = vpop.permute.xlu0 %816
      %v819 = vlaneseq
      %v820 = vshrl.u32 %v819, 7
      %v821 = vsub.s32 1, %v820
      %v822 = vrot.slane %v481, %v821
      %v823 = vmul.f32 %v765, %v822
      %v824 = vmul.f32 %v769, %v822
      %v825 = vmul.f32 %v773, %v822
      %v826 = vmul.f32 %v777, %v822
      %v827 = vmul.f32 %v781, %v822
      %v828 = vmul.f32 %v785, %v822
      %v829 = vmul.f32 %v789, %v822
      %v830 = vmul.f32 %v793, %v822
      %v831 = vmul.f32 %v797, %v822
      %v832 = vmul.f32 %v801, %v822
      %v833 = vmul.f32 %v805, %v822
      %v834 = vmul.f32 %v809, %v822
      %v835 = vmul.f32 %v813, %v822
      %v836 = vmul.f32 %v817, %v822
      %v837 = vadd.f32 %v749, %v823
      %v838 = vadd.f32 %v750, %v824
      %v839 = vadd.f32 %v751, %v825
      %v840 = vadd.f32 %v752, %v826
      %v841 = vadd.f32 %v753, %v827
      %v842 = vadd.f32 %v754, %v828
      %v843 = vadd.f32 %v755, %v829
      %v844 = vadd.f32 %v756, %v830
      %v845 = vadd.f32 %v757, %v831
      %v846 = vadd.f32 %v758, %v832
      %v847 = vadd.f32 %v759, %v833
      %v848 = vadd.f32 %v760, %v834
      %v849 = vadd.f32 %v761, %v835
      %v850 = vadd.f32 %v762, %v836
      %v851 = vld [vmem:[%s6] sm:$0xf]
      %v852 = vld [vmem:[%s6 + $0x4] sm:$0xf]
      %v867 = vunpack.c.l.b16 %v463
      %v868 = vunpack.c.l.b16 %v464
      %v869 = vunpack.c.l.b16 %v465
      %v870 = vunpack.c.l.b16 %v466
      %v871 = vunpack.c.l.b16 %v467
      %v872 = vunpack.c.l.b16 %v468
      %v873 = vunpack.c.l.b16 %v469
      %v874 = vunpack.c.l.b16 %v470
      %v875 = vunpack.c.l.b16 %v471
      %v876 = vunpack.c.l.b16 %v472
      %v877 = vunpack.c.l.b16 %v473
      %v878 = vunpack.c.l.b16 %v474
      %v879 = vunpack.c.l.b16 %v475
      %v880 = vunpack.c.l.b16 %v476
      %v881 = vpack.c.b16 %v868, %v867
      %v882 = vpack.c.b16 %v870, %v869
      %v883 = vpack.c.b16 %v872, %v871
      %v884 = vpack.c.b16 %v874, %v873
      %v885 = vpack.c.b16 %v876, %v875
      %v886 = vpack.c.b16 %v878, %v877
      %v887 = vpack.c.b16 %v880, %v879
      %v890 = vunpack.c.l.b16 %v851
      %v891 = vunpack.c.l.b16 %v852
      %v892 = vpack.c.b16 %v891, %v890
      %vm894 = vcmask 130048
      %v896 = vsel %vm894, %v881, 0
      %v899 = vsel %vm894, %v882, 0
      %v902 = vsel %vm894, %v883, 0
      %v905 = vsel %vm894, %v884, 0
      %v908 = vsel %vm894, %v885, 0
      %v911 = vsel %vm894, %v886, 0
      %v914 = vsel %vm894, %v887, 0
      %916 = vmatprep.subr.bf16.mxu0 0
      %917 = vmatpush1.bf16.msra.mxu0 0
      %918 = vmatprep.subr.bf16.mxu0 0
      %919 = vmatpush1.bf16.msra.mxu0 0
      %920 = vmatprep.subr.bf16.mxu0 0
      %921 = vmatpush1.bf16.msra.mxu0 0
      %922 = vmatprep.subr.bf16.mxu0 0
      %923 = vmatpush1.bf16.msra.mxu0 0
      %924 = vmatprep.subr.bf16.mxu0 0
      %925 = vmatpush1.bf16.msra.mxu0 0
      %926 = vmatprep.subr.bf16.mxu0 0
      %927 = vmatpush1.bf16.msra.mxu0 0
      %928 = vmatprep.subr.bf16.mxu0 0
      %929 = vmatpush1.bf16.msra.mxu0 0
      %930 = vmatprep.subr.bf16.mxu0 0
      %931 = vmatpush1.bf16.msra.mxu0 %v892
      %932 = vmatprep.subr.bf16.mxu0 0
      %933 = vmatpush2.bf16.msra.mxu0 0
      %934 = vmatprep.subr.bf16.mxu0 0
      %935 = vmatpush2.bf16.msra.mxu0 0
      %936 = vmatprep.subr.bf16.mxu0 0
      %937 = vmatpush2.bf16.msra.mxu0 0
      %938 = vmatprep.subr.bf16.mxu0 0
      %939 = vmatpush2.bf16.msra.mxu0 0
      %940 = vmatprep.subr.bf16.mxu0 0
      %941 = vmatpush2.bf16.msra.mxu0 0
      %942 = vmatprep.subr.bf16.mxu0 0
      %943 = vmatpush2.bf16.msra.mxu0 0
      %944 = vmatprep.subr.bf16.mxu0 0
      %945 = vmatpush2.bf16.msra.mxu0 0
      %946 = vmatprep.subr.bf16.mxu0 0
      %947 = vmatpush2.bf16.msra.mxu0 0
      %948 = vmatprep.mubr.bf16.mxu0 0
      %949 = vmatmul.mubr.bf16.gmra.mxu0 %v896
      %v950 = vpop.f32.mrf.mxu0
      %v951 = vadd.f32 0.0, %v950
      %v952 = vpop.f32.mrf.mxu0
      %v953 = vpop.f32.mrf.mxu0
      %v954 = vadd.f32 0.0, %v953
      %v955 = vpop.f32.mrf.mxu0
      %956 = vmatprep.mubr.bf16.mxu0 0
      %957 = vmatmul.mubr.bf16.gmra.mxu0 %v899
      %v958 = vpop.f32.mrf.mxu0
      %v959 = vadd.f32 0.0, %v958
      %v960 = vpop.f32.mrf.mxu0
      %v961 = vpop.f32.mrf.mxu0
      %v962 = vadd.f32 0.0, %v961
      %v963 = vpop.f32.mrf.mxu0
      %964 = vmatprep.mubr.bf16.mxu0 0
      %965 = vmatmul.mubr.bf16.gmra.mxu0 %v902
      %v966 = vpop.f32.mrf.mxu0
      %v967 = vadd.f32 0.0, %v966
      %v968 = vpop.f32.mrf.mxu0
      %v969 = vpop.f32.mrf.mxu0
      %v970 = vadd.f32 0.0, %v969
      %v971 = vpop.f32.mrf.mxu0
      %972 = vmatprep.mubr.bf16.mxu0 0
      %973 = vmatmul.mubr.bf16.gmra.mxu0 %v905
      %v974 = vpop.f32.mrf.mxu0
      %v975 = vadd.f32 0.0, %v974
      %v976 = vpop.f32.mrf.mxu0
      %v977 = vpop.f32.mrf.mxu0
      %v978 = vadd.f32 0.0, %v977
      %v979 = vpop.f32.mrf.mxu0
      %980 = vmatprep.mubr.bf16.mxu0 0
      %981 = vmatmul.mubr.bf16.gmra.mxu0 %v908
      %v982 = vpop.f32.mrf.mxu0
      %v983 = vadd.f32 0.0, %v982
      %v984 = vpop.f32.mrf.mxu0
      %v985 = vpop.f32.mrf.mxu0
      %v986 = vadd.f32 0.0, %v985
      %v987 = vpop.f32.mrf.mxu0
      %988 = vmatprep.mubr.bf16.mxu0 0
      %989 = vmatmul.mubr.bf16.gmra.mxu0 %v911
      %v990 = vpop.f32.mrf.mxu0
      %v991 = vadd.f32 0.0, %v990
      %v992 = vpop.f32.mrf.mxu0
      %v993 = vpop.f32.mrf.mxu0
      %v994 = vadd.f32 0.0, %v993
      %v995 = vpop.f32.mrf.mxu0
      %996 = vmatprep.mubr.bf16.mxu0 0
      %997 = vmatmul.mubr.bf16.gmra.mxu0 %v914
      %v998 = vpop.f32.mrf.mxu0
      %v999 = vadd.f32 0.0, %v998
      %v1000 = vpop.f32.mrf.mxu0
      %v1001 = vpop.f32.mrf.mxu0
      %v1002 = vadd.f32 0.0, %v1001
      %v1003 = vpop.f32.mrf.mxu0
      %1004 = vdwg.mxu0
      %v1005 = vadd.f32 %v837, %v951
      %v1006 = vadd.f32 %v838, %v954
      %v1007 = vadd.f32 %v839, %v959
      %v1008 = vadd.f32 %v840, %v962
      %v1009 = vadd.f32 %v841, %v967
      %v1010 = vadd.f32 %v842, %v970
      %v1011 = vadd.f32 %v843, %v975
      %v1012 = vadd.f32 %v844, %v978
      %v1013 = vadd.f32 %v845, %v983
      %v1014 = vadd.f32 %v846, %v986
      %v1015 = vadd.f32 %v847, %v991
      %v1016 = vadd.f32 %v848, %v994
      %v1017 = vadd.f32 %v849, %v999
      %v1018 = vadd.f32 %v850, %v1002
      %v1019 = vmax.f32 %v1005, 0.0
      %v1020 = vmax.f32 %v1006, 0.0
      %v1021 = vmax.f32 %v1007, 0.0
      %v1022 = vmax.f32 %v1008, 0.0
      %v1023 = vmax.f32 %v1009, 0.0
      %v1024 = vmax.f32 %v1010, 0.0
      %v1025 = vmax.f32 %v1011, 0.0
      %v1026 = vmax.f32 %v1012, 0.0
      %v1027 = vmax.f32 %v1013, 0.0
      %v1028 = vmax.f32 %v1014, 0.0
      %v1029 = vmax.f32 %v1015, 0.0
      %v1030 = vmax.f32 %v1016, 0.0
      %v1031 = vmax.f32 %v1017, 0.0
      %v1032 = vmax.f32 %v1018, 0.0
      %v1033 = vld [vmem:[%s7] sm:$0xf]
      %v1034 = vld [vmem:[%s7 + $0x4] sm:$0xf]
      %v1035 = vld [vmem:[%s7 + $0x8] sm:$0xf]
      %v1036 = vld [vmem:[%s7 + $0xc] sm:$0xf]
      %v1037 = vld [vmem:[%s7 + $0x10] sm:$0xf]
      %v1038 = vld [vmem:[%s7 + $0x14] sm:$0xf]
      %v1039 = vld [vmem:[%s7 + $0x18] sm:$0xf]
      %v1040 = vld [vmem:[%s7 + $0x1c] sm:$0xf]
      %v1041 = vld [vmem:[%s7 + $0x20] sm:$0xf]
      %v1042 = vld [vmem:[%s7 + $0x24] sm:$0xf]
      %v1043 = vld [vmem:[%s7 + $0x28] sm:$0xf]
      %v1044 = vld [vmem:[%s7 + $0x2c] sm:$0xf]
      %v1045 = vld [vmem:[%s7 + $0x30] sm:$0xf]
      %v1046 = vld [vmem:[%s7 + $0x34] sm:$0xf]
      %v1047 = vld [vmem:[%s7 + $0x38] sm:$0xf]
      %v1048 = vld [vmem:[%s7 + $0x3c] sm:$0xf]
      %v1049 = vld [vmem:[%s8] sm:$0x1]
      %v1050 = vpack.c.bf16 %v1020, %v1019
      %v1051 = vpack.c.bf16 %v1022, %v1021
      %v1052 = vpack.c.bf16 %v1024, %v1023
      %v1053 = vpack.c.bf16 %v1026, %v1025
      %v1054 = vpack.c.bf16 %v1028, %v1027
      %v1055 = vpack.c.bf16 %v1030, %v1029
      %v1056 = vpack.c.bf16 %v1032, %v1031
      %v1058 = vlaneseq
      %v1059 = vshrl.u32 %v1058, 7
      %v1060 = vsub.s32 0, %v1059
      %v1061 = vrot.slane %v1049, %v1060
      %v1079 = vunpack.c.l.b16 %v1033
      %v1080 = vunpack.c.l.b16 %v1034
      %v1081 = vunpack.c.l.b16 %v1035
      %v1082 = vunpack.c.l.b16 %v1036
      %v1083 = vunpack.c.l.b16 %v1037
      %v1084 = vunpack.c.l.b16 %v1038
      %v1085 = vunpack.c.l.b16 %v1039
      %v1086 = vunpack.c.l.b16 %v1040
      %v1087 = vunpack.c.l.b16 %v1041
      %v1088 = vunpack.c.l.b16 %v1042
      %v1089 = vunpack.c.l.b16 %v1043
      %v1090 = vunpack.c.l.b16 %v1044
      %v1091 = vunpack.c.l.b16 %v1045
      %v1092 = vunpack.c.l.b16 %v1046
      %v1093 = vunpack.c.l.b16 %v1047
      %v1094 = vunpack.c.l.b16 %v1048
      %v1095 = vpack.c.b16 %v1080, %v1079
      %v1096 = vpack.c.b16 %v1082, %v1081
      %v1097 = vpack.c.b16 %v1084, %v1083
      %v1098 = vpack.c.b16 %v1086, %v1085
      %v1099 = vpack.c.b16 %v1088, %v1087
      %v1100 = vpack.c.b16 %v1090, %v1089
      %v1101 = vpack.c.b16 %v1092, %v1091
      %v1102 = vpack.c.b16 %v1094, %v1093
      %1111 = vmatprep.subr.bf16.mxu0 0
      %1112 = vmatpush1.bf16.msra.mxu0 %v1102
      %1113 = vmatprep.subr.bf16.mxu0 0
      %1114 = vmatpush1.bf16.msra.mxu0 %v1101
      %1115 = vmatprep.subr.bf16.mxu0 0
      %1116 = vmatpush1.bf16.msra.mxu0 %v1100
      %1117 = vmatprep.subr.bf16.mxu0 0
      %1118 = vmatpush1.bf16.msra.mxu0 %v1099
      %1119 = vmatprep.subr.bf16.mxu0 0
      %1120 = vmatpush1.bf16.msra.mxu0 %v1098
      %1121 = vmatprep.subr.bf16.mxu0 0
      %1122 = vmatpush1.bf16.msra.mxu0 %v1097
      %1123 = vmatprep.subr.bf16.mxu0 0
      %1124 = vmatpush1.bf16.msra.mxu0 %v1096
      %1125 = vmatprep.subr.bf16.mxu0 0
      %1126 = vmatpush1.bf16.msra.mxu0 %v1095
      %1127 = vmatprep.subr.bf16.mxu0 0
      %1128 = vmatpush2.bf16.msra.mxu0 0
      %1129 = vmatprep.subr.bf16.mxu0 0
      %1130 = vmatpush2.bf16.msra.mxu0 0
      %1131 = vmatprep.subr.bf16.mxu0 0
      %1132 = vmatpush2.bf16.msra.mxu0 0
      %1133 = vmatprep.subr.bf16.mxu0 0
      %1134 = vmatpush2.bf16.msra.mxu0 0
      %1135 = vmatprep.subr.bf16.mxu0 0
      %1136 = vmatpush2.bf16.msra.mxu0 0
      %1137 = vmatprep.subr.bf16.mxu0 0
      %1138 = vmatpush2.bf16.msra.mxu0 0
      %1139 = vmatprep.subr.bf16.mxu0 0
      %1140 = vmatpush2.bf16.msra.mxu0 0
      %1141 = vmatprep.subr.bf16.mxu0 0
      %1142 = vmatpush2.bf16.msra.mxu0 0
      %1143 = vmatprep.mubr.bf16.mxu0 0
      %1144 = vmatmul.mubr.bf16.gmra.mxu0 %v1050
      %v1145 = vpop.f32.mrf.mxu0
      %v1146 = vadd.f32 %v1061, %v1145
      %v1147 = vpop.f32.mrf.mxu0
      %v1148 = vpop.f32.mrf.mxu0
      %v1149 = vadd.f32 %v1061, %v1148
      %v1150 = vpop.f32.mrf.mxu0
      %1151 = vmatprep.mubr.bf16.mxu0 0
      %1152 = vmatmul.mubr.bf16.gmra.mxu0 %v1051
      %v1153 = vpop.f32.mrf.mxu0
      %v1154 = vadd.f32 %v1061, %v1153
      %v1155 = vpop.f32.mrf.mxu0
      %v1156 = vpop.f32.mrf.mxu0
      %v1157 = vadd.f32 %v1061, %v1156
      %v1158 = vpop.f32.mrf.mxu0
      %1159 = vmatprep.mubr.bf16.mxu0 0
      %1160 = vmatmul.mubr.bf16.gmra.mxu0 %v1052
      %v1161 = vpop.f32.mrf.mxu0
      %v1162 = vadd.f32 %v1061, %v1161
      %v1163 = vpop.f32.mrf.mxu0
      %v1164 = vpop.f32.mrf.mxu0
      %v1165 = vadd.f32 %v1061, %v1164
      %v1166 = vpop.f32.mrf.mxu0
      %1167 = vmatprep.mubr.bf16.mxu0 0
      %1168 = vmatmul.mubr.bf16.gmra.mxu0 %v1053
      %v1169 = vpop.f32.mrf.mxu0
      %v1170 = vadd.f32 %v1061, %v1169
      %v1171 = vpop.f32.mrf.mxu0
      %v1172 = vpop.f32.mrf.mxu0
      %v1173 = vadd.f32 %v1061, %v1172
      %v1174 = vpop.f32.mrf.mxu0
      %1175 = vmatprep.mubr.bf16.mxu0 0
      %1176 = vmatmul.mubr.bf16.gmra.mxu0 %v1054
      %v1177 = vpop.f32.mrf.mxu0
      %v1178 = vadd.f32 %v1061, %v1177
      %v1179 = vpop.f32.mrf.mxu0
      %v1180 = vpop.f32.mrf.mxu0
      %v1181 = vadd.f32 %v1061, %v1180
      %v1182 = vpop.f32.mrf.mxu0
      %1183 = vmatprep.mubr.bf16.mxu0 0
      %1184 = vmatmul.mubr.bf16.gmra.mxu0 %v1055
      %v1185 = vpop.f32.mrf.mxu0
      %v1186 = vadd.f32 %v1061, %v1185
      %v1187 = vpop.f32.mrf.mxu0
      %v1188 = vpop.f32.mrf.mxu0
      %v1189 = vadd.f32 %v1061, %v1188
      %v1190 = vpop.f32.mrf.mxu0
      %1191 = vmatprep.mubr.bf16.mxu0 0
      %1192 = vmatmul.mubr.bf16.gmra.mxu0 %v1056
      %v1193 = vpop.f32.mrf.mxu0
      %v1194 = vadd.f32 %v1061, %v1193
      %v1195 = vpop.f32.mrf.mxu0
      %v1196 = vpop.f32.mrf.mxu0
      %v1197 = vadd.f32 %v1061, %v1196
      %v1198 = vpop.f32.mrf.mxu0
      %1199 = vdwg.mxu0
      %v1200 = vmax.f32 %v1146, 0.0
      %v1201 = vmax.f32 %v1149, 0.0
      %v1202 = vmax.f32 %v1154, 0.0
      %v1203 = vmax.f32 %v1157, 0.0
      %v1204 = vmax.f32 %v1162, 0.0
      %v1205 = vmax.f32 %v1165, 0.0
      %v1206 = vmax.f32 %v1170, 0.0
      %v1207 = vmax.f32 %v1173, 0.0
      %v1208 = vmax.f32 %v1178, 0.0
      %v1209 = vmax.f32 %v1181, 0.0
      %v1210 = vmax.f32 %v1186, 0.0
      %v1211 = vmax.f32 %v1189, 0.0
      %v1212 = vmax.f32 %v1194, 0.0
      %v1213 = vmax.f32 %v1197, 0.0
      %v1214 = vld [vmem:[%s9] sm:$0xf]
      %v1215 = vld [vmem:[%s9 + $0x4] sm:$0xf]
      %v1216 = vld [vmem:[%s9 + $0x8] sm:$0xf]
      %v1217 = vld [vmem:[%s9 + $0xc] sm:$0xf]
      %v1218 = vld [vmem:[%s9 + $0x10] sm:$0xf]
      %v1219 = vld [vmem:[%s9 + $0x14] sm:$0xf]
      %v1220 = vld [vmem:[%s9 + $0x18] sm:$0xf]
      %v1221 = vld [vmem:[%s9 + $0x1c] sm:$0xf]
      %v1222 = vld [vmem:[%s9 + $0x20] sm:$0xf]
      %v1223 = vld [vmem:[%s9 + $0x24] sm:$0xf]
      %v1224 = vld [vmem:[%s9 + $0x28] sm:$0xf]
      %v1225 = vld [vmem:[%s9 + $0x2c] sm:$0xf]
      %v1226 = vld [vmem:[%s9 + $0x30] sm:$0xf]
      %v1227 = vld [vmem:[%s9 + $0x34] sm:$0xf]
      %v1228 = vld [vmem:[%s9 + $0x38] sm:$0xf]
      %v1229 = vld [vmem:[%s9 + $0x3c] sm:$0xf]
      %v1230 = vld [vmem:[%s10] sm:$0x1]
      %v1231 = vpack.c.bf16 %v1201, %v1200
      %v1232 = vpack.c.bf16 %v1203, %v1202
      %v1233 = vpack.c.bf16 %v1205, %v1204
      %v1234 = vpack.c.bf16 %v1207, %v1206
      %v1235 = vpack.c.bf16 %v1209, %v1208
      %v1236 = vpack.c.bf16 %v1211, %v1210
      %v1237 = vpack.c.bf16 %v1213, %v1212
      %v1239 = vlaneseq
      %v1240 = vshrl.u32 %v1239, 7
      %v1241 = vsub.s32 0, %v1240
      %v1242 = vrot.slane %v1230, %v1241
      %v1260 = vunpack.c.l.b16 %v1214
      %v1261 = vunpack.c.l.b16 %v1215
      %v1262 = vunpack.c.l.b16 %v1216
      %v1263 = vunpack.c.l.b16 %v1217
      %v1264 = vunpack.c.l.b16 %v1218
      %v1265 = vunpack.c.l.b16 %v1219
      %v1266 = vunpack.c.l.b16 %v1220
      %v1267 = vunpack.c.l.b16 %v1221
      %v1268 = vunpack.c.l.b16 %v1222
      %v1269 = vunpack.c.l.b16 %v1223
      %v1270 = vunpack.c.l.b16 %v1224
      %v1271 = vunpack.c.l.b16 %v1225
      %v1272 = vunpack.c.l.b16 %v1226
      %v1273 = vunpack.c.l.b16 %v1227
      %v1274 = vunpack.c.l.b16 %v1228
      %v1275 = vunpack.c.l.b16 %v1229
      %v1276 = vpack.c.b16 %v1261, %v1260
      %v1277 = vpack.c.b16 %v1263, %v1262
      %v1278 = vpack.c.b16 %v1265, %v1264
      %v1279 = vpack.c.b16 %v1267, %v1266
      %v1280 = vpack.c.b16 %v1269, %v1268
      %v1281 = vpack.c.b16 %v1271, %v1270
      %v1282 = vpack.c.b16 %v1273, %v1272
      %v1283 = vpack.c.b16 %v1275, %v1274
      %1292 = vmatprep.subr.bf16.mxu0 0
      %1293 = vmatpush1.bf16.msra.mxu0 %v1283
      %1294 = vmatprep.subr.bf16.mxu0 0
      %1295 = vmatpush1.bf16.msra.mxu0 %v1282
      %1296 = vmatprep.subr.bf16.mxu0 0
      %1297 = vmatpush1.bf16.msra.mxu0 %v1281
      %1298 = vmatprep.subr.bf16.mxu0 0
      %1299 = vmatpush1.bf16.msra.mxu0 %v1280
      %1300 = vmatprep.subr.bf16.mxu0 0
      %1301 = vmatpush1.bf16.msra.mxu0 %v1279
      %1302 = vmatprep.subr.bf16.mxu0 0
      %1303 = vmatpush1.bf16.msra.mxu0 %v1278
      %1304 = vmatprep.subr.bf16.mxu0 0
      %1305 = vmatpush1.bf16.msra.mxu0 %v1277
      %1306 = vmatprep.subr.bf16.mxu0 0
      %1307 = vmatpush1.bf16.msra.mxu0 %v1276
      %1308 = vmatprep.subr.bf16.mxu0 0
      %1309 = vmatpush2.bf16.msra.mxu0 0
      %1310 = vmatprep.subr.bf16.mxu0 0
      %1311 = vmatpush2.bf16.msra.mxu0 0
      %1312 = vmatprep.subr.bf16.mxu0 0
      %1313 = vmatpush2.bf16.msra.mxu0 0
      %1314 = vmatprep.subr.bf16.mxu0 0
      %1315 = vmatpush2.bf16.msra.mxu0 0
      %1316 = vmatprep.subr.bf16.mxu0 0
      %1317 = vmatpush2.bf16.msra.mxu0 0
      %1318 = vmatprep.subr.bf16.mxu0 0
      %1319 = vmatpush2.bf16.msra.mxu0 0
      %1320 = vmatprep.subr.bf16.mxu0 0
      %1321 = vmatpush2.bf16.msra.mxu0 0
      %1322 = vmatprep.subr.bf16.mxu0 0
      %1323 = vmatpush2.bf16.msra.mxu0 0
      %1324 = vmatprep.mubr.bf16.mxu0 0
      %1325 = vmatmul.mubr.bf16.gmra.mxu0 %v1231
      %v1326 = vpop.f32.mrf.mxu0
      %v1327 = vadd.f32 %v1242, %v1326
      %v1328 = vpop.f32.mrf.mxu0
      %v1329 = vpop.f32.mrf.mxu0
      %v1330 = vadd.f32 %v1242, %v1329
      %v1331 = vpop.f32.mrf.mxu0
      %1332 = vmatprep.mubr.bf16.mxu0 0
      %1333 = vmatmul.mubr.bf16.gmra.mxu0 %v1232
      %v1334 = vpop.f32.mrf.mxu0
      %v1335 = vadd.f32 %v1242, %v1334
      %v1336 = vpop.f32.mrf.mxu0
      %v1337 = vpop.f32.mrf.mxu0
      %v1338 = vadd.f32 %v1242, %v1337
      %v1339 = vpop.f32.mrf.mxu0
      %1340 = vmatprep.mubr.bf16.mxu0 0
      %1341 = vmatmul.mubr.bf16.gmra.mxu0 %v1233
      %v1342 = vpop.f32.mrf.mxu0
      %v1343 = vadd.f32 %v1242, %v1342
      %v1344 = vpop.f32.mrf.mxu0
      %v1345 = vpop.f32.mrf.mxu0
      %v1346 = vadd.f32 %v1242, %v1345
      %v1347 = vpop.f32.mrf.mxu0
      %1348 = vmatprep.mubr.bf16.mxu0 0
      %1349 = vmatmul.mubr.bf16.gmra.mxu0 %v1234
      %v1350 = vpop.f32.mrf.mxu0
      %v1351 = vadd.f32 %v1242, %v1350
      %v1352 = vpop.f32.mrf.mxu0
      %v1353 = vpop.f32.mrf.mxu0
      %v1354 = vadd.f32 %v1242, %v1353
      %v1355 = vpop.f32.mrf.mxu0
      %1356 = vmatprep.mubr.bf16.mxu0 0
      %1357 = vmatmul.mubr.bf16.gmra.mxu0 %v1235
      %v1358 = vpop.f32.mrf.mxu0
      %v1359 = vadd.f32 %v1242, %v1358
      %v1360 = vpop.f32.mrf.mxu0
      %v1361 = vpop.f32.mrf.mxu0
      %v1362 = vadd.f32 %v1242, %v1361
      %v1363 = vpop.f32.mrf.mxu0
      %1364 = vmatprep.mubr.bf16.mxu0 0
      %1365 = vmatmul.mubr.bf16.gmra.mxu0 %v1236
      %v1366 = vpop.f32.mrf.mxu0
      %v1367 = vadd.f32 %v1242, %v1366
      %v1368 = vpop.f32.mrf.mxu0
      %v1369 = vpop.f32.mrf.mxu0
      %v1370 = vadd.f32 %v1242, %v1369
      %v1371 = vpop.f32.mrf.mxu0
      %1372 = vmatprep.mubr.bf16.mxu0 0
      %1373 = vmatmul.mubr.bf16.gmra.mxu0 %v1237
      %v1374 = vpop.f32.mrf.mxu0
      %v1375 = vadd.f32 %v1242, %v1374
      %v1376 = vpop.f32.mrf.mxu0
      %v1377 = vpop.f32.mrf.mxu0
      %v1378 = vadd.f32 %v1242, %v1377
      %v1379 = vpop.f32.mrf.mxu0
      %1380 = vdwg.mxu0
      %v1381 = vlaneseq
      %v1382 = vand.u32 %v1381, 127
      %v1383 = vmax.f32 %v1327, 0.0
      %v1384 = vmax.f32 %v1330, 0.0
      %v1385 = vmax.f32 %v1335, 0.0
      %v1386 = vmax.f32 %v1338, 0.0
      %v1387 = vmax.f32 %v1343, 0.0
      %v1388 = vmax.f32 %v1346, 0.0
      %v1389 = vmax.f32 %v1351, 0.0
      %v1390 = vmax.f32 %v1354, 0.0
      %v1391 = vmax.f32 %v1359, 0.0
      %v1392 = vmax.f32 %v1362, 0.0
      %v1393 = vmax.f32 %v1367, 0.0
      %v1394 = vmax.f32 %v1370, 0.0
      %v1395 = vmax.f32 %v1375, 0.0
      %v1396 = vmax.f32 %v1378, 0.0
      %vm1397 = vcmp.ne.f32.partialorder %v1327, %v1327
      %vm1398 = vcmp.ne.f32.partialorder %v1330, %v1330
      %vm1399 = vcmp.ne.f32.partialorder %v1335, %v1335
      %vm1400 = vcmp.ne.f32.partialorder %v1338, %v1338
      %vm1401 = vcmp.ne.f32.partialorder %v1343, %v1343
      %vm1402 = vcmp.ne.f32.partialorder %v1346, %v1346
      %vm1403 = vcmp.ne.f32.partialorder %v1351, %v1351
      %vm1404 = vcmp.ne.f32.partialorder %v1354, %v1354
      %vm1405 = vcmp.ne.f32.partialorder %v1359, %v1359
      %vm1406 = vcmp.ne.f32.partialorder %v1362, %v1362
      %vm1407 = vcmp.ne.f32.partialorder %v1367, %v1367
      %vm1408 = vcmp.ne.f32.partialorder %v1370, %v1370
      %vm1409 = vcmp.ne.f32.partialorder %v1375, %v1375
      %vm1410 = vcmp.ne.f32.partialorder %v1378, %v1378
      %v1411 = vadd.f32 %v1327, 0.0
      %v1412 = vadd.f32 %v1330, 0.0
      %v1413 = vadd.f32 %v1335, 0.0
      %v1414 = vadd.f32 %v1338, 0.0
      %v1415 = vadd.f32 %v1343, 0.0
      %v1416 = vadd.f32 %v1346, 0.0
      %v1417 = vadd.f32 %v1351, 0.0
      %v1418 = vadd.f32 %v1354, 0.0
      %v1419 = vadd.f32 %v1359, 0.0
      %v1420 = vadd.f32 %v1362, 0.0
      %v1421 = vadd.f32 %v1367, 0.0
      %v1422 = vadd.f32 %v1370, 0.0
      %v1423 = vadd.f32 %v1375, 0.0
      %v1424 = vadd.f32 %v1378, 0.0
      %v1425 = vand.u32 2147483647, %v1327
      %v1426 = vand.u32 2147483647, %v1330
      %v1427 = vand.u32 2147483647, %v1335
      %v1428 = vand.u32 2147483647, %v1338
      %v1429 = vand.u32 2147483647, %v1343
      %v1430 = vand.u32 2147483647, %v1346
      %v1431 = vand.u32 2147483647, %v1351
      %v1432 = vand.u32 2147483647, %v1354
      %v1433 = vand.u32 2147483647, %v1359
      %v1434 = vand.u32 2147483647, %v1362
      %v1435 = vand.u32 2147483647, %v1367
      %v1436 = vand.u32 2147483647, %v1370
      %v1437 = vand.u32 2147483647, %v1375
      %v1438 = vand.u32 2147483647, %v1378
      %v1439 = vsub.f32 0.0, %v1425
      %v1440 = vsub.f32 0.0, %v1426
      %v1441 = vsub.f32 0.0, %v1427
      %v1442 = vsub.f32 0.0, %v1428
      %v1443 = vsub.f32 0.0, %v1429
      %v1444 = vsub.f32 0.0, %v1430
      %v1445 = vsub.f32 0.0, %v1431
      %v1446 = vsub.f32 0.0, %v1432
      %v1447 = vsub.f32 0.0, %v1433
      %v1448 = vsub.f32 0.0, %v1434
      %v1449 = vsub.f32 0.0, %v1435
      %v1450 = vsub.f32 0.0, %v1436
      %v1451 = vsub.f32 0.0, %v1437
      %v1452 = vsub.f32 0.0, %v1438
      %v1453 = vmul.f32 %v1439, 1.442695
      %v1454 = vpow.pop %v1453
      %v1455 = vmul.f32 %v1440, 1.442695
      %v1456 = vpow.pop %v1455
      %v1457 = vmul.f32 %v1441, 1.442695
      %v1458 = vpow.pop %v1457
      %v1459 = vmul.f32 %v1442, 1.442695
      %v1460 = vpow.pop %v1459
      %v1461 = vmul.f32 %v1443, 1.442695
      %v1462 = vpow.pop %v1461
      %v1463 = vmul.f32 %v1444, 1.442695
      %v1464 = vpow.pop %v1463
      %v1465 = vmul.f32 %v1445, 1.442695
      %v1466 = vpow.pop %v1465
      %v1467 = vmul.f32 %v1446, 1.442695
      %v1468 = vpow.pop %v1467
      %v1469 = vmul.f32 %v1447, 1.442695
      %v1470 = vpow.pop %v1469
      %v1471 = vmul.f32 %v1448, 1.442695
      %v1472 = vpow.pop %v1471
      %v1473 = vmul.f32 %v1449, 1.442695
      %v1474 = vpow.pop %v1473
      %v1475 = vmul.f32 %v1450, 1.442695
      %v1476 = vpow.pop %v1475
      %v1477 = vmul.f32 %v1451, 1.442695
      %v1478 = vpow.pop %v1477
      %v1479 = vmul.f32 %v1452, 1.442695
      %v1480 = vpow.pop %v1479
      %v1481 = vadd.f32 %v1454, 1.0
      %v1482 = vlog2.pop %v1481
      %v1483 = vmul.f32 %v1482, 0.6931472
      %v1484 = vmul.f32 -0.5, %v1454
      %v1485 = vadd.f32 %v1484, 1.0
      %v1486 = vmul.f32 %v1485, %v1454
      %v1487 = vand.u32 2147483647, %v1454
      %vm1488 = vcmp.lt.f32.partialorder %v1487, 0.0004427343
      %v1489 = vsel %vm1488, %v1486, %v1483
      %v1490 = vadd.f32 %v1456, 1.0
      %v1491 = vlog2.pop %v1490
      %v1492 = vmul.f32 %v1491, 0.6931472
      %v1493 = vmul.f32 -0.5, %v1456
      %v1494 = vadd.f32 %v1493, 1.0
      %v1495 = vmul.f32 %v1494, %v1456
      %v1496 = vand.u32 2147483647, %v1456
      %vm1497 = vcmp.lt.f32.partialorder %v1496, 0.0004427343
      %v1498 = vsel %vm1497, %v1495, %v1492
      %v1499 = vadd.f32 %v1458, 1.0
      %v1500 = vlog2.pop %v1499
      %v1501 = vmul.f32 %v1500, 0.6931472
      %v1502 = vmul.f32 -0.5, %v1458
      %v1503 = vadd.f32 %v1502, 1.0
      %v1504 = vmul.f32 %v1503, %v1458
      %v1505 = vand.u32 2147483647, %v1458
      %vm1506 = vcmp.lt.f32.partialorder %v1505, 0.0004427343
      %v1507 = vsel %vm1506, %v1504, %v1501
      %v1508 = vadd.f32 %v1460, 1.0
      %v1509 = vlog2.pop %v1508
      %v1510 = vmul.f32 %v1509, 0.6931472
      %v1511 = vmul.f32 -0.5, %v1460
      %v1512 = vadd.f32 %v1511, 1.0
      %v1513 = vmul.f32 %v1512, %v1460
      %v1514 = vand.u32 2147483647, %v1460
      %vm1515 = vcmp.lt.f32.partialorder %v1514, 0.0004427343
      %v1516 = vsel %vm1515, %v1513, %v1510
      %v1517 = vadd.f32 %v1462, 1.0
      %v1518 = vlog2.pop %v1517
      %v1519 = vmul.f32 %v1518, 0.6931472
      %v1520 = vmul.f32 -0.5, %v1462
      %v1521 = vadd.f32 %v1520, 1.0
      %v1522 = vmul.f32 %v1521, %v1462
      %v1523 = vand.u32 2147483647, %v1462
      %vm1524 = vcmp.lt.f32.partialorder %v1523, 0.0004427343
      %v1525 = vsel %vm1524, %v1522, %v1519
      %v1526 = vadd.f32 %v1464, 1.0
      %v1527 = vlog2.pop %v1526
      %v1528 = vmul.f32 %v1527, 0.6931472
      %v1529 = vmul.f32 -0.5, %v1464
      %v1530 = vadd.f32 %v1529, 1.0
      %v1531 = vmul.f32 %v1530, %v1464
      %v1532 = vand.u32 2147483647, %v1464
      %vm1533 = vcmp.lt.f32.partialorder %v1532, 0.0004427343
      %v1534 = vsel %vm1533, %v1531, %v1528
      %v1535 = vadd.f32 %v1466, 1.0
      %v1536 = vlog2.pop %v1535
      %v1537 = vmul.f32 %v1536, 0.6931472
      %v1538 = vmul.f32 -0.5, %v1466
      %v1539 = vadd.f32 %v1538, 1.0
      %v1540 = vmul.f32 %v1539, %v1466
      %v1541 = vand.u32 2147483647, %v1466
      %vm1542 = vcmp.lt.f32.partialorder %v1541, 0.0004427343
      %v1543 = vsel %vm1542, %v1540, %v1537
      %v1544 = vadd.f32 %v1468, 1.0
      %v1545 = vlog2.pop %v1544
      %v1546 = vmul.f32 %v1545, 0.6931472
      %v1547 = vmul.f32 -0.5, %v1468
      %v1548 = vadd.f32 %v1547, 1.0
      %v1549 = vmul.f32 %v1548, %v1468
      %v1550 = vand.u32 2147483647, %v1468
      %vm1551 = vcmp.lt.f32.partialorder %v1550, 0.0004427343
      %v1552 = vsel %vm1551, %v1549, %v1546
      %v1553 = vadd.f32 %v1470, 1.0
      %v1554 = vlog2.pop %v1553
      %v1555 = vmul.f32 %v1554, 0.6931472
      %v1556 = vmul.f32 -0.5, %v1470
      %v1557 = vadd.f32 %v1556, 1.0
      %v1558 = vmul.f32 %v1557, %v1470
      %v1559 = vand.u32 2147483647, %v1470
      %vm1560 = vcmp.lt.f32.partialorder %v1559, 0.0004427343
      %v1561 = vsel %vm1560, %v1558, %v1555
      %v1562 = vadd.f32 %v1472, 1.0
      %v1563 = vlog2.pop %v1562
      %v1564 = vmul.f32 %v1563, 0.6931472
      %v1565 = vmul.f32 -0.5, %v1472
      %v1566 = vadd.f32 %v1565, 1.0
      %v1567 = vmul.f32 %v1566, %v1472
      %v1568 = vand.u32 2147483647, %v1472
      %vm1569 = vcmp.lt.f32.partialorder %v1568, 0.0004427343
      %v1570 = vsel %vm1569, %v1567, %v1564
      %v1571 = vadd.f32 %v1474, 1.0
      %v1572 = vlog2.pop %v1571
      %v1573 = vmul.f32 %v1572, 0.6931472
      %v1574 = vmul.f32 -0.5, %v1474
      %v1575 = vadd.f32 %v1574, 1.0
      %v1576 = vmul.f32 %v1575, %v1474
      %v1577 = vand.u32 2147483647, %v1474
      %vm1578 = vcmp.lt.f32.partialorder %v1577, 0.0004427343
      %v1579 = vsel %vm1578, %v1576, %v1573
      %v1580 = vadd.f32 %v1476, 1.0
      %v1581 = vlog2.pop %v1580
      %v1582 = vmul.f32 %v1581, 0.6931472
      %v1583 = vmul.f32 -0.5, %v1476
      %v1584 = vadd.f32 %v1583, 1.0
      %v1585 = vmul.f32 %v1584, %v1476
      %v1586 = vand.u32 2147483647, %v1476
      %vm1587 = vcmp.lt.f32.partialorder %v1586, 0.0004427343
      %v1588 = vsel %vm1587, %v1585, %v1582
      %v1589 = vadd.f32 %v1478, 1.0
      %v1590 = vlog2.pop %v1589
      %v1591 = vmul.f32 %v1590, 0.6931472
      %v1592 = vmul.f32 -0.5, %v1478
      %v1593 = vadd.f32 %v1592, 1.0
      %v1594 = vmul.f32 %v1593, %v1478
      %v1595 = vand.u32 2147483647, %v1478
      %vm1596 = vcmp.lt.f32.partialorder %v1595, 0.0004427343
      %v1597 = vsel %vm1596, %v1594, %v1591
      %v1598 = vadd.f32 %v1480, 1.0
      %v1599 = vlog2.pop %v1598
      %v1600 = vmul.f32 %v1599, 0.6931472
      %v1601 = vmul.f32 -0.5, %v1480
      %v1602 = vadd.f32 %v1601, 1.0
      %v1603 = vmul.f32 %v1602, %v1480
      %v1604 = vand.u32 2147483647, %v1480
      %vm1605 = vcmp.lt.f32.partialorder %v1604, 0.0004427343
      %v1606 = vsel %vm1605, %v1603, %v1600
      %v1607 = vadd.f32 %v1383, %v1489
      %v1608 = vadd.f32 %v1384, %v1498
      %v1609 = vadd.f32 %v1385, %v1507
      %v1610 = vadd.f32 %v1386, %v1516
      %v1611 = vadd.f32 %v1387, %v1525
      %v1612 = vadd.f32 %v1388, %v1534
      %v1613 = vadd.f32 %v1389, %v1543
      %v1614 = vadd.f32 %v1390, %v1552
      %v1615 = vadd.f32 %v1391, %v1561
      %v1616 = vadd.f32 %v1392, %v1570
      %v1617 = vadd.f32 %v1393, %v1579
      %v1618 = vadd.f32 %v1394, %v1588
      %v1619 = vadd.f32 %v1395, %v1597
      %v1620 = vadd.f32 %v1396, %v1606
      %v1621 = vsel %vm1397, %v1411, %v1607
      %v1622 = vsel %vm1398, %v1412, %v1608
      %v1623 = vsel %vm1399, %v1413, %v1609
      %v1624 = vsel %vm1400, %v1414, %v1610
      %v1625 = vsel %vm1401, %v1415, %v1611
      %v1626 = vsel %vm1402, %v1416, %v1612
      %v1627 = vsel %vm1403, %v1417, %v1613
      %v1628 = vsel %vm1404, %v1418, %v1614
      %v1629 = vsel %vm1405, %v1419, %v1615
      %v1630 = vsel %vm1406, %v1420, %v1616
      %v1631 = vsel %vm1407, %v1421, %v1617
      %v1632 = vsel %vm1408, %v1422, %v1618
      %v1633 = vsel %vm1409, %v1423, %v1619
      %v1634 = vsel %vm1410, %v1424, %v1620
      %v1635 = vmul.f32 %v1621, 0.9
      %v1636 = vmul.f32 %v1622, 0.9
      %v1637 = vmul.f32 %v1623, 0.9
      %v1638 = vmul.f32 %v1624, 0.9
      %v1639 = vmul.f32 %v1625, 0.9
      %v1640 = vmul.f32 %v1626, 0.9
      %v1641 = vmul.f32 %v1627, 0.9
      %v1642 = vmul.f32 %v1628, 0.9
      %v1643 = vmul.f32 %v1629, 0.9
      %v1644 = vmul.f32 %v1630, 0.9
      %v1645 = vmul.f32 %v1631, 0.9
      %v1646 = vmul.f32 %v1632, 0.9
      %v1647 = vmul.f32 %v1633, 0.9
      %v1648 = vmul.f32 %v1634, 0.9
      %v1649 = vadd.f32 %v1635, 0.1
      %v1650 = vadd.f32 %v1636, 0.1
      %v1651 = vadd.f32 %v1637, 0.1
      %v1652 = vadd.f32 %v1638, 0.1
      %v1653 = vadd.f32 %v1639, 0.1
      %v1654 = vadd.f32 %v1640, 0.1
      %v1655 = vadd.f32 %v1641, 0.1
      %v1656 = vadd.f32 %v1642, 0.1
      %v1657 = vadd.f32 %v1643, 0.1
      %v1658 = vadd.f32 %v1644, 0.1
      %v1659 = vadd.f32 %v1645, 0.1
      %v1660 = vadd.f32 %v1646, 0.1
      %v1661 = vadd.f32 %v1647, 0.1
      %v1662 = vadd.f32 %v1648, 0.1
      %vm1663 = vcmp.lt.s32.totalorder %v1382, 2
      %v1664 = vsel %vm1663, %v1327, %v1649
      %v1665 = vsel %vm1663, %v1330, %v1650
      %v1666 = vsel %vm1663, %v1335, %v1651
      %v1667 = vsel %vm1663, %v1338, %v1652
      %v1668 = vsel %vm1663, %v1343, %v1653
      %v1669 = vsel %vm1663, %v1346, %v1654
      %v1670 = vsel %vm1663, %v1351, %v1655
      %v1671 = vsel %vm1663, %v1354, %v1656
      %v1672 = vsel %vm1663, %v1359, %v1657
      %v1673 = vsel %vm1663, %v1362, %v1658
      %v1674 = vsel %vm1663, %v1367, %v1659
      %v1675 = vsel %vm1663, %v1370, %v1660
      %v1676 = vsel %vm1663, %v1375, %v1661
      %v1677 = vsel %vm1663, %v1378, %v1662
      %vm1678 = vcmask 31744
      %1679 = vst.msk [vmem:[%s432] sm:$0xff] %vm1678, %v1664
      %1680 = vst.msk [vmem:[%s432 + $0x8] sm:$0xff] %vm1678, %v1665
      %1681 = vst.msk [vmem:[%s432 + $0x10] sm:$0xff] %vm1678, %v1666
      %1682 = vst.msk [vmem:[%s432 + $0x18] sm:$0xff] %vm1678, %v1667
      %1683 = vst.msk [vmem:[%s432 + $0x20] sm:$0xff] %vm1678, %v1668
      %1684 = vst.msk [vmem:[%s432 + $0x28] sm:$0xff] %vm1678, %v1669
      %1685 = vst.msk [vmem:[%s432 + $0x30] sm:$0xff] %vm1678, %v1670
      %1686 = vst.msk [vmem:[%s432 + $0x38] sm:$0xff] %vm1678, %v1671
      %1687 = vst.msk [vmem:[%s432 + $0x40] sm:$0xff] %vm1678, %v1672
      %1688 = vst.msk [vmem:[%s432 + $0x48] sm:$0xff] %vm1678, %v1673
      %1689 = vst.msk [vmem:[%s432 + $0x50] sm:$0xff] %vm1678, %v1674
      %1690 = vst.msk [vmem:[%s432 + $0x58] sm:$0xff] %vm1678, %v1675
      %1691 = vst.msk [vmem:[%s432 + $0x60] sm:$0xff] %vm1678, %v1676
      %1692 = vst.msk [vmem:[%s432 + $0x68] sm:$0xff] %vm1678, %v1677
      %s1693 = smul.u32 14, %s22
      %p1694 = scmp.lt.s32.totalorder %s1693, 27
      %s1695 = scalar_select %p1694, %s1693, 27
      %s1696 = smul.addr %s1695, 8
      %s1697 = scalar_lea.vmem %s11, %s1696
      // Predicated region
      $region65: #{tpu_custom_call.1} parent=63 // pred_check
        %p1698 = pneg %p286
      $region66: #{tpu_custom_call.1} parent=63 // pred_check_branch
        %1700 = sbr.rel (%p1698) target = $region68
      $region67: #{tpu_custom_call.1} parent=63 // pred_region
        %s1701 = smul.u32 14, %s22
      $region68: #{tpu_custom_call.1} parent=63 // pred_fallthru
        _
    $region64: #{tpu_custom_call.1} parent=5 // pred_fallthru
      _
    %p1702 = scmp.le.s32.totalorder 2, %s17
    // Predicated region
    $region69: #{tpu_custom_call.1} parent=5 // pred_check
      %p1703 = pneg %p1702
    $region70: #{tpu_custom_call.1} parent=5 // pred_check_branch
      %1705 = sbr.rel (%p1703) target = $region72
    $region71: #{tpu_custom_call.1} parent=5 // pred_region
      %s1706 = ssub.s32 %s17, 2
      // Predicated region
      $region73: #{tpu_custom_call.1} parent=71 // pred_check
        %p1707 = pneg %p292
      $region74: #{tpu_custom_call.1} parent=71 // pred_check_branch
        %1709 = sbr.rel (%p1707) target = $region76
      $region75: #{tpu_custom_call.1} parent=71 // pred_region
        %s1710 = smul.u32 14, %s23
        %p1711 = scmp.lt.s32.totalorder %s1710, 27
        %s1712 = scalar_select %p1711, %s1710, 27
        %s1713 = smul.addr %s1712, 8
        %s1714 = scalar_lea.vmem %s11, %s1713
      $region76: #{tpu_custom_call.1} parent=71 // pred_fallthru
        _
    $region72: #{tpu_custom_call.1} parent=5 // pred_fallthru
      _
  $region6: #{tpu_custom_call.1} parent=0 // loop_footer
    %s21 = sadd.s32 1, %s17
  $region7: #{tpu_custom_call.1} parent=0 // loop_footer_branch
    %16 = sbr.rel target = $region3
  $region8: #{tpu_custom_call.1} parent=0 // loop_exit
    _

</llo_original>
